<compile_context>
chip_gen: v6e
topology: v6e:2x2x1
jax: 0.10.0
libtpu: 0.0.40
codegen_flags: <defaults>
</compile_context>

<pallas_src>
import math

import jax
import jax.numpy as jnp
from jax.experimental import pallas as pl
from jax.experimental.pallas import tpu as pltpu

# ---------------- synthetic ViT config (small, consistent with the module) -----
IMG = 32            # stand-in for 224
PATCH = 16          # same patch size as vit_base_patch16_224_dino
CHANS = 3
DIM = 128           # stand-in for 768 (multiple of 128 -> lane-dense)
HEADS = 4
HEAD_DIM = DIM // HEADS
DEPTH = 2           # stand-in for 12
MLP = 4 * DIM
GRID_P = IMG // PATCH
N_PATCH = GRID_P * GRID_P
SEQ = N_PATCH + 1            # +1 CLS token
S_PAD = 8                    # sequence padded to a sublane multiple
PATCH_DIM = CHANS * PATCH * PATCH
LN_EPS = 1e-6
NEG_INF = -1e30


# ------------------------------- kernel helpers --------------------------------
def _ln(x, w, b):
    mean = jnp.mean(x, axis=-1, keepdims=True)
    var = jnp.mean((x - mean) ** 2, axis=-1, keepdims=True)
    return (x - mean) * jax.lax.rsqrt(var + LN_EPS) * w + b


# ------------------------------ patch-embed kernel -----------------------------
def patch_embed_kernel(x_ref, w_ref, b_ref, o_ref):
    # bf16 patches @ bf16 weight on the MXU, f32 accumulate
    acc = jnp.dot(x_ref[...], w_ref[...], preferred_element_type=jnp.float32)
    o_ref[...] = (acc + b_ref[...]).astype(o_ref.dtype)


def patch_embed(patches_bf16, w, b):
    rows, pdim = patches_bf16.shape
    dim = w.shape[1]
    tile = 512 if rows % 512 == 0 else rows      # row-tiled at real scale
    return pl.pallas_call(
        patch_embed_kernel,
        out_shape=jax.ShapeDtypeStruct((rows, dim), jnp.float32),
        grid=(rows // tile,),
        in_specs=[pl.BlockSpec((tile, pdim), lambda i: (i, 0)),
                  pl.BlockSpec((pdim, dim), lambda i: (0, 0)),
                  pl.BlockSpec((1, dim), lambda i: (0, 0))],
        out_specs=pl.BlockSpec((tile, dim), lambda i: (i, 0)),
        compiler_params=pltpu.CompilerParams(dimension_semantics=("parallel",)),
    )(patches_bf16, w, b)


# --------------- fused transformer stack + final-LN + cosine (one call) --------
def fused_blocks_kernel(x_hbm, kbias_ref, nw_ref, nb_ref,
                        ln1w, ln1b, wqkv, bqkv, wo, bo,
                        ln2w, ln2b, w1, b1, w2, b2,
                        o_ref, resid, sem):
    d = pl.program_id(0)

    # d == 0: pull tokens from HBM into the VMEM-resident residual stream once
    # (x is memory_space=ANY, so it never occupies a pipelined double buffer).
    @pl.when(d == 0)
    def _():
        cp = pltpu.make_async_copy(x_hbm, resid, sem)
        cp.start()
        cp.wait()

    x = resid[...]                                      # (rows, DIM) f32
    rows = x.shape[0]
    bt = rows // S_PAD
    scale = 1.0 / math.sqrt(HEAD_DIM)

    # ---------------- attention ----------------
    h = _ln(x, ln1w[0], ln1b[0])
    qkv = jnp.dot(h.astype(jnp.bfloat16), wqkv[0],
                  preferred_element_type=jnp.float32) + bqkv[0]      # (rows, 3*DIM)

    # fold the softmax scale into q (DIM-wide) instead of scaling the SxS scores
    qf = (qkv[:, 0:DIM] * scale).reshape(bt, S_PAD, DIM)
    kf = qkv[:, DIM:2 * DIM].reshape(bt, S_PAD, DIM)
    vf = qkv[:, 2 * DIM:3 * DIM].reshape(bt, S_PAD, DIM)

    def split_heads(t):      # (bt, S, DIM) -> (HEADS*bt, S, HEAD_DIM)
        return jnp.concatenate(
            [t[:, :, hh * HEAD_DIM:(hh + 1) * HEAD_DIM] for hh in range(HEADS)],
            axis=0)

    qh = split_heads(qf).astype(jnp.bfloat16)
    kh = split_heads(kf).astype(jnp.bfloat16)
    vh = split_heads(vf).astype(jnp.bfloat16)

    key_bias = kbias_ref[...].reshape(1, 1, S_PAD)       # padded keys -> -inf
    s = jnp.einsum("bqd,bkd->bqk", qh, kh,
                   preferred_element_type=jnp.float32) + key_bias   # (H*bt, S, S)
    s = s - jnp.max(s, axis=-1, keepdims=True)
    p = jnp.exp(s)
    p = p * pl.reciprocal(jnp.sum(p, axis=-1, keepdims=True), approx=True)
    ph = jnp.einsum("bqk,bkd->bqd", p.astype(jnp.bfloat16), vh,
                    preferred_element_type=jnp.float32)              # (H*bt, S, hd)

    # heads back into lanes -> ONE full-K output projection matmul
    attn = jnp.concatenate(
        [ph[hh * bt:(hh + 1) * bt] for hh in range(HEADS)], axis=-1)  # (bt, S, DIM)
    attn = attn.reshape(rows, DIM).astype(jnp.bfloat16)
    x = x + jnp.dot(attn, wo[0], preferred_element_type=jnp.float32) + bo[0]

    # ---------------- MLP ----------------
    h2 = _ln(x, ln2w[0], ln2b[0])
    h2 = jnp.dot(h2.astype(jnp.bfloat16), w1[0],
                 preferred_element_type=jnp.float32) + b1[0]
    # TODO(synk): timm/DINO ViT uses exact (erf) GELU; tanh approximation used here.
    h2 = jax.nn.gelu(h2, approximate=True)
    h2 = jnp.dot(h2.astype(jnp.bfloat16), w2[0],
                 preferred_element_type=jnp.float32) + b2[0]
    x = x + h2

    resid[...] = x

    # d == last: final LN on CLS rows + cosine similarity, lane-dense output.
    @pl.when(d == pl.num_programs(0) - 1)
    def _():
        cls = x.reshape(bt, S_PAD, DIM)[:, 0, :]          # (2B, DIM) CLS tokens
        c = _ln(cls, nw_ref[...], nb_ref[...])
        npair = bt // 2
        c1 = c[:npair]
        c2 = c[npair:]
        num = jnp.sum(c1 * c2, axis=-1, keepdims=True)
        n1 = jnp.sqrt(jnp.sum(c1 * c1, axis=-1, keepdims=True))
        n2 = jnp.sqrt(jnp.sum(c2 * c2, axis=-1, keepdims=True))
        eps = 1e-8
        sim = num / (jnp.maximum(n1, eps) * jnp.maximum(n2, eps))    # (B, 1)
        o_ref[...] = jnp.broadcast_to(sim, (npair, DIM)).astype(o_ref.dtype)


def _wspec(a):
    """One depth-slice block of a depth-stacked parameter, indexed by the grid."""
    trail = a.shape[1:]
    zeros = (0,) * len(trail)
    return pl.BlockSpec((1,) + trail, lambda d: (d,) + zeros)


def run_blocks(x, key_bias, params):
    rows = x.shape[0]
    bt = rows // S_PAD
    npair = bt // 2
    depth = params["wqkv"].shape[0]
    order = ["ln1w", "ln1b", "wqkv", "bqkv", "wo", "bo",
             "ln2w", "ln2b", "w1", "b1", "w2", "b2"]

    def const_spec(a):
        return pl.BlockSpec(a.shape, lambda d: (0,) * a.ndim)

    in_specs = ([pl.BlockSpec(memory_space=pl.ANY),        # tokens: manual DMA @ d==0
                 const_spec(key_bias),
                 const_spec(params["norm_w"]),
                 const_spec(params["norm_b"])]
                + [_wspec(params[k]) for k in order])

    return pl.pallas_call(
        fused_blocks_kernel,
        out_shape=jax.ShapeDtypeStruct((npair, DIM), jnp.float32),
        grid=(depth,),
        in_specs=in_specs,
        out_specs=pl.BlockSpec((npair, DIM), lambda d: (0, 0)),
        scratch_shapes=[pltpu.VMEM((rows, DIM), jnp.float32),   # resident residual
                        pltpu.SemaphoreType.DMA],
        # depth carries the residual stream -> sequential ("arbitrary").
        # TODO(synk): for v7x (2 TCs) add a leading "parallel" row-tile axis with
        # pair-interleaved batch packing; single-TC v5e/v6e gain nothing from it.
        compiler_params=pltpu.CompilerParams(dimension_semantics=("arbitrary",)),
    )(x, key_bias, params["norm_w"], params["norm_b"], *[params[k] for k in order])


# ------------------------------- plain-JAX glue ---------------------------------
def extract_patches(imgs):
    # (BT, C, H, W) -> (BT*N_PATCH, C*P*P), channel-major patch flatten (matches
    # Conv2d(stride=patch) patch embedding).
    bt = imgs.shape[0]
    x = imgs.reshape(bt, CHANS, GRID_P, PATCH, GRID_P, PATCH)
    x = x.transpose(0, 2, 4, 1, 3, 5)                 # (BT, gh, gw, C, p, p)
    return x.reshape(bt * N_PATCH, PATCH_DIM)


def build_tokens(imgs, params):
    bt = imgs.shape[0]
    patches = extract_patches(imgs).astype(jnp.bfloat16)   # matmul consumes bf16
    emb = patch_embed(patches, params["pe_w"], params["pe_b"])        # (BT*N_PATCH, D)
    emb = emb.reshape(bt, N_PATCH, DIM)
    cls = jnp.broadcast_to(params["cls"], (bt, 1, DIM))
    x = jnp.concatenate([cls, emb], axis=1) + params["pos"]           # (BT, SEQ, D)
    pad = jnp.zeros((bt, S_PAD - SEQ, DIM), jnp.float32)
    x = jnp.concatenate([x, pad], axis=1)                             # (BT, S_PAD, D)
    return x.reshape(bt * S_PAD, DIM)                                 # lane-dense slab


@jax.jit
def dino_siamese_forward(img1, img2, params):
    # matches DINOv2EmbeddingExtractor.forward: embed both, cosine sim along dim=1
    if img1.ndim == 3:
        img1 = img1[None]
    if img2.ndim == 3:
        img2 = img2[None]
    imgs = jnp.concatenate([img1, img2], axis=0)          # both images, one stream
    x = build_tokens(imgs, params)                        # (2B*S_PAD, D)
    key_bias = jnp.where(jnp.arange(S_PAD) < SEQ, 0.0, NEG_INF)
    key_bias = key_bias.astype(jnp.float32).reshape(1, S_PAD)
    sim = run_blocks(x, key_bias, params)                 # (B, 128) lane-dense
    return sim[:, 0]


# ------------------------------ deterministic init ------------------------------
def init_params(key):
    ks = iter(jax.random.split(key, 32))

    def nrm(shape, dt=jnp.bfloat16, s=0.02):
        return (s * jax.random.normal(next(ks), shape, jnp.float32)).astype(dt)

    ones = lambda shape: jnp.ones(shape, jnp.float32)
    zeros = lambda shape: jnp.zeros(shape, jnp.float32)

    return dict(
        # patch embed (weights in bf16, biases/LN params in f32)
        pe_w=nrm((PATCH_DIM, DIM)),
        pe_b=zeros((1, DIM)),
        cls=nrm((1, 1, DIM), jnp.float32),
        pos=nrm((1, SEQ, DIM), jnp.float32),
        # depth-stacked transformer block parameters
        ln1w=ones((DEPTH, 1, DIM)), ln1b=zeros((DEPTH, 1, DIM)),
        wqkv=nrm((DEPTH, DIM, 3 * DIM)),
        bqkv=zeros((DEPTH, 1, 3 * DIM)),
        wo=nrm((DEPTH, DIM, DIM)),                 # full (D, D) output projection
        bo=zeros((DEPTH, 1, DIM)),
        ln2w=ones((DEPTH, 1, DIM)), ln2b=zeros((DEPTH, 1, DIM)),
        w1=nrm((DEPTH, DIM, MLP)),
        b1=zeros((DEPTH, 1, MLP)),
        w2=nrm((DEPTH, MLP, DIM)),
        b2=zeros((DEPTH, 1, DIM)),
        # final norm
        norm_w=ones((1, DIM)), norm_b=zeros((1, DIM)),
    )


if __name__ == "__main__":
    key = jax.random.PRNGKey(0)
    kp, k1, k2 = jax.random.split(key, 3)
    params = init_params(kp)

    B = 2
    img1 = jax.random.normal(k1, (B, CHANS, IMG, IMG), jnp.float32)
    img2 = jax.random.normal(k2, (B, CHANS, IMG, IMG), jnp.float32)

    sim = dino_siamese_forward(img1, img2, params)
    sim = jax.block_until_ready(sim)
    assert sim.shape == (B,), sim.shape
    assert bool(jnp.all(jnp.isfinite(sim)))
    print("KERNEL_OK")
</pallas_src>

<mosaic_0001>
module attributes {stable_mosaic.version = 11 : i64} {
  func.func @patch_embed_kernel(%arg0: i32, %arg1: memref<16x768xbf16, #tpu.memory_space<vmem>>, %arg2: memref<768x128xbf16, #tpu.memory_space<vmem>>, %arg3: memref<1x128xf32, #tpu.memory_space<vmem>>, %arg4: memref<16x128xf32, #tpu.memory_space<vmem>>) attributes {dimension_semantics = [#tpu.dimension_semantics<parallel>], iteration_bounds = array<i64: 1>, scalar_prefetch = 0 : i64, scratch_operands = 0 : i64, tpu.core_type = #tpu.core_type<tc>, window_params = [{transform_indices = @transform_0, window_bounds = array<i64: 16, 768>}, {pipeline_mode = #tpu.pipeline_mode<synchronous>, transform_indices = @transform_1, window_bounds = array<i64: 768, 128>}, {pipeline_mode = #tpu.pipeline_mode<synchronous>, transform_indices = @transform_2, window_bounds = array<i64: 1, 128>}, {transform_indices = @transform_3, window_bounds = array<i64: 16, 128>}]} {
    %c0 = arith.constant 0 : index
    %c0_0 = arith.constant 0 : index
    %0 = vector.load %arg1[%c0, %c0_0] : memref<16x768xbf16, #tpu.memory_space<vmem>>, vector<16x768xbf16>
    %c0_1 = arith.constant 0 : index
    %c0_2 = arith.constant 0 : index
    %1 = vector.load %arg2[%c0_1, %c0_2] : memref<768x128xbf16, #tpu.memory_space<vmem>>, vector<768x128xbf16>
    %cst = arith.constant dense<0.000000e+00> : vector<16x128xf32>
    %2 = tpu.matmul %0, %1, %cst {dimension_numbers = #tpu.dot_dimension_numbers<[1], [0], [0], [1], [0, 0, 1, 1], [], []>} : vector<16x768xbf16>, vector<768x128xbf16>, vector<16x128xf32> -> vector<16x128xf32>
    %c0_3 = arith.constant 0 : index
    %c0_4 = arith.constant 0 : index
    %3 = vector.load %arg3[%c0_3, %c0_4] : memref<1x128xf32, #tpu.memory_space<vmem>>, vector<1x128xf32>
    %4 = vector.broadcast %3 : vector<1x128xf32> to vector<16x128xf32>
    %5 = arith.addf %2, %4 : vector<16x128xf32>
    %c0_5 = arith.constant 0 : index
    %c0_6 = arith.constant 0 : index
    %6 = vector.load %arg4[%c0_5, %c0_6] : memref<16x128xf32, #tpu.memory_space<vmem>>, vector<16x128xf32>
    tpu.vector_store %arg4[%c0_5, %c0_6], %5 {strides = array<i32>} : memref<16x128xf32, #tpu.memory_space<vmem>>, vector<16x128xf32>,
    return
  }
  func.func @transform_0(%arg0: i32) -> (i32, i32) {
    %c0_i32 = arith.constant 0 : i32
    %c0_i32_0 = arith.constant 0 : i32
    return %arg0, %c0_i32 : i32, i32
  }
  func.func @transform_1(%arg0: i32) -> (i32, i32) {
    %c0_i32 = arith.constant 0 : i32
    %c0_i32_0 = arith.constant 0 : i32
    %c0_i32_1 = arith.constant 0 : i32
    return %c0_i32, %c0_i32_0 : i32, i32
  }
  func.func @transform_2(%arg0: i32) -> (i32, i32) {
    %c0_i32 = arith.constant 0 : i32
    %c0_i32_0 = arith.constant 0 : i32
    %c0_i32_1 = arith.constant 0 : i32
    return %c0_i32, %c0_i32_0 : i32, i32
  }
  func.func @transform_3(%arg0: i32) -> (i32, i32) {
    %c0_i32 = arith.constant 0 : i32
    %c0_i32_0 = arith.constant 0 : i32
    return %arg0, %c0_i32 : i32, i32
  }
}

module attributes {stable_mosaic.version = 11 : i64} {
  func.func @fused_blocks_kernel(%arg0: i32, %arg1: memref<32x128xf32, #tpu.memory_space<any>>, %arg2: memref<1x8xf32, #tpu.memory_space<vmem>>, %arg3: memref<1x128xf32, #tpu.memory_space<vmem>>, %arg4: memref<1x128xf32, #tpu.memory_space<vmem>>, %arg5: memref<1x1x128xf32, #tpu.memory_space<vmem>>, %arg6: memref<1x1x128xf32, #tpu.memory_space<vmem>>, %arg7: memref<1x128x384xbf16, #tpu.memory_space<vmem>>, %arg8: memref<1x1x384xf32, #tpu.memory_space<vmem>>, %arg9: memref<1x128x128xbf16, #tpu.memory_space<vmem>>, %arg10: memref<1x1x128xf32, #tpu.memory_space<vmem>>, %arg11: memref<1x1x128xf32, #tpu.memory_space<vmem>>, %arg12: memref<1x1x128xf32, #tpu.memory_space<vmem>>, %arg13: memref<1x128x512xbf16, #tpu.memory_space<vmem>>, %arg14: memref<1x1x512xf32, #tpu.memory_space<vmem>>, %arg15: memref<1x512x128xbf16, #tpu.memory_space<vmem>>, %arg16: memref<1x1x128xf32, #tpu.memory_space<vmem>>, %arg17: memref<2x128xf32, #tpu.memory_space<vmem>>, %arg18: memref<32x128xf32, #tpu.memory_space<vmem>>, %arg19: memref<!tpu.dma_semaphore, #tpu.memory_space<semaphore_mem>>) attributes {dimension_semantics = [#tpu.dimension_semantics<arbitrary>], iteration_bounds = array<i64: 2>, scalar_prefetch = 0 : i64, scratch_operands = 2 : i64, tpu.core_type = #tpu.core_type<tc>, window_params = [{}, {pipeline_mode = #tpu.pipeline_mode<synchronous>, transform_indices = @transform_1, window_bounds = array<i64: 1, 8>}, {pipeline_mode = #tpu.pipeline_mode<synchronous>, transform_indices = @transform_2, window_bounds = array<i64: 1, 128>}, {pipeline_mode = #tpu.pipeline_mode<synchronous>, transform_indices = @transform_3, window_bounds = array<i64: 1, 128>}, {transform_indices = @transform_4, window_bounds = array<i64: 1, 1, 128>}, {transform_indices = @transform_5, window_bounds = array<i64: 1, 1, 128>}, {transform_indices = @transform_6, window_bounds = array<i64: 1, 128, 384>}, {transform_indices = @transform_7, window_bounds = array<i64: 1, 1, 384>}, {transform_indices = @transform_8, window_bounds = array<i64: 1, 128, 128>}, {transform_indices = @transform_9, window_bounds = array<i64: 1, 1, 128>}, {transform_indices = @transform_10, window_bounds = array<i64: 1, 1, 128>}, {transform_indices = @transform_11, window_bounds = array<i64: 1, 1, 128>}, {transform_indices = @transform_12, window_bounds = array<i64: 1, 128, 512>}, {transform_indices = @transform_13, window_bounds = array<i64: 1, 1, 512>}, {transform_indices = @transform_14, window_bounds = array<i64: 1, 512, 128>}, {transform_indices = @transform_15, window_bounds = array<i64: 1, 1, 128>}, {pipeline_mode = #tpu.pipeline_mode<synchronous>, transform_indices = @transform_16, window_bounds = array<i64: 2, 128>}]} {
    %c0_i32 = arith.constant 0 : i32
    %0 = arith.cmpi eq, %arg0, %c0_i32 : i32
    %1 = arith.extui %0 : i1 to i32
    %c0_i32_0 = arith.constant 0 : i32
    %2 = arith.cmpi ne, %1, %c0_i32_0 : i32
    scf.if %2 {
      tpu.enqueue_dma source(%arg1 : memref<32x128xf32, #tpu.memory_space<any>>) target(%arg18 : memref<32x128xf32, #tpu.memory_space<vmem>>) target_semaphore(%arg19 : memref<!tpu.dma_semaphore, #tpu.memory_space<semaphore_mem>>)
      tpu.wait_dma2 semaphore(%arg19 : memref<!tpu.dma_semaphore, #tpu.memory_space<semaphore_mem>>) src(%arg1 : memref<32x128xf32, #tpu.memory_space<any>>) dst(%arg18 : memref<32x128xf32, #tpu.memory_space<vmem>>)
    } else {
    }
    %c0 = arith.constant 0 : index
    %c0_1 = arith.constant 0 : index
    %3 = vector.load %arg18[%c0, %c0_1] : memref<32x128xf32, #tpu.memory_space<vmem>>, vector<32x128xf32>
    %c0_2 = arith.constant 0 : index
    %c0_3 = arith.constant 0 : index
    %c0_4 = arith.constant 0 : index
    %4 = vector.load %arg5[%c0_2, %c0_3, %c0_4] : memref<1x1x128xf32, #tpu.memory_space<vmem>>, vector<1x1x128xf32>
    %5 = vector.shape_cast %4 : vector<1x1x128xf32> to vector<1x128xf32>
    %c0_5 = arith.constant 0 : index
    %c0_6 = arith.constant 0 : index
    %c0_7 = arith.constant 0 : index
    %6 = vector.load %arg6[%c0_5, %c0_6, %c0_7] : memref<1x1x128xf32, #tpu.memory_space<vmem>>, vector<1x1x128xf32>
    %7 = vector.shape_cast %6 : vector<1x1x128xf32> to vector<1x128xf32>
    %cst = arith.constant dense<0.000000e+00> : vector<32xf32>
    %8 = vector.multi_reduction <add>, %3, %cst [1] : vector<32x128xf32> to vector<32xf32>
    %9 = vector.shape_cast %8 : vector<32xf32> to vector<32x1xf32>
    %cst_8 = arith.constant 1.280000e+02 : f32
    %10 = vector.broadcast %cst_8 : f32 to vector<32x1xf32>
    %11 = arith.divf %9, %10 : vector<32x1xf32>
    %12 = vector.broadcast %11 : vector<32x1xf32> to vector<32x128xf32>
    %13 = arith.subf %3, %12 : vector<32x128xf32>
    %14 = arith.mulf %13, %13 : vector<32x128xf32>
    %cst_9 = arith.constant dense<0.000000e+00> : vector<32xf32>
    %15 = vector.multi_reduction <add>, %14, %cst_9 [1] : vector<32x128xf32> to vector<32xf32>
    %16 = vector.shape_cast %15 : vector<32xf32> to vector<32x1xf32>
    %cst_10 = arith.constant 1.280000e+02 : f32
    %17 = vector.broadcast %cst_10 : f32 to vector<32x1xf32>
    %18 = arith.divf %16, %17 : vector<32x1xf32>
    %19 = vector.broadcast %11 : vector<32x1xf32> to vector<32x128xf32>
    %20 = arith.subf %3, %19 : vector<32x128xf32>
    %cst_11 = arith.constant 9.99999997E-7 : f32
    %21 = vector.broadcast %cst_11 : f32 to vector<32x1xf32>
    %22 = arith.addf %18, %21 : vector<32x1xf32>
    %23 = math.rsqrt %22 : vector<32x1xf32>
    %24 = vector.broadcast %23 : vector<32x1xf32> to vector<32x128xf32>
    %25 = arith.mulf %20, %24 : vector<32x128xf32>
    %26 = vector.broadcast %5 : vector<1x128xf32> to vector<32x128xf32>
    %27 = arith.mulf %25, %26 : vector<32x128xf32>
    %28 = vector.broadcast %7 : vector<1x128xf32> to vector<32x128xf32>
    %29 = arith.addf %27, %28 : vector<32x128xf32>
    %30 = arith.truncf %29 : vector<32x128xf32> to vector<32x128xbf16>
    %c0_12 = arith.constant 0 : index
    %c0_13 = arith.constant 0 : index
    %c0_14 = arith.constant 0 : index
    %31 = vector.load %arg7[%c0_12, %c0_13, %c0_14] : memref<1x128x384xbf16, #tpu.memory_space<vmem>>, vector<1x128x384xbf16>
    %32 = vector.shape_cast %31 : vector<1x128x384xbf16> to vector<128x384xbf16>
    %cst_15 = arith.constant dense<0.000000e+00> : vector<32x384xf32>
    %33 = tpu.matmul %30, %32, %cst_15 {dimension_numbers = #tpu.dot_dimension_numbers<[1], [0], [0], [1], [0, 0, 1, 1], [], []>} : vector<32x128xbf16>, vector<128x384xbf16>, vector<32x384xf32> -> vector<32x384xf32>
    %c0_16 = arith.constant 0 : index
    %c0_17 = arith.constant 0 : index
    %c0_18 = arith.constant 0 : index
    %34 = vector.load %arg8[%c0_16, %c0_17, %c0_18] : memref<1x1x384xf32, #tpu.memory_space<vmem>>, vector<1x1x384xf32>
    %35 = vector.shape_cast %34 : vector<1x1x384xf32> to vector<1x384xf32>
    %36 = vector.broadcast %35 : vector<1x384xf32> to vector<32x384xf32>
    %37 = arith.addf %33, %36 : vector<32x384xf32>
    %38 = vector.extract_strided_slice %37 {offsets = [0, 0], sizes = [32, 128], strides = [1, 1]} : vector<32x384xf32> to vector<32x128xf32>
    %cst_19 = arith.constant 0.176776692 : f32
    %39 = vector.broadcast %cst_19 : f32 to vector<32x128xf32>
    %40 = arith.mulf %38, %39 : vector<32x128xf32>
    %41 = vector.shape_cast %40 : vector<32x128xf32> to vector<4x8x128xf32>
    %42 = vector.extract_strided_slice %37 {offsets = [0, 128], sizes = [32, 128], strides = [1, 1]} : vector<32x384xf32> to vector<32x128xf32>
    %43 = vector.shape_cast %42 : vector<32x128xf32> to vector<4x8x128xf32>
    %44 = vector.extract_strided_slice %37 {offsets = [0, 256], sizes = [32, 128], strides = [1, 1]} : vector<32x384xf32> to vector<32x128xf32>
    %45 = vector.shape_cast %44 : vector<32x128xf32> to vector<4x8x128xf32>
    %46 = vector.extract_strided_slice %41 {offsets = [0, 0, 0], sizes = [4, 8, 32], strides = [1, 1, 1]} : vector<4x8x128xf32> to vector<4x8x32xf32>
    %47 = vector.extract_strided_slice %41 {offsets = [0, 0, 32], sizes = [4, 8, 32], strides = [1, 1, 1]} : vector<4x8x128xf32> to vector<4x8x32xf32>
    %48 = vector.extract_strided_slice %41 {offsets = [0, 0, 64], sizes = [4, 8, 32], strides = [1, 1, 1]} : vector<4x8x128xf32> to vector<4x8x32xf32>
    %49 = vector.extract_strided_slice %41 {offsets = [0, 0, 96], sizes = [4, 8, 32], strides = [1, 1, 1]} : vector<4x8x128xf32> to vector<4x8x32xf32>
    %50 = tpu.concatenate %46, %47, %48, %49 in 0 : vector<4x8x32xf32>, vector<4x8x32xf32>, vector<4x8x32xf32>, vector<4x8x32xf32> -> vector<16x8x32xf32>
    %51 = arith.truncf %50 : vector<16x8x32xf32> to vector<16x8x32xbf16>
    %52 = vector.extract_strided_slice %43 {offsets = [0, 0, 0], sizes = [4, 8, 32], strides = [1, 1, 1]} : vector<4x8x128xf32> to vector<4x8x32xf32>
    %53 = vector.extract_strided_slice %43 {offsets = [0, 0, 32], sizes = [4, 8, 32], strides = [1, 1, 1]} : vector<4x8x128xf32> to vector<4x8x32xf32>
    %54 = vector.extract_strided_slice %43 {offsets = [0, 0, 64], sizes = [4, 8, 32], strides = [1, 1, 1]} : vector<4x8x128xf32> to vector<4x8x32xf32>
    %55 = vector.extract_strided_slice %43 {offsets = [0, 0, 96], sizes = [4, 8, 32], strides = [1, 1, 1]} : vector<4x8x128xf32> to vector<4x8x32xf32>
    %56 = tpu.concatenate %52, %53, %54, %55 in 0 : vector<4x8x32xf32>, vector<4x8x32xf32>, vector<4x8x32xf32>, vector<4x8x32xf32> -> vector<16x8x32xf32>
    %57 = arith.truncf %56 : vector<16x8x32xf32> to vector<16x8x32xbf16>
    %58 = vector.extract_strided_slice %45 {offsets = [0, 0, 0], sizes = [4, 8, 32], strides = [1, 1, 1]} : vector<4x8x128xf32> to vector<4x8x32xf32>
    %59 = vector.extract_strided_slice %45 {offsets = [0, 0, 32], sizes = [4, 8, 32], strides = [1, 1, 1]} : vector<4x8x128xf32> to vector<4x8x32xf32>
    %60 = vector.extract_strided_slice %45 {offsets = [0, 0, 64], sizes = [4, 8, 32], strides = [1, 1, 1]} : vector<4x8x128xf32> to vector<4x8x32xf32>
    %61 = vector.extract_strided_slice %45 {offsets = [0, 0, 96], sizes = [4, 8, 32], strides = [1, 1, 1]} : vector<4x8x128xf32> to vector<4x8x32xf32>
    %62 = tpu.concatenate %58, %59, %60, %61 in 0 : vector<4x8x32xf32>, vector<4x8x32xf32>, vector<4x8x32xf32>, vector<4x8x32xf32> -> vector<16x8x32xf32>
    %63 = arith.truncf %62 : vector<16x8x32xf32> to vector<16x8x32xbf16>
    %c0_20 = arith.constant 0 : index
    %c0_21 = arith.constant 0 : index
    %64 = vector.load %arg2[%c0_20, %c0_21] : memref<1x8xf32, #tpu.memory_space<vmem>>, vector<1x8xf32>
    %65 = vector.shape_cast %64 : vector<1x8xf32> to vector<1x1x8xf32>
    "tpu.trace_start"() <{level = 10 : i32, message = "bqd,bkd->bqk"}> : () -> ()
    %cst_22 = arith.constant dense<0.000000e+00> : vector<16x8x8xf32>
    %66 = tpu.matmul %51, %57, %cst_22 {dimension_numbers = #tpu.dot_dimension_numbers<[2], [2], [1], [1], [0, 0, 0, 1, 1, 1], [0], [0]>} : vector<16x8x32xbf16>, vector<16x8x32xbf16>, vector<16x8x8xf32> -> vector<16x8x8xf32>
    "tpu.trace_stop"() : () -> ()
    %67 = vector.broadcast %65 : vector<1x1x8xf32> to vector<16x8x8xf32>
    %68 = arith.addf %66, %67 : vector<16x8x8xf32>
    %cst_23 = arith.constant dense<0xFF800000> : vector<16x8xf32>
    %69 = vector.multi_reduction <maximumf>, %68, %cst_23 [2] : vector<16x8x8xf32> to vector<16x8xf32>
    %70 = vector.shape_cast %69 : vector<16x8xf32> to vector<16x8x1xf32>
    %71 = vector.broadcast %70 : vector<16x8x1xf32> to vector<16x8x8xf32>
    %72 = arith.subf %68, %71 : vector<16x8x8xf32>
    %73 = math.exp %72 : vector<16x8x8xf32>
    %cst_24 = arith.constant dense<0.000000e+00> : vector<16x8xf32>
    %74 = vector.multi_reduction <add>, %73, %cst_24 [2] : vector<16x8x8xf32> to vector<16x8xf32>
    %75 = vector.shape_cast %74 : vector<16x8xf32> to vector<16x8x1xf32>
    %76 = tpu.reciprocal %75 {approx = true} : vector<16x8x1xf32> -> vector<16x8x1xf32>
    %77 = vector.broadcast %76 : vector<16x8x1xf32> to vector<16x8x8xf32>
    %78 = arith.mulf %73, %77 : vector<16x8x8xf32>
    %79 = arith.truncf %78 : vector<16x8x8xf32> to vector<16x8x8xbf16>
    "tpu.trace_start"() <{level = 10 : i32, message = "bqk,bkd->bqd"}> : () -> ()
    %cst_25 = arith.constant dense<0.000000e+00> : vector<16x8x32xf32>
    %80 = tpu.matmul %79, %63, %cst_25 {dimension_numbers = #tpu.dot_dimension_numbers<[2], [1], [1], [2], [0, 0, 0, 1, 1, 2], [0], [0]>} : vector<16x8x8xbf16>, vector<16x8x32xbf16>, vector<16x8x32xf32> -> vector<16x8x32xf32>
    "tpu.trace_stop"() : () -> ()
    %81 = vector.extract_strided_slice %80 {offsets = [0, 0, 0], sizes = [4, 8, 32], strides = [1, 1, 1]} : vector<16x8x32xf32> to vector<4x8x32xf32>
    %82 = vector.extract_strided_slice %80 {offsets = [4, 0, 0], sizes = [4, 8, 32], strides = [1, 1, 1]} : vector<16x8x32xf32> to vector<4x8x32xf32>
    %83 = vector.extract_strided_slice %80 {offsets = [8, 0, 0], sizes = [4, 8, 32], strides = [1, 1, 1]} : vector<16x8x32xf32> to vector<4x8x32xf32>
    %84 = vector.extract_strided_slice %80 {offsets = [12, 0, 0], sizes = [4, 8, 32], strides = [1, 1, 1]} : vector<16x8x32xf32> to vector<4x8x32xf32>
    %85 = tpu.concatenate %81, %82, %83, %84 in 2 : vector<4x8x32xf32>, vector<4x8x32xf32>, vector<4x8x32xf32>, vector<4x8x32xf32> -> vector<4x8x128xf32>
    %86 = vector.shape_cast %85 : vector<4x8x128xf32> to vector<32x128xf32>
    %87 = arith.truncf %86 : vector<32x128xf32> to vector<32x128xbf16>
    %c0_26 = arith.constant 0 : index
    %c0_27 = arith.constant 0 : index
    %c0_28 = arith.constant 0 : index
    %88 = vector.load %arg9[%c0_26, %c0_27, %c0_28] : memref<1x128x128xbf16, #tpu.memory_space<vmem>>, vector<1x128x128xbf16>
    %89 = vector.shape_cast %88 : vector<1x128x128xbf16> to vector<128x128xbf16>
    %cst_29 = arith.constant dense<0.000000e+00> : vector<32x128xf32>
    %90 = tpu.matmul %87, %89, %cst_29 {dimension_numbers = #tpu.dot_dimension_numbers<[1], [0], [0], [1], [0, 0, 1, 1], [], []>} : vector<32x128xbf16>, vector<128x128xbf16>, vector<32x128xf32> -> vector<32x128xf32>
    %91 = arith.addf %3, %90 : vector<32x128xf32>
    %c0_30 = arith.constant 0 : index
    %c0_31 = arith.constant 0 : index
    %c0_32 = arith.constant 0 : index
    %92 = vector.load %arg10[%c0_30, %c0_31, %c0_32] : memref<1x1x128xf32, #tpu.memory_space<vmem>>, vector<1x1x128xf32>
    %93 = vector.shape_cast %92 : vector<1x1x128xf32> to vector<1x128xf32>
    %94 = vector.broadcast %93 : vector<1x128xf32> to vector<32x128xf32>
    %95 = arith.addf %91, %94 : vector<32x128xf32>
    %c0_33 = arith.constant 0 : index
    %c0_34 = arith.constant 0 : index
    %c0_35 = arith.constant 0 : index
    %96 = vector.load %arg11[%c0_33, %c0_34, %c0_35] : memref<1x1x128xf32, #tpu.memory_space<vmem>>, vector<1x1x128xf32>
    %97 = vector.shape_cast %96 : vector<1x1x128xf32> to vector<1x128xf32>
    %c0_36 = arith.constant 0 : index
    %c0_37 = arith.constant 0 : index
    %c0_38 = arith.constant 0 : index
    %98 = vector.load %arg12[%c0_36, %c0_37, %c0_38] : memref<1x1x128xf32, #tpu.memory_space<vmem>>, vector<1x1x128xf32>
    %99 = vector.shape_cast %98 : vector<1x1x128xf32> to vector<1x128xf32>
    %cst_39 = arith.constant dense<0.000000e+00> : vector<32xf32>
    %100 = vector.multi_reduction <add>, %95, %cst_39 [1] : vector<32x128xf32> to vector<32xf32>
    %101 = vector.shape_cast %100 : vector<32xf32> to vector<32x1xf32>
    %cst_40 = arith.constant 1.280000e+02 : f32
    %102 = vector.broadcast %cst_40 : f32 to vector<32x1xf32>
    %103 = arith.divf %101, %102 : vector<32x1xf32>
    %104 = vector.broadcast %103 : vector<32x1xf32> to vector<32x128xf32>
    %105 = arith.subf %95, %104 : vector<32x128xf32>
    %106 = arith.mulf %105, %105 : vector<32x128xf32>
    %cst_41 = arith.constant dense<0.000000e+00> : vector<32xf32>
    %107 = vector.multi_reduction <add>, %106, %cst_41 [1] : vector<32x128xf32> to vector<32xf32>
    %108 = vector.shape_cast %107 : vector<32xf32> to vector<32x1xf32>
    %cst_42 = arith.constant 1.280000e+02 : f32
    %109 = vector.broadcast %cst_42 : f32 to vector<32x1xf32>
    %110 = arith.divf %108, %109 : vector<32x1xf32>
    %111 = vector.broadcast %103 : vector<32x1xf32> to vector<32x128xf32>
    %112 = arith.subf %95, %111 : vector<32x128xf32>
    %cst_43 = arith.constant 9.99999997E-7 : f32
    %113 = vector.broadcast %cst_43 : f32 to vector<32x1xf32>
    %114 = arith.addf %110, %113 : vector<32x1xf32>
    %115 = math.rsqrt %114 : vector<32x1xf32>
    %116 = vector.broadcast %115 : vector<32x1xf32> to vector<32x128xf32>
    %117 = arith.mulf %112, %116 : vector<32x128xf32>
    %118 = vector.broadcast %97 : vector<1x128xf32> to vector<32x128xf32>
    %119 = arith.mulf %117, %118 : vector<32x128xf32>
    %120 = vector.broadcast %99 : vector<1x128xf32> to vector<32x128xf32>
    %121 = arith.addf %119, %120 : vector<32x128xf32>
    %122 = arith.truncf %121 : vector<32x128xf32> to vector<32x128xbf16>
    %c0_44 = arith.constant 0 : index
    %c0_45 = arith.constant 0 : index
    %c0_46 = arith.constant 0 : index
    %123 = vector.load %arg13[%c0_44, %c0_45, %c0_46] : memref<1x128x512xbf16, #tpu.memory_space<vmem>>, vector<1x128x512xbf16>
    %124 = vector.shape_cast %123 : vector<1x128x512xbf16> to vector<128x512xbf16>
    %cst_47 = arith.constant dense<0.000000e+00> : vector<32x512xf32>
    %125 = tpu.matmul %122, %124, %cst_47 {dimension_numbers = #tpu.dot_dimension_numbers<[1], [0], [0], [1], [0, 0, 1, 1], [], []>} : vector<32x128xbf16>, vector<128x512xbf16>, vector<32x512xf32> -> vector<32x512xf32>
    %c0_48 = arith.constant 0 : index
    %c0_49 = arith.constant 0 : index
    %c0_50 = arith.constant 0 : index
    %126 = vector.load %arg14[%c0_48, %c0_49, %c0_50] : memref<1x1x512xf32, #tpu.memory_space<vmem>>, vector<1x1x512xf32>
    %127 = vector.shape_cast %126 : vector<1x1x512xf32> to vector<1x512xf32>
    %128 = vector.broadcast %127 : vector<1x512xf32> to vector<32x512xf32>
    %129 = arith.addf %125, %128 : vector<32x512xf32>
    %130 = arith.mulf %129, %129 : vector<32x512xf32>
    %131 = arith.mulf %129, %130 : vector<32x512xf32>
    %cst_51 = arith.constant 4.471500e-02 : f32
    %132 = vector.broadcast %cst_51 : f32 to vector<32x512xf32>
    %133 = arith.mulf %132, %131 : vector<32x512xf32>
    %134 = arith.addf %129, %133 : vector<32x512xf32>
    %cst_52 = arith.constant 0.797884583 : f32
    %135 = vector.broadcast %cst_52 : f32 to vector<32x512xf32>
    %136 = arith.mulf %135, %134 : vector<32x512xf32>
    %137 = math.tanh %136 : vector<32x512xf32>
    %cst_53 = arith.constant 1.000000e+00 : f32
    %138 = vector.broadcast %cst_53 : f32 to vector<32x512xf32>
    %139 = arith.addf %138, %137 : vector<32x512xf32>
    %cst_54 = arith.constant 5.000000e-01 : f32
    %140 = vector.broadcast %cst_54 : f32 to vector<32x512xf32>
    %141 = arith.mulf %140, %139 : vector<32x512xf32>
    %142 = arith.mulf %129, %141 : vector<32x512xf32>
    %143 = arith.truncf %142 : vector<32x512xf32> to vector<32x512xbf16>
    %c0_55 = arith.constant 0 : index
    %c0_56 = arith.constant 0 : index
    %c0_57 = arith.constant 0 : index
    %144 = vector.load %arg15[%c0_55, %c0_56, %c0_57] : memref<1x512x128xbf16, #tpu.memory_space<vmem>>, vector<1x512x128xbf16>
    %145 = vector.shape_cast %144 : vector<1x512x128xbf16> to vector<512x128xbf16>
    %cst_58 = arith.constant dense<0.000000e+00> : vector<32x128xf32>
    %146 = tpu.matmul %143, %145, %cst_58 {dimension_numbers = #tpu.dot_dimension_numbers<[1], [0], [0], [1], [0, 0, 1, 1], [], []>} : vector<32x512xbf16>, vector<512x128xbf16>, vector<32x128xf32> -> vector<32x128xf32>
    %c0_59 = arith.constant 0 : index
    %c0_60 = arith.constant 0 : index
    %c0_61 = arith.constant 0 : index
    %147 = vector.load %arg16[%c0_59, %c0_60, %c0_61] : memref<1x1x128xf32, #tpu.memory_space<vmem>>, vector<1x1x128xf32>
    %148 = vector.shape_cast %147 : vector<1x1x128xf32> to vector<1x128xf32>
    %149 = vector.broadcast %148 : vector<1x128xf32> to vector<32x128xf32>
    %150 = arith.addf %146, %149 : vector<32x128xf32>
    %151 = arith.addf %95, %150 : vector<32x128xf32>
    %c0_62 = arith.constant 0 : index
    %c0_63 = arith.constant 0 : index
    %152 = vector.load %arg18[%c0_62, %c0_63] : memref<32x128xf32, #tpu.memory_space<vmem>>, vector<32x128xf32>
    tpu.vector_store %arg18[%c0_62, %c0_63], %151 {strides = array<i32>} : memref<32x128xf32, #tpu.memory_space<vmem>>, vector<32x128xf32>,
    %c1_i32 = arith.constant 1 : i32
    %153 = arith.cmpi eq, %arg0, %c1_i32 : i32
    %154 = arith.extui %153 : i1 to i32
    %c0_i32_64 = arith.constant 0 : i32
    %155 = arith.cmpi ne, %154, %c0_i32_64 : i32
    scf.if %155 {
      %156 = vector.shape_cast %151 : vector<32x128xf32> to vector<4x8x128xf32>
      %157 = vector.extract_strided_slice %156 {offsets = [0, 0, 0], sizes = [4, 1, 128], strides = [1, 1, 1]} : vector<4x8x128xf32> to vector<4x1x128xf32>
      %158 = vector.shape_cast %157 : vector<4x1x128xf32> to vector<4x128xf32>
      %c0_65 = arith.constant 0 : index
      %c0_66 = arith.constant 0 : index
      %159 = vector.load %arg3[%c0_65, %c0_66] : memref<1x128xf32, #tpu.memory_space<vmem>>, vector<1x128xf32>
      %c0_67 = arith.constant 0 : index
      %c0_68 = arith.constant 0 : index
      %160 = vector.load %arg4[%c0_67, %c0_68] : memref<1x128xf32, #tpu.memory_space<vmem>>, vector<1x128xf32>
      %cst_69 = arith.constant dense<0.000000e+00> : vector<4xf32>
      %161 = vector.multi_reduction <add>, %158, %cst_69 [1] : vector<4x128xf32> to vector<4xf32>
      %162 = vector.shape_cast %161 : vector<4xf32> to vector<4x1xf32>
      %cst_70 = arith.constant 1.280000e+02 : f32
      %163 = vector.broadcast %cst_70 : f32 to vector<4x1xf32>
      %164 = arith.divf %162, %163 : vector<4x1xf32>
      %165 = vector.broadcast %164 : vector<4x1xf32> to vector<4x128xf32>
      %166 = arith.subf %158, %165 : vector<4x128xf32>
      %167 = arith.mulf %166, %166 : vector<4x128xf32>
      %cst_71 = arith.constant dense<0.000000e+00> : vector<4xf32>
      %168 = vector.multi_reduction <add>, %167, %cst_71 [1] : vector<4x128xf32> to vector<4xf32>
      %169 = vector.shape_cast %168 : vector<4xf32> to vector<4x1xf32>
      %cst_72 = arith.constant 1.280000e+02 : f32
      %170 = vector.broadcast %cst_72 : f32 to vector<4x1xf32>
      %171 = arith.divf %169, %170 : vector<4x1xf32>
      %172 = vector.broadcast %164 : vector<4x1xf32> to vector<4x128xf32>
      %173 = arith.subf %158, %172 : vector<4x128xf32>
      %cst_73 = arith.constant 9.99999997E-7 : f32
      %174 = vector.broadcast %cst_73 : f32 to vector<4x1xf32>
      %175 = arith.addf %171, %174 : vector<4x1xf32>
      %176 = math.rsqrt %175 : vector<4x1xf32>
      %177 = vector.broadcast %176 : vector<4x1xf32> to vector<4x128xf32>
      %178 = arith.mulf %173, %177 : vector<4x128xf32>
      %179 = vector.broadcast %159 : vector<1x128xf32> to vector<4x128xf32>
      %180 = arith.mulf %178, %179 : vector<4x128xf32>
      %181 = vector.broadcast %160 : vector<1x128xf32> to vector<4x128xf32>
      %182 = arith.addf %180, %181 : vector<4x128xf32>
      %183 = vector.extract_strided_slice %182 {offsets = [0, 0], sizes = [2, 128], strides = [1, 1]} : vector<4x128xf32> to vector<2x128xf32>
      %184 = vector.extract_strided_slice %182 {offsets = [2, 0], sizes = [2, 128], strides = [1, 1]} : vector<4x128xf32> to vector<2x128xf32>
      %185 = arith.mulf %183, %184 : vector<2x128xf32>
      %cst_74 = arith.constant dense<0.000000e+00> : vector<2xf32>
      %186 = vector.multi_reduction <add>, %185, %cst_74 [1] : vector<2x128xf32> to vector<2xf32>
      %187 = vector.shape_cast %186 : vector<2xf32> to vector<2x1xf32>
      %188 = arith.mulf %183, %183 : vector<2x128xf32>
      %cst_75 = arith.constant dense<0.000000e+00> : vector<2xf32>
      %189 = vector.multi_reduction <add>, %188, %cst_75 [1] : vector<2x128xf32> to vector<2xf32>
      %190 = vector.shape_cast %189 : vector<2xf32> to vector<2x1xf32>
      %191 = math.sqrt %190 : vector<2x1xf32>
      %192 = arith.mulf %184, %184 : vector<2x128xf32>
      %cst_76 = arith.constant dense<0.000000e+00> : vector<2xf32>
      %193 = vector.multi_reduction <add>, %192, %cst_76 [1] : vector<2x128xf32> to vector<2xf32>
      %194 = vector.shape_cast %193 : vector<2xf32> to vector<2x1xf32>
      %195 = math.sqrt %194 : vector<2x1xf32>
      %cst_77 = arith.constant 9.99999993E-9 : f32
      %196 = vector.broadcast %cst_77 : f32 to vector<2x1xf32>
      %197 = arith.maximumf %191, %196 : vector<2x1xf32>
      %cst_78 = arith.constant 9.99999993E-9 : f32
      %198 = vector.broadcast %cst_78 : f32 to vector<2x1xf32>
      %199 = arith.maximumf %195, %198 : vector<2x1xf32>
      %200 = arith.mulf %197, %199 : vector<2x1xf32>
      %201 = arith.divf %187, %200 : vector<2x1xf32>
      %202 = vector.shape_cast %201 : vector<2x1xf32> to vector<2x1xf32>
      %203 = vector.broadcast %202 : vector<2x1xf32> to vector<2x128xf32>
      %c0_79 = arith.constant 0 : index
      %c0_80 = arith.constant 0 : index
      %204 = vector.load %arg17[%c0_79, %c0_80] : memref<2x128xf32, #tpu.memory_space<vmem>>, vector<2x128xf32>
      tpu.vector_store %arg17[%c0_79, %c0_80], %203 {strides = array<i32>} : memref<2x128xf32, #tpu.memory_space<vmem>>, vector<2x128xf32>,
    } else {
    }
    return
  }
  func.func @transform_1(%arg0: i32) -> (i32, i32) {
    %c0_i32 = arith.constant 0 : i32
    %c0_i32_0 = arith.constant 0 : i32
    %c0_i32_1 = arith.constant 0 : i32
    return %c0_i32, %c0_i32_0 : i32, i32
  }
  func.func @transform_2(%arg0: i32) -> (i32, i32) {
    %c0_i32 = arith.constant 0 : i32
    %c0_i32_0 = arith.constant 0 : i32
    %c0_i32_1 = arith.constant 0 : i32
    return %c0_i32, %c0_i32_0 : i32, i32
  }
  func.func @transform_3(%arg0: i32) -> (i32, i32) {
    %c0_i32 = arith.constant 0 : i32
    %c0_i32_0 = arith.constant 0 : i32
    %c0_i32_1 = arith.constant 0 : i32
    return %c0_i32, %c0_i32_0 : i32, i32
  }
  func.func @transform_4(%arg0: i32) -> (i32, i32, i32) {
    %c0_i32 = arith.constant 0 : i32
    %c0_i32_0 = arith.constant 0 : i32
    %c0_i32_1 = arith.constant 0 : i32
    return %arg0, %c0_i32, %c0_i32_0 : i32, i32, i32
  }
  func.func @transform_5(%arg0: i32) -> (i32, i32, i32) {
    %c0_i32 = arith.constant 0 : i32
    %c0_i32_0 = arith.constant 0 : i32
    %c0_i32_1 = arith.constant 0 : i32
    return %arg0, %c0_i32, %c0_i32_0 : i32, i32, i32
  }
  func.func @transform_6(%arg0: i32) -> (i32, i32, i32) {
    %c0_i32 = arith.constant 0 : i32
    %c0_i32_0 = arith.constant 0 : i32
    %c0_i32_1 = arith.constant 0 : i32
    return %arg0, %c0_i32, %c0_i32_0 : i32, i32, i32
  }
  func.func @transform_7(%arg0: i32) -> (i32, i32, i32) {
    %c0_i32 = arith.constant 0 : i32
    %c0_i32_0 = arith.constant 0 : i32
    %c0_i32_1 = arith.constant 0 : i32
    return %arg0, %c0_i32, %c0_i32_0 : i32, i32, i32
  }
  func.func @transform_8(%arg0: i32) -> (i32, i32, i32) {
    %c0_i32 = arith.constant 0 : i32
    %c0_i32_0 = arith.constant 0 : i32
    %c0_i32_1 = arith.constant 0 : i32
    return %arg0, %c0_i32, %c0_i32_0 : i32, i32, i32
  }
  func.func @transform_9(%arg0: i32) -> (i32, i32, i32) {
    %c0_i32 = arith.constant 0 : i32
    %c0_i32_0 = arith.constant 0 : i32
    %c0_i32_1 = arith.constant 0 : i32
    return %arg0, %c0_i32, %c0_i32_0 : i32, i32, i32
  }
  func.func @transform_10(%arg0: i32) -> (i32, i32, i32) {
    %c0_i32 = arith.constant 0 : i32
    %c0_i32_0 = arith.constant 0 : i32
    %c0_i32_1 = arith.constant 0 : i32
    return %arg0, %c0_i32, %c0_i32_0 : i32, i32, i32
  }
  func.func @transform_11(%arg0: i32) -> (i32, i32, i32) {
    %c0_i32 = arith.constant 0 : i32
    %c0_i32_0 = arith.constant 0 : i32
    %c0_i32_1 = arith.constant 0 : i32
    return %arg0, %c0_i32, %c0_i32_0 : i32, i32, i32
  }
  func.func @transform_12(%arg0: i32) -> (i32, i32, i32) {
    %c0_i32 = arith.constant 0 : i32
    %c0_i32_0 = arith.constant 0 : i32
    %c0_i32_1 = arith.constant 0 : i32
    return %arg0, %c0_i32, %c0_i32_0 : i32, i32, i32
  }
  func.func @transform_13(%arg0: i32) -> (i32, i32, i32) {
    %c0_i32 = arith.constant 0 : i32
    %c0_i32_0 = arith.constant 0 : i32
    %c0_i32_1 = arith.constant 0 : i32
    return %arg0, %c0_i32, %c0_i32_0 : i32, i32, i32
  }
  func.func @transform_14(%arg0: i32) -> (i32, i32, i32) {
    %c0_i32 = arith.constant 0 : i32
    %c0_i32_0 = arith.constant 0 : i32
    %c0_i32_1 = arith.constant 0 : i32
    return %arg0, %c0_i32, %c0_i32_0 : i32, i32, i32
  }
  func.func @transform_15(%arg0: i32) -> (i32, i32, i32) {
    %c0_i32 = arith.constant 0 : i32
    %c0_i32_0 = arith.constant 0 : i32
    %c0_i32_1 = arith.constant 0 : i32
    return %arg0, %c0_i32, %c0_i32_0 : i32, i32, i32
  }
  func.func @transform_16(%arg0: i32) -> (i32, i32) {
    %c0_i32 = arith.constant 0 : i32
    %c0_i32_0 = arith.constant 0 : i32
    %c0_i32_1 = arith.constant 0 : i32
    return %c0_i32, %c0_i32_0 : i32, i32
  }
}

</mosaic_0001>

<llo_original>
// kernel: dino_siamese_forward.2
$region0: #{dino_siamese_forward.2}
  #allocation0 [shape = 'u32[]', space=smem, size = 0x4, offset = 0x4, fixed_abs, tag = 'smem constant byte address 0x4 - core index']
  #allocation1 [shape = 'u32[144,128]{1,0:T(1,128)}', space=vmem, size = 0x12000, scoped, tag = 'internal scratch']
  %s0 = inlined_call_operand.vmem [shape: bf16[16,768], index: 0, kind: input, shape index: {}]
  %s1 = inlined_call_operand.vmem [shape: bf16[768,128], index: 1, kind: input, shape index: {}]
  %s2 = inlined_call_operand.vmem [shape: f32[1,128], index: 2, kind: input, shape index: {}]
  %s3 = inlined_call_operand.vmem [shape: f32[16,128], index: 3, kind: output, shape index: {}]
  %s4 = sld [smem:[#allocation0]]
  $region22: #{dino_siamese_forward.2} parent=0
    _
  %s6 = ssub.s32 1, %s4
  %s7 = scalar_select 0, %s6, %s4
  // Predicated region
  $region2: #{dino_siamese_forward.2} parent=0 // pred_check
    _
  $region3: #{dino_siamese_forward.2} parent=0 // pred_check_branch
    %9 = sbr.rel (0) target = $region5
  $region4: #{dino_siamese_forward.2} parent=0 // pred_region
    _
  $region5: #{dino_siamese_forward.2} parent=0 // pred_fallthru
    _
  // Predicated region
  $region6: #{dino_siamese_forward.2} parent=0 // pred_check
    _
  $region7: #{dino_siamese_forward.2} parent=0 // pred_check_branch
    %11 = sbr.rel (0) target = $region9
  $region8: #{dino_siamese_forward.2} parent=0 // pred_region
    _
  $region9: #{dino_siamese_forward.2} parent=0 // pred_fallthru
    _
  // Predicated region
  $region10: #{dino_siamese_forward.2} parent=0 // pred_check
    _
  $region11: #{dino_siamese_forward.2} parent=0 // pred_check_branch
    %13 = sbr.rel (0) target = $region13
  $region12: #{dino_siamese_forward.2} parent=0 // pred_region
    _
  $region13: #{dino_siamese_forward.2} parent=0 // pred_fallthru
    _
  %v15 = vld [vmem:[%s0] sm:$0xff]
  %v16 = vld [vmem:[%s0 + $0x8] sm:$0xff]
  %v17 = vld [vmem:[%s0 + $0x10] sm:$0xff]
  %v18 = vld [vmem:[%s0 + $0x18] sm:$0xff]
  %v19 = vld [vmem:[%s0 + $0x20] sm:$0xff]
  %v20 = vld [vmem:[%s0 + $0x28] sm:$0xff]
  %v21 = vld [vmem:[%s1] sm:$0xf]
  %v22 = vld [vmem:[%s1 + $0x4] sm:$0xf]
  %v23 = vld [vmem:[%s1 + $0x8] sm:$0xf]
  %v24 = vld [vmem:[%s1 + $0xc] sm:$0xf]
  %v25 = vld [vmem:[%s1 + $0x10] sm:$0xf]
  %v26 = vld [vmem:[%s1 + $0x14] sm:$0xf]
  %v27 = vld [vmem:[%s1 + $0x18] sm:$0xf]
  %v28 = vld [vmem:[%s1 + $0x1c] sm:$0xf]
  %v29 = vld [vmem:[%s1 + $0x20] sm:$0xf]
  %v30 = vld [vmem:[%s1 + $0x24] sm:$0xf]
  %v31 = vld [vmem:[%s1 + $0x28] sm:$0xf]
  %v32 = vld [vmem:[%s1 + $0x2c] sm:$0xf]
  %v33 = vld [vmem:[%s1 + $0x30] sm:$0xf]
  %v34 = vld [vmem:[%s1 + $0x34] sm:$0xf]
  %v35 = vld [vmem:[%s1 + $0x38] sm:$0xf]
  %v36 = vld [vmem:[%s1 + $0x3c] sm:$0xf]
  %v37 = vld [vmem:[%s1 + $0x40] sm:$0xf]
  %v38 = vld [vmem:[%s1 + $0x44] sm:$0xf]
  %v39 = vld [vmem:[%s1 + $0x48] sm:$0xf]
  %v40 = vld [vmem:[%s1 + $0x4c] sm:$0xf]
  %v41 = vld [vmem:[%s1 + $0x50] sm:$0xf]
  %v42 = vld [vmem:[%s1 + $0x54] sm:$0xf]
  %v43 = vld [vmem:[%s1 + $0x58] sm:$0xf]
  %v44 = vld [vmem:[%s1 + $0x5c] sm:$0xf]
  %v45 = vld [vmem:[%s1 + $0x60] sm:$0xf]
  %v46 = vld [vmem:[%s1 + $0x64] sm:$0xf]
  %v47 = vld [vmem:[%s1 + $0x68] sm:$0xf]
  %v48 = vld [vmem:[%s1 + $0x6c] sm:$0xf]
  %v49 = vld [vmem:[%s1 + $0x70] sm:$0xf]
  %v50 = vld [vmem:[%s1 + $0x74] sm:$0xf]
  %v51 = vld [vmem:[%s1 + $0x78] sm:$0xf]
  %v52 = vld [vmem:[%s1 + $0x7c] sm:$0xf]
  %v53 = vld [vmem:[%s1 + $0x80] sm:$0xf]
  %v54 = vld [vmem:[%s1 + $0x84] sm:$0xf]
  %v55 = vld [vmem:[%s1 + $0x88] sm:$0xf]
  %v56 = vld [vmem:[%s1 + $0x8c] sm:$0xf]
  %v57 = vld [vmem:[%s1 + $0x90] sm:$0xf]
  %v58 = vld [vmem:[%s1 + $0x94] sm:$0xf]
  %v59 = vld [vmem:[%s1 + $0x98] sm:$0xf]
  %v60 = vld [vmem:[%s1 + $0x9c] sm:$0xf]
  %v61 = vld [vmem:[%s1 + $0xa0] sm:$0xf]
  %v62 = vld [vmem:[%s1 + $0xa4] sm:$0xf]
  %v63 = vld [vmem:[%s1 + $0xa8] sm:$0xf]
  %v64 = vld [vmem:[%s1 + $0xac] sm:$0xf]
  %v65 = vld [vmem:[%s1 + $0xb0] sm:$0xf]
  %v66 = vld [vmem:[%s1 + $0xb4] sm:$0xf]
  %v67 = vld [vmem:[%s1 + $0xb8] sm:$0xf]
  %v68 = vld [vmem:[%s1 + $0xbc] sm:$0xf]
  %v69 = vld [vmem:[%s1 + $0xc0] sm:$0xf]
  %v70 = vld [vmem:[%s1 + $0xc4] sm:$0xf]
  %v71 = vld [vmem:[%s1 + $0xc8] sm:$0xf]
  %v72 = vld [vmem:[%s1 + $0xcc] sm:$0xf]
  %v73 = vld [vmem:[%s1 + $0xd0] sm:$0xf]
  %v74 = vld [vmem:[%s1 + $0xd4] sm:$0xf]
  %v75 = vld [vmem:[%s1 + $0xd8] sm:$0xf]
  %v76 = vld [vmem:[%s1 + $0xdc] sm:$0xf]
  %v77 = vld [vmem:[%s1 + $0xe0] sm:$0xf]
  %v78 = vld [vmem:[%s1 + $0xe4] sm:$0xf]
  %v79 = vld [vmem:[%s1 + $0xe8] sm:$0xf]
  %v80 = vld [vmem:[%s1 + $0xec] sm:$0xf]
  %v81 = vld [vmem:[%s1 + $0xf0] sm:$0xf]
  %v82 = vld [vmem:[%s1 + $0xf4] sm:$0xf]
  %v83 = vld [vmem:[%s1 + $0xf8] sm:$0xf]
  %v84 = vld [vmem:[%s1 + $0xfc] sm:$0xf]
  %v85 = vld [vmem:[%s1 + $0x100] sm:$0xf]
  %v86 = vld [vmem:[%s1 + $0x104] sm:$0xf]
  %v87 = vld [vmem:[%s1 + $0x108] sm:$0xf]
  %v88 = vld [vmem:[%s1 + $0x10c] sm:$0xf]
  %v89 = vld [vmem:[%s1 + $0x110] sm:$0xf]
  %v90 = vld [vmem:[%s1 + $0x114] sm:$0xf]
  %v91 = vld [vmem:[%s1 + $0x118] sm:$0xf]
  %v92 = vld [vmem:[%s1 + $0x11c] sm:$0xf]
  %v93 = vld [vmem:[%s1 + $0x120] sm:$0xf]
  %v94 = vld [vmem:[%s1 + $0x124] sm:$0xf]
  %v95 = vld [vmem:[%s1 + $0x128] sm:$0xf]
  %v96 = vld [vmem:[%s1 + $0x12c] sm:$0xf]
  %v97 = vld [vmem:[%s1 + $0x130] sm:$0xf]
  %v98 = vld [vmem:[%s1 + $0x134] sm:$0xf]
  %v99 = vld [vmem:[%s1 + $0x138] sm:$0xf]
  %v100 = vld [vmem:[%s1 + $0x13c] sm:$0xf]
  %v101 = vld [vmem:[%s1 + $0x140] sm:$0xf]
  %v102 = vld [vmem:[%s1 + $0x144] sm:$0xf]
  %v103 = vld [vmem:[%s1 + $0x148] sm:$0xf]
  %v104 = vld [vmem:[%s1 + $0x14c] sm:$0xf]
  %v105 = vld [vmem:[%s1 + $0x150] sm:$0xf]
  %v106 = vld [vmem:[%s1 + $0x154] sm:$0xf]
  %v107 = vld [vmem:[%s1 + $0x158] sm:$0xf]
  %v108 = vld [vmem:[%s1 + $0x15c] sm:$0xf]
  %v109 = vld [vmem:[%s1 + $0x160] sm:$0xf]
  %v110 = vld [vmem:[%s1 + $0x164] sm:$0xf]
  %v111 = vld [vmem:[%s1 + $0x168] sm:$0xf]
  %v112 = vld [vmem:[%s1 + $0x16c] sm:$0xf]
  %v113 = vld [vmem:[%s1 + $0x170] sm:$0xf]
  %v114 = vld [vmem:[%s1 + $0x174] sm:$0xf]
  %v115 = vld [vmem:[%s1 + $0x178] sm:$0xf]
  %v116 = vld [vmem:[%s1 + $0x17c] sm:$0xf]
  %v117 = vld [vmem:[%s2] sm:$0x1]
  %v119 = vlaneseq
  %v120 = vshrl.u32 %v119, 7
  %v121 = vsub.s32 0, %v120
  %v122 = vrot.slane %v117, %v121
  %v130 = vunpack.c.l.b16 %v15
  %v131 = vunpack.c.h.b16 %v15
  %v132 = vunpack.c.l.b16 %v16
  %v133 = vunpack.c.h.b16 %v16
  %v134 = vunpack.c.l.b16 %v17
  %v135 = vunpack.c.h.b16 %v17
  %v136 = vunpack.c.l.b16 %v18
  %v137 = vunpack.c.h.b16 %v18
  %v138 = vunpack.c.l.b16 %v19
  %v139 = vunpack.c.h.b16 %v19
  %v140 = vunpack.c.l.b16 %v20
  %v141 = vunpack.c.h.b16 %v20
  %v142 = vpack.c.b16 %v136, %v130
  %v143 = vpack.c.b16 %v137, %v131
  %v144 = vpack.c.b16 %v138, %v132
  %v145 = vpack.c.b16 %v139, %v133
  %v146 = vpack.c.b16 %v140, %v134
  %v147 = vpack.c.b16 %v141, %v135
  %v250 = vunpack.c.l.b16 %v21
  %v251 = vunpack.c.l.b16 %v22
  %v252 = vunpack.c.l.b16 %v23
  %v253 = vunpack.c.l.b16 %v24
  %v254 = vunpack.c.l.b16 %v25
  %v255 = vunpack.c.l.b16 %v26
  %v256 = vunpack.c.l.b16 %v27
  %v257 = vunpack.c.l.b16 %v28
  %v258 = vunpack.c.l.b16 %v29
  %v259 = vunpack.c.l.b16 %v30
  %v260 = vunpack.c.l.b16 %v31
  %v261 = vunpack.c.l.b16 %v32
  %v262 = vunpack.c.l.b16 %v33
  %v263 = vunpack.c.l.b16 %v34
  %v264 = vunpack.c.l.b16 %v35
  %v265 = vunpack.c.l.b16 %v36
  %v266 = vunpack.c.l.b16 %v37
  %v267 = vunpack.c.l.b16 %v38
  %v268 = vunpack.c.l.b16 %v39
  %v269 = vunpack.c.l.b16 %v40
  %v270 = vunpack.c.l.b16 %v41
  %v271 = vunpack.c.l.b16 %v42
  %v272 = vunpack.c.l.b16 %v43
  %v273 = vunpack.c.l.b16 %v44
  %v274 = vunpack.c.l.b16 %v45
  %v275 = vunpack.c.l.b16 %v46
  %v276 = vunpack.c.l.b16 %v47
  %v277 = vunpack.c.l.b16 %v48
  %v278 = vunpack.c.l.b16 %v49
  %v279 = vunpack.c.l.b16 %v50
  %v280 = vunpack.c.l.b16 %v51
  %v281 = vunpack.c.l.b16 %v52
  %v282 = vunpack.c.l.b16 %v53
  %v283 = vunpack.c.l.b16 %v54
  %v284 = vunpack.c.l.b16 %v55
  %v285 = vunpack.c.l.b16 %v56
  %v286 = vunpack.c.l.b16 %v57
  %v287 = vunpack.c.l.b16 %v58
  %v288 = vunpack.c.l.b16 %v59
  %v289 = vunpack.c.l.b16 %v60
  %v290 = vunpack.c.l.b16 %v61
  %v291 = vunpack.c.l.b16 %v62
  %v292 = vunpack.c.l.b16 %v63
  %v293 = vunpack.c.l.b16 %v64
  %v294 = vunpack.c.l.b16 %v65
  %v295 = vunpack.c.l.b16 %v66
  %v296 = vunpack.c.l.b16 %v67
  %v297 = vunpack.c.l.b16 %v68
  %v298 = vunpack.c.l.b16 %v69
  %v299 = vunpack.c.l.b16 %v70
  %v300 = vunpack.c.l.b16 %v71
  %v301 = vunpack.c.l.b16 %v72
  %v302 = vunpack.c.l.b16 %v73
  %v303 = vunpack.c.l.b16 %v74
  %v304 = vunpack.c.l.b16 %v75
  %v305 = vunpack.c.l.b16 %v76
  %v306 = vunpack.c.l.b16 %v77
  %v307 = vunpack.c.l.b16 %v78
  %v308 = vunpack.c.l.b16 %v79
  %v309 = vunpack.c.l.b16 %v80
  %v310 = vunpack.c.l.b16 %v81
  %v311 = vunpack.c.l.b16 %v82
  %v312 = vunpack.c.l.b16 %v83
  %v313 = vunpack.c.l.b16 %v84
  %v314 = vunpack.c.l.b16 %v85
  %v315 = vunpack.c.l.b16 %v86
  %v316 = vunpack.c.l.b16 %v87
  %v317 = vunpack.c.l.b16 %v88
  %v318 = vunpack.c.l.b16 %v89
  %v319 = vunpack.c.l.b16 %v90
  %v320 = vunpack.c.l.b16 %v91
  %v321 = vunpack.c.l.b16 %v92
  %v322 = vunpack.c.l.b16 %v93
  %v323 = vunpack.c.l.b16 %v94
  %v324 = vunpack.c.l.b16 %v95
  %v325 = vunpack.c.l.b16 %v96
  %v326 = vunpack.c.l.b16 %v97
  %v327 = vunpack.c.l.b16 %v98
  %v328 = vunpack.c.l.b16 %v99
  %v329 = vunpack.c.l.b16 %v100
  %v330 = vunpack.c.l.b16 %v101
  %v331 = vunpack.c.l.b16 %v102
  %v332 = vunpack.c.l.b16 %v103
  %v333 = vunpack.c.l.b16 %v104
  %v334 = vunpack.c.l.b16 %v105
  %v335 = vunpack.c.l.b16 %v106
  %v336 = vunpack.c.l.b16 %v107
  %v337 = vunpack.c.l.b16 %v108
  %v338 = vunpack.c.l.b16 %v109
  %v339 = vunpack.c.l.b16 %v110
  %v340 = vunpack.c.l.b16 %v111
  %v341 = vunpack.c.l.b16 %v112
  %v342 = vunpack.c.l.b16 %v113
  %v343 = vunpack.c.l.b16 %v114
  %v344 = vunpack.c.l.b16 %v115
  %v345 = vunpack.c.l.b16 %v116
  %v346 = vpack.c.b16 %v251, %v250
  %v347 = vpack.c.b16 %v253, %v252
  %v348 = vpack.c.b16 %v255, %v254
  %v349 = vpack.c.b16 %v257, %v256
  %v350 = vpack.c.b16 %v259, %v258
  %v351 = vpack.c.b16 %v261, %v260
  %v352 = vpack.c.b16 %v263, %v262
  %v353 = vpack.c.b16 %v265, %v264
  %v354 = vpack.c.b16 %v267, %v266
  %v355 = vpack.c.b16 %v269, %v268
  %v356 = vpack.c.b16 %v271, %v270
  %v357 = vpack.c.b16 %v273, %v272
  %v358 = vpack.c.b16 %v275, %v274
  %v359 = vpack.c.b16 %v277, %v276
  %v360 = vpack.c.b16 %v279, %v278
  %v361 = vpack.c.b16 %v281, %v280
  %v362 = vpack.c.b16 %v283, %v282
  %v363 = vpack.c.b16 %v285, %v284
  %v364 = vpack.c.b16 %v287, %v286
  %v365 = vpack.c.b16 %v289, %v288
  %v366 = vpack.c.b16 %v291, %v290
  %v367 = vpack.c.b16 %v293, %v292
  %v368 = vpack.c.b16 %v295, %v294
  %v369 = vpack.c.b16 %v297, %v296
  %v370 = vpack.c.b16 %v299, %v298
  %v371 = vpack.c.b16 %v301, %v300
  %v372 = vpack.c.b16 %v303, %v302
  %v373 = vpack.c.b16 %v305, %v304
  %v374 = vpack.c.b16 %v307, %v306
  %v375 = vpack.c.b16 %v309, %v308
  %v376 = vpack.c.b16 %v311, %v310
  %v377 = vpack.c.b16 %v313, %v312
  %v378 = vpack.c.b16 %v315, %v314
  %v379 = vpack.c.b16 %v317, %v316
  %v380 = vpack.c.b16 %v319, %v318
  %v381 = vpack.c.b16 %v321, %v320
  %v382 = vpack.c.b16 %v323, %v322
  %v383 = vpack.c.b16 %v325, %v324
  %v384 = vpack.c.b16 %v327, %v326
  %v385 = vpack.c.b16 %v329, %v328
  %v386 = vpack.c.b16 %v331, %v330
  %v387 = vpack.c.b16 %v333, %v332
  %v388 = vpack.c.b16 %v335, %v334
  %v389 = vpack.c.b16 %v337, %v336
  %v390 = vpack.c.b16 %v339, %v338
  %v391 = vpack.c.b16 %v341, %v340
  %v392 = vpack.c.b16 %v343, %v342
  %v393 = vpack.c.b16 %v345, %v344
  %442 = vmatprep.subr.bf16.mxu0 0
  %443 = vmatpush1.bf16.msra.mxu0 %v353
  %444 = vmatprep.subr.bf16.mxu0 0
  %445 = vmatpush1.bf16.msra.mxu0 %v352
  %446 = vmatprep.subr.bf16.mxu0 0
  %447 = vmatpush1.bf16.msra.mxu0 %v351
  %448 = vmatprep.subr.bf16.mxu0 0
  %449 = vmatpush1.bf16.msra.mxu0 %v350
  %450 = vmatprep.subr.bf16.mxu0 0
  %451 = vmatpush1.bf16.msra.mxu0 %v349
  %452 = vmatprep.subr.bf16.mxu0 0
  %453 = vmatpush1.bf16.msra.mxu0 %v348
  %454 = vmatprep.subr.bf16.mxu0 0
  %455 = vmatpush1.bf16.msra.mxu0 %v347
  %456 = vmatprep.subr.bf16.mxu0 0
  %457 = vmatpush1.bf16.msra.mxu0 %v346
  %458 = vmatprep.subr.bf16.mxu0 0
  %459 = vmatpush2.bf16.msra.mxu0 %v361
  %460 = vmatprep.subr.bf16.mxu0 0
  %461 = vmatpush2.bf16.msra.mxu0 %v360
  %462 = vmatprep.subr.bf16.mxu0 0
  %463 = vmatpush2.bf16.msra.mxu0 %v359
  %464 = vmatprep.subr.bf16.mxu0 0
  %465 = vmatpush2.bf16.msra.mxu0 %v358
  %466 = vmatprep.subr.bf16.mxu0 0
  %467 = vmatpush2.bf16.msra.mxu0 %v357
  %468 = vmatprep.subr.bf16.mxu0 0
  %469 = vmatpush2.bf16.msra.mxu0 %v356
  %470 = vmatprep.subr.bf16.mxu0 0
  %471 = vmatpush2.bf16.msra.mxu0 %v355
  %472 = vmatprep.subr.bf16.mxu0 0
  %473 = vmatpush2.bf16.msra.mxu0 %v354
  %474 = vmatprep.mubr.bf16.mxu0 %v143
  %475 = vmatmul.mubr.bf16.gmra.mxu0 %v142
  %v476 = vpop.f32.mrf.mxu0
  %v477 = vadd.f32 %v122, %v476
  %v478 = vpop.f32.mrf.mxu0
  %v479 = vpop.f32.mrf.mxu0
  %v480 = vadd.f32 %v122, %v479
  %v481 = vpop.f32.mrf.mxu0
  %482 = vdwg.mxu0
  %483 = vmatprep.subr.bf16.mxu0 0
  %484 = vmatpush1.bf16.msra.mxu0 %v369
  %485 = vmatprep.subr.bf16.mxu0 0
  %486 = vmatpush1.bf16.msra.mxu0 %v368
  %487 = vmatprep.subr.bf16.mxu0 0
  %488 = vmatpush1.bf16.msra.mxu0 %v367
  %489 = vmatprep.subr.bf16.mxu0 0
  %490 = vmatpush1.bf16.msra.mxu0 %v366
  %491 = vmatprep.subr.bf16.mxu0 0
  %492 = vmatpush1.bf16.msra.mxu0 %v365
  %493 = vmatprep.subr.bf16.mxu0 0
  %494 = vmatpush1.bf16.msra.mxu0 %v364
  %495 = vmatprep.subr.bf16.mxu0 0
  %496 = vmatpush1.bf16.msra.mxu0 %v363
  %497 = vmatprep.subr.bf16.mxu0 0
  %498 = vmatpush1.bf16.msra.mxu0 %v362
  %499 = vmatprep.subr.bf16.mxu0 0
  %500 = vmatpush2.bf16.msra.mxu0 %v377
  %501 = vmatprep.subr.bf16.mxu0 0
  %502 = vmatpush2.bf16.msra.mxu0 %v376
  %503 = vmatprep.subr.bf16.mxu0 0
  %504 = vmatpush2.bf16.msra.mxu0 %v375
  %505 = vmatprep.subr.bf16.mxu0 0
  %506 = vmatpush2.bf16.msra.mxu0 %v374
  %507 = vmatprep.subr.bf16.mxu0 0
  %508 = vmatpush2.bf16.msra.mxu0 %v373
  %509 = vmatprep.subr.bf16.mxu0 0
  %510 = vmatpush2.bf16.msra.mxu0 %v372
  %511 = vmatprep.subr.bf16.mxu0 0
  %512 = vmatpush2.bf16.msra.mxu0 %v371
  %513 = vmatprep.subr.bf16.mxu0 0
  %514 = vmatpush2.bf16.msra.mxu0 %v370
  %515 = vmatprep.mubr.bf16.mxu0 %v145
  %516 = vmatmul.mubr.bf16.gmra.mxu0 %v144
  %v517 = vpop.f32.mrf.mxu0
  %v518 = vadd.f32 %v477, %v517
  %v519 = vpop.f32.mrf.mxu0
  %v520 = vpop.f32.mrf.mxu0
  %v521 = vadd.f32 %v480, %v520
  %v522 = vpop.f32.mrf.mxu0
  %523 = vdwg.mxu0
  %524 = vmatprep.subr.bf16.mxu0 0
  %525 = vmatpush1.bf16.msra.mxu0 %v385
  %526 = vmatprep.subr.bf16.mxu0 0
  %527 = vmatpush1.bf16.msra.mxu0 %v384
  %528 = vmatprep.subr.bf16.mxu0 0
  %529 = vmatpush1.bf16.msra.mxu0 %v383
  %530 = vmatprep.subr.bf16.mxu0 0
  %531 = vmatpush1.bf16.msra.mxu0 %v382
  %532 = vmatprep.subr.bf16.mxu0 0
  %533 = vmatpush1.bf16.msra.mxu0 %v381
  %534 = vmatprep.subr.bf16.mxu0 0
  %535 = vmatpush1.bf16.msra.mxu0 %v380
  %536 = vmatprep.subr.bf16.mxu0 0
  %537 = vmatpush1.bf16.msra.mxu0 %v379
  %538 = vmatprep.subr.bf16.mxu0 0
  %539 = vmatpush1.bf16.msra.mxu0 %v378
  %540 = vmatprep.subr.bf16.mxu0 0
  %541 = vmatpush2.bf16.msra.mxu0 %v393
  %542 = vmatprep.subr.bf16.mxu0 0
  %543 = vmatpush2.bf16.msra.mxu0 %v392
  %544 = vmatprep.subr.bf16.mxu0 0
  %545 = vmatpush2.bf16.msra.mxu0 %v391
  %546 = vmatprep.subr.bf16.mxu0 0
  %547 = vmatpush2.bf16.msra.mxu0 %v390
  %548 = vmatprep.subr.bf16.mxu0 0
  %549 = vmatpush2.bf16.msra.mxu0 %v389
  %550 = vmatprep.subr.bf16.mxu0 0
  %551 = vmatpush2.bf16.msra.mxu0 %v388
  %552 = vmatprep.subr.bf16.mxu0 0
  %553 = vmatpush2.bf16.msra.mxu0 %v387
  %554 = vmatprep.subr.bf16.mxu0 0
  %555 = vmatpush2.bf16.msra.mxu0 %v386
  %556 = vmatprep.mubr.bf16.mxu0 %v147
  %557 = vmatmul.mubr.bf16.gmra.mxu0 %v146
  %v558 = vpop.f32.mrf.mxu0
  %v559 = vadd.f32 %v518, %v558
  %v560 = vpop.f32.mrf.mxu0
  %v561 = vpop.f32.mrf.mxu0
  %v562 = vadd.f32 %v521, %v561
  %v563 = vpop.f32.mrf.mxu0
  %564 = vdwg.mxu0
  %565 = vst [vmem:[%s3] sm:$0xff] %v559
  %566 = vst [vmem:[%s3 + $0x8] sm:$0xff] %v562
  // Predicated region
  $region14: #{dino_siamese_forward.2} parent=0 // pred_check
    _
  $region15: #{dino_siamese_forward.2} parent=0 // pred_check_branch
    %568 = sbr.rel (0) target = $region17
  $region16: #{dino_siamese_forward.2} parent=0 // pred_region
    _
  $region17: #{dino_siamese_forward.2} parent=0 // pred_fallthru
    _
  // Predicated region
  $region18: #{dino_siamese_forward.2} parent=0 // pred_check
    _
  $region19: #{dino_siamese_forward.2} parent=0 // pred_check_branch
    %570 = sbr.rel (0) target = $region21
  $region20: #{dino_siamese_forward.2} parent=0 // pred_region
    _
  $region21: #{dino_siamese_forward.2} parent=0 // pred_fallthru
    _

// kernel: dino_siamese_forward.3
$region0: #{dino_siamese_forward.3}
  #allocation0 [shape = 'u32[]', space=smem, size = 0x4, offset = 0x4, fixed_abs, tag = 'smem constant byte address 0x4 - core index']
  #allocation1 [shape = 'u32[144,128]{1,0:T(1,128)}', space=vmem, size = 0x12000, scoped, tag = 'internal scratch']
  #allocation2 [shape = 'f32[32,128]{1,0:T(8,128)}', space=vmem, size = 0x4000, scoped, tag = 'scratch operand']
  #allocation3 [shape = 's32[1]{0}', space=sflag, size = 0x4, scoped, tag = 'scratch operand']
  #allocation4 [shape = 's32[]', space=sflag, size = 0x4, offset = 0, fixed_abs, tag = 'sflag constant byte address 0x0 - dummy sync flag']
  %s0 = inlined_call_operand.vmem [shape: f32[32,128], index: 0, kind: input, shape index: {}]
  %s1 = inlined_call_operand.vmem [shape: f32[1,8], index: 1, kind: input, shape index: {}]
  %s2 = inlined_call_operand.vmem [shape: f32[1,128], index: 2, kind: input, shape index: {}]
  %s3 = inlined_call_operand.vmem [shape: f32[1,128], index: 3, kind: input, shape index: {}]
  %s4 = inlined_call_operand.vmem [shape: f32[2,1,128], index: 4, kind: input, shape index: {}]
  %s5 = inlined_call_operand.vmem [shape: f32[2,1,128], index: 5, kind: input, shape index: {}]
  %s6 = inlined_call_operand.vmem [shape: bf16[2,128,384], index: 6, kind: input, shape index: {}]
  %s7 = inlined_call_operand.vmem [shape: f32[2,1,384], index: 7, kind: input, shape index: {}]
  %s8 = inlined_call_operand.vmem [shape: bf16[2,128,128], index: 8, kind: input, shape index: {}]
  %s9 = inlined_call_operand.vmem [shape: f32[2,1,128], index: 9, kind: input, shape index: {}]
  %s10 = inlined_call_operand.vmem [shape: f32[2,1,128], index: 10, kind: input, shape index: {}]
  %s11 = inlined_call_operand.vmem [shape: f32[2,1,128], index: 11, kind: input, shape index: {}]
  %s12 = inlined_call_operand.vmem [shape: bf16[2,128,512], index: 12, kind: input, shape index: {}]
  %s13 = inlined_call_operand.vmem [shape: f32[2,1,512], index: 13, kind: input, shape index: {}]
  %s14 = inlined_call_operand.vmem [shape: bf16[2,512,128], index: 14, kind: input, shape index: {}]
  %s15 = inlined_call_operand.vmem [shape: f32[2,1,128], index: 15, kind: input, shape index: {}]
  %s16 = inlined_call_operand.vmem [shape: f32[2,128], index: 16, kind: output, shape index: {}]
  %s17 = sld [smem:[#allocation0]]
  $region135: #{dino_siamese_forward.3} parent=0
    _
  %s19 = ssub.s32 1, %s17
  %s20 = scalar_select 0, %s19, %s17
  loop: start=0, step=1, limit=4
  $region2: #{dino_siamese_forward.3} parent=0 // loop_pre_header
    _
  $region3: #{dino_siamese_forward.3} parent=0 // loop_header
    %s22 = sphi 0, %s26
    %p23 = scmp.ge.s32.totalorder %s22, 4
    %s30 = sphi 0, %s30
    %s32 = sphi 0, %s30
    %s33 = sphi 0, %s32
    %s47 = sphi 0, %s33
    %s51 = sphi 0, %s51
    %s53 = sphi 0, %s51
    %s54 = sphi 0, %s53
    %s68 = sphi 0, %s54
    %s72 = sphi 0, %s72
    %s74 = sphi 0, %s72
    %s75 = sphi 0, %s74
    %s89 = sphi 0, %s75
    %s95 = sphi 0, %s97
    %s98 = sphi 0, %s95
    %s99 = sphi 0, %s98
    %s115 = sphi 0, %s99
    %s121 = sphi 0, %s123
    %s124 = sphi 0, %s121
    %s125 = sphi 0, %s124
    %s141 = sphi 0, %s125
    %s147 = sphi 0, %s149
    %s150 = sphi 0, %s147
    %s151 = sphi 0, %s150
    %s167 = sphi 0, %s151
    %s173 = sphi 0, %s175
    %s176 = sphi 0, %s173
    %s177 = sphi 0, %s176
    %s193 = sphi 0, %s177
    %s199 = sphi 0, %s201
    %s202 = sphi 0, %s199
    %s203 = sphi 0, %s202
    %s219 = sphi 0, %s203
    %s225 = sphi 0, %s227
    %s228 = sphi 0, %s225
    %s229 = sphi 0, %s228
    %s245 = sphi 0, %s229
    %s251 = sphi 0, %s253
    %s254 = sphi 0, %s251
    %s255 = sphi 0, %s254
    %s271 = sphi 0, %s255
    %s277 = sphi 0, %s279
    %s280 = sphi 0, %s277
    %s281 = sphi 0, %s280
    %s297 = sphi 0, %s281
    %s303 = sphi 0, %s305
    %s306 = sphi 0, %s303
    %s307 = sphi 0, %s306
    %s323 = sphi 0, %s307
    %s329 = sphi 0, %s331
    %s332 = sphi 0, %s329
    %s333 = sphi 0, %s332
    %s349 = sphi 0, %s333
    %s355 = sphi 0, %s357
    %s358 = sphi 0, %s355
    %s359 = sphi 0, %s358
    %s375 = sphi 0, %s359
    %s381 = sphi 0, %s383
    %s384 = sphi 0, %s381
    %s385 = sphi 0, %s384
    %s401 = sphi 0, %s385
    %s405 = sphi 0, %s405
    %s407 = sphi 0, %s405
    %s408 = sphi 0, %s407
    %s422 = sphi 0, %s408
  $region4: #{dino_siamese_forward.3} parent=0 // loop_header_branch
    %25 = sbr.rel (%p23) target = $region8
  $region5: #{dino_siamese_forward.3} parent=0 // loop_body
    %s27 = ssub.s32 %s22, 1
    %s28 = ssub.s32 %s22, 2
    %s29 = sadd.s32 %s22, 1
    %s31 = sadd.s32 %s30, 1
    %p34 = scmp.eq.s32.totalorder %s22, 1
    %p35 = scmp.ne.s32.totalorder %s30, %s32
    %p36 = scmp.eq.s32.totalorder %s22, 0
    %p37 = por %p35, %p36
    %p38 = scmp.ne.s32.totalorder %s30, %s32
    %p39 = scmp.eq.s32.totalorder %s27, 1
    %p40 = por %p38, %p39
    %p41 = scmp.ne.s32.totalorder %s32, %s33
    %p42 = scmp.eq.s32.totalorder %s27, 0
    %p43 = por %p41, %p42
    %p44 = scmp.ne.s32.totalorder %s32, %s33
    %p45 = scmp.eq.s32.totalorder %s28, 1
    %p46 = por %p44, %p45
    %p48 = scmp.ne.s32.totalorder %s33, %s47
    %p49 = scmp.eq.s32.totalorder %s28, 0
    %p50 = por %p48, %p49
    %s52 = sadd.s32 %s51, 1
    %p55 = scmp.eq.s32.totalorder %s22, 1
    %p56 = scmp.ne.s32.totalorder %s51, %s53
    %p57 = scmp.eq.s32.totalorder %s22, 0
    %p58 = por %p56, %p57
    %p59 = scmp.ne.s32.totalorder %s51, %s53
    %p60 = scmp.eq.s32.totalorder %s27, 1
    %p61 = por %p59, %p60
    %p62 = scmp.ne.s32.totalorder %s53, %s54
    %p63 = scmp.eq.s32.totalorder %s27, 0
    %p64 = por %p62, %p63
    %p65 = scmp.ne.s32.totalorder %s53, %s54
    %p66 = scmp.eq.s32.totalorder %s28, 1
    %p67 = por %p65, %p66
    %p69 = scmp.ne.s32.totalorder %s54, %s68
    %p70 = scmp.eq.s32.totalorder %s28, 0
    %p71 = por %p69, %p70
    %s73 = sadd.s32 %s72, 1
    %p76 = scmp.eq.s32.totalorder %s22, 1
    %p77 = scmp.ne.s32.totalorder %s72, %s74
    %p78 = scmp.eq.s32.totalorder %s22, 0
    %p79 = por %p77, %p78
    %p80 = scmp.ne.s32.totalorder %s72, %s74
    %p81 = scmp.eq.s32.totalorder %s27, 1
    %p82 = por %p80, %p81
    %p83 = scmp.ne.s32.totalorder %s74, %s75
    %p84 = scmp.eq.s32.totalorder %s27, 0
    %p85 = por %p83, %p84
    %p86 = scmp.ne.s32.totalorder %s74, %s75
    %p87 = scmp.eq.s32.totalorder %s28, 1
    %p88 = por %p86, %p87
    %p90 = scmp.ne.s32.totalorder %s75, %s89
    %p91 = scmp.eq.s32.totalorder %s28, 0
    %p92 = por %p90, %p91
    %s93 = ssub.s32 %s22, %s29
    %p94 = scmp.eq.s32.totalorder %s93, 0
    %s96 = sadd.s32 %s95, 1
    %s97 = scalar_select %p94, %s95, %s96
    %p100 = pneg %p94
    %p101 = scmp.eq.s32.totalorder %s22, 1
    %p102 = por %p100, %p101
    %p103 = scmp.ne.s32.totalorder %s95, %s98
    %p104 = scmp.eq.s32.totalorder %s22, 0
    %p105 = por %p103, %p104
    %p106 = scmp.ne.s32.totalorder %s95, %s98
    %p107 = scmp.eq.s32.totalorder %s27, 1
    %p108 = por %p106, %p107
    %p109 = scmp.ne.s32.totalorder %s98, %s99
    %p110 = scmp.eq.s32.totalorder %s27, 0
    %p111 = por %p109, %p110
    %p112 = scmp.ne.s32.totalorder %s98, %s99
    %p113 = scmp.eq.s32.totalorder %s28, 1
    %p114 = por %p112, %p113
    %p116 = scmp.ne.s32.totalorder %s99, %s115
    %p117 = scmp.eq.s32.totalorder %s28, 0
    %p118 = por %p116, %p117
    %s119 = ssub.s32 %s22, %s29
    %p120 = scmp.eq.s32.totalorder %s119, 0
    %s122 = sadd.s32 %s121, 1
    %s123 = scalar_select %p120, %s121, %s122
    %p126 = pneg %p120
    %p127 = scmp.eq.s32.totalorder %s22, 1
    %p128 = por %p126, %p127
    %p129 = scmp.ne.s32.totalorder %s121, %s124
    %p130 = scmp.eq.s32.totalorder %s22, 0
    %p131 = por %p129, %p130
    %p132 = scmp.ne.s32.totalorder %s121, %s124
    %p133 = scmp.eq.s32.totalorder %s27, 1
    %p134 = por %p132, %p133
    %p135 = scmp.ne.s32.totalorder %s124, %s125
    %p136 = scmp.eq.s32.totalorder %s27, 0
    %p137 = por %p135, %p136
    %p138 = scmp.ne.s32.totalorder %s124, %s125
    %p139 = scmp.eq.s32.totalorder %s28, 1
    %p140 = por %p138, %p139
    %p142 = scmp.ne.s32.totalorder %s125, %s141
    %p143 = scmp.eq.s32.totalorder %s28, 0
    %p144 = por %p142, %p143
    %s145 = ssub.s32 %s22, %s29
    %p146 = scmp.eq.s32.totalorder %s145, 0
    %s148 = sadd.s32 %s147, 1
    %s149 = scalar_select %p146, %s147, %s148
    %p152 = pneg %p146
    %p153 = scmp.eq.s32.totalorder %s22, 1
    %p154 = por %p152, %p153
    %p155 = scmp.ne.s32.totalorder %s147, %s150
    %p156 = scmp.eq.s32.totalorder %s22, 0
    %p157 = por %p155, %p156
    %p158 = scmp.ne.s32.totalorder %s147, %s150
    %p159 = scmp.eq.s32.totalorder %s27, 1
    %p160 = por %p158, %p159
    %p161 = scmp.ne.s32.totalorder %s150, %s151
    %p162 = scmp.eq.s32.totalorder %s27, 0
    %p163 = por %p161, %p162
    %p164 = scmp.ne.s32.totalorder %s150, %s151
    %p165 = scmp.eq.s32.totalorder %s28, 1
    %p166 = por %p164, %p165
    %p168 = scmp.ne.s32.totalorder %s151, %s167
    %p169 = scmp.eq.s32.totalorder %s28, 0
    %p170 = por %p168, %p169
    %s171 = ssub.s32 %s22, %s29
    %p172 = scmp.eq.s32.totalorder %s171, 0
    %s174 = sadd.s32 %s173, 1
    %s175 = scalar_select %p172, %s173, %s174
    %p178 = pneg %p172
    %p179 = scmp.eq.s32.totalorder %s22, 1
    %p180 = por %p178, %p179
    %p181 = scmp.ne.s32.totalorder %s173, %s176
    %p182 = scmp.eq.s32.totalorder %s22, 0
    %p183 = por %p181, %p182
    %p184 = scmp.ne.s32.totalorder %s173, %s176
    %p185 = scmp.eq.s32.totalorder %s27, 1
    %p186 = por %p184, %p185
    %p187 = scmp.ne.s32.totalorder %s176, %s177
    %p188 = scmp.eq.s32.totalorder %s27, 0
    %p189 = por %p187, %p188
    %p190 = scmp.ne.s32.totalorder %s176, %s177
    %p191 = scmp.eq.s32.totalorder %s28, 1
    %p192 = por %p190, %p191
    %p194 = scmp.ne.s32.totalorder %s177, %s193
    %p195 = scmp.eq.s32.totalorder %s28, 0
    %p196 = por %p194, %p195
    %s197 = ssub.s32 %s22, %s29
    %p198 = scmp.eq.s32.totalorder %s197, 0
    %s200 = sadd.s32 %s199, 1
    %s201 = scalar_select %p198, %s199, %s200
    %p204 = pneg %p198
    %p205 = scmp.eq.s32.totalorder %s22, 1
    %p206 = por %p204, %p205
    %p207 = scmp.ne.s32.totalorder %s199, %s202
    %p208 = scmp.eq.s32.totalorder %s22, 0
    %p209 = por %p207, %p208
    %p210 = scmp.ne.s32.totalorder %s199, %s202
    %p211 = scmp.eq.s32.totalorder %s27, 1
    %p212 = por %p210, %p211
    %p213 = scmp.ne.s32.totalorder %s202, %s203
    %p214 = scmp.eq.s32.totalorder %s27, 0
    %p215 = por %p213, %p214
    %p216 = scmp.ne.s32.totalorder %s202, %s203
    %p217 = scmp.eq.s32.totalorder %s28, 1
    %p218 = por %p216, %p217
    %p220 = scmp.ne.s32.totalorder %s203, %s219
    %p221 = scmp.eq.s32.totalorder %s28, 0
    %p222 = por %p220, %p221
    %s223 = ssub.s32 %s22, %s29
    %p224 = scmp.eq.s32.totalorder %s223, 0
    %s226 = sadd.s32 %s225, 1
    %s227 = scalar_select %p224, %s225, %s226
    %p230 = pneg %p224
    %p231 = scmp.eq.s32.totalorder %s22, 1
    %p232 = por %p230, %p231
    %p233 = scmp.ne.s32.totalorder %s225, %s228
    %p234 = scmp.eq.s32.totalorder %s22, 0
    %p235 = por %p233, %p234
    %p236 = scmp.ne.s32.totalorder %s225, %s228
    %p237 = scmp.eq.s32.totalorder %s27, 1
    %p238 = por %p236, %p237
    %p239 = scmp.ne.s32.totalorder %s228, %s229
    %p240 = scmp.eq.s32.totalorder %s27, 0
    %p241 = por %p239, %p240
    %p242 = scmp.ne.s32.totalorder %s228, %s229
    %p243 = scmp.eq.s32.totalorder %s28, 1
    %p244 = por %p242, %p243
    %p246 = scmp.ne.s32.totalorder %s229, %s245
    %p247 = scmp.eq.s32.totalorder %s28, 0
    %p248 = por %p246, %p247
    %s249 = ssub.s32 %s22, %s29
    %p250 = scmp.eq.s32.totalorder %s249, 0
    %s252 = sadd.s32 %s251, 1
    %s253 = scalar_select %p250, %s251, %s252
    %p256 = pneg %p250
    %p257 = scmp.eq.s32.totalorder %s22, 1
    %p258 = por %p256, %p257
    %p259 = scmp.ne.s32.totalorder %s251, %s254
    %p260 = scmp.eq.s32.totalorder %s22, 0
    %p261 = por %p259, %p260
    %p262 = scmp.ne.s32.totalorder %s251, %s254
    %p263 = scmp.eq.s32.totalorder %s27, 1
    %p264 = por %p262, %p263
    %p265 = scmp.ne.s32.totalorder %s254, %s255
    %p266 = scmp.eq.s32.totalorder %s27, 0
    %p267 = por %p265, %p266
    %p268 = scmp.ne.s32.totalorder %s254, %s255
    %p269 = scmp.eq.s32.totalorder %s28, 1
    %p270 = por %p268, %p269
    %p272 = scmp.ne.s32.totalorder %s255, %s271
    %p273 = scmp.eq.s32.totalorder %s28, 0
    %p274 = por %p272, %p273
    %s275 = ssub.s32 %s22, %s29
    %p276 = scmp.eq.s32.totalorder %s275, 0
    %s278 = sadd.s32 %s277, 1
    %s279 = scalar_select %p276, %s277, %s278
    %p282 = pneg %p276
    %p283 = scmp.eq.s32.totalorder %s22, 1
    %p284 = por %p282, %p283
    %p285 = scmp.ne.s32.totalorder %s277, %s280
    %p286 = scmp.eq.s32.totalorder %s22, 0
    %p287 = por %p285, %p286
    %p288 = scmp.ne.s32.totalorder %s277, %s280
    %p289 = scmp.eq.s32.totalorder %s27, 1
    %p290 = por %p288, %p289
    %p291 = scmp.ne.s32.totalorder %s280, %s281
    %p292 = scmp.eq.s32.totalorder %s27, 0
    %p293 = por %p291, %p292
    %p294 = scmp.ne.s32.totalorder %s280, %s281
    %p295 = scmp.eq.s32.totalorder %s28, 1
    %p296 = por %p294, %p295
    %p298 = scmp.ne.s32.totalorder %s281, %s297
    %p299 = scmp.eq.s32.totalorder %s28, 0
    %p300 = por %p298, %p299
    %s301 = ssub.s32 %s22, %s29
    %p302 = scmp.eq.s32.totalorder %s301, 0
    %s304 = sadd.s32 %s303, 1
    %s305 = scalar_select %p302, %s303, %s304
    %p308 = pneg %p302
    %p309 = scmp.eq.s32.totalorder %s22, 1
    %p310 = por %p308, %p309
    %p311 = scmp.ne.s32.totalorder %s303, %s306
    %p312 = scmp.eq.s32.totalorder %s22, 0
    %p313 = por %p311, %p312
    %p314 = scmp.ne.s32.totalorder %s303, %s306
    %p315 = scmp.eq.s32.totalorder %s27, 1
    %p316 = por %p314, %p315
    %p317 = scmp.ne.s32.totalorder %s306, %s307
    %p318 = scmp.eq.s32.totalorder %s27, 0
    %p319 = por %p317, %p318
    %p320 = scmp.ne.s32.totalorder %s306, %s307
    %p321 = scmp.eq.s32.totalorder %s28, 1
    %p322 = por %p320, %p321
    %p324 = scmp.ne.s32.totalorder %s307, %s323
    %p325 = scmp.eq.s32.totalorder %s28, 0
    %p326 = por %p324, %p325
    %s327 = ssub.s32 %s22, %s29
    %p328 = scmp.eq.s32.totalorder %s327, 0
    %s330 = sadd.s32 %s329, 1
    %s331 = scalar_select %p328, %s329, %s330
    %p334 = pneg %p328
    %p335 = scmp.eq.s32.totalorder %s22, 1
    %p336 = por %p334, %p335
    %p337 = scmp.ne.s32.totalorder %s329, %s332
    %p338 = scmp.eq.s32.totalorder %s22, 0
    %p339 = por %p337, %p338
    %p340 = scmp.ne.s32.totalorder %s329, %s332
    %p341 = scmp.eq.s32.totalorder %s27, 1
    %p342 = por %p340, %p341
    %p343 = scmp.ne.s32.totalorder %s332, %s333
    %p344 = scmp.eq.s32.totalorder %s27, 0
    %p345 = por %p343, %p344
    %p346 = scmp.ne.s32.totalorder %s332, %s333
    %p347 = scmp.eq.s32.totalorder %s28, 1
    %p348 = por %p346, %p347
    %p350 = scmp.ne.s32.totalorder %s333, %s349
    %p351 = scmp.eq.s32.totalorder %s28, 0
    %p352 = por %p350, %p351
    %s353 = ssub.s32 %s22, %s29
    %p354 = scmp.eq.s32.totalorder %s353, 0
    %s356 = sadd.s32 %s355, 1
    %s357 = scalar_select %p354, %s355, %s356
    %p360 = pneg %p354
    %p361 = scmp.eq.s32.totalorder %s22, 1
    %p362 = por %p360, %p361
    %p363 = scmp.ne.s32.totalorder %s355, %s358
    %p364 = scmp.eq.s32.totalorder %s22, 0
    %p365 = por %p363, %p364
    %p366 = scmp.ne.s32.totalorder %s355, %s358
    %p367 = scmp.eq.s32.totalorder %s27, 1
    %p368 = por %p366, %p367
    %p369 = scmp.ne.s32.totalorder %s358, %s359
    %p370 = scmp.eq.s32.totalorder %s27, 0
    %p371 = por %p369, %p370
    %p372 = scmp.ne.s32.totalorder %s358, %s359
    %p373 = scmp.eq.s32.totalorder %s28, 1
    %p374 = por %p372, %p373
    %p376 = scmp.ne.s32.totalorder %s359, %s375
    %p377 = scmp.eq.s32.totalorder %s28, 0
    %p378 = por %p376, %p377
    %s379 = ssub.s32 %s22, %s29
    %p380 = scmp.eq.s32.totalorder %s379, 0
    %s382 = sadd.s32 %s381, 1
    %s383 = scalar_select %p380, %s381, %s382
    %p386 = pneg %p380
    %p387 = scmp.eq.s32.totalorder %s22, 1
    %p388 = por %p386, %p387
    %p389 = scmp.ne.s32.totalorder %s381, %s384
    %p390 = scmp.eq.s32.totalorder %s22, 0
    %p391 = por %p389, %p390
    %p392 = scmp.ne.s32.totalorder %s381, %s384
    %p393 = scmp.eq.s32.totalorder %s27, 1
    %p394 = por %p392, %p393
    %p395 = scmp.ne.s32.totalorder %s384, %s385
    %p396 = scmp.eq.s32.totalorder %s27, 0
    %p397 = por %p395, %p396
    %p398 = scmp.ne.s32.totalorder %s384, %s385
    %p399 = scmp.eq.s32.totalorder %s28, 1
    %p400 = por %p398, %p399
    %p402 = scmp.ne.s32.totalorder %s385, %s401
    %p403 = scmp.eq.s32.totalorder %s28, 0
    %p404 = por %p402, %p403
    %s406 = sadd.s32 %s405, 1
    %p409 = scmp.eq.s32.totalorder %s22, 1
    %p410 = scmp.ne.s32.totalorder %s405, %s407
    %p411 = scmp.eq.s32.totalorder %s22, 0
    %p412 = por %p410, %p411
    %p413 = scmp.ne.s32.totalorder %s405, %s407
    %p414 = scmp.eq.s32.totalorder %s27, 1
    %p415 = por %p413, %p414
    %p416 = scmp.ne.s32.totalorder %s407, %s408
    %p417 = scmp.eq.s32.totalorder %s27, 0
    %p418 = por %p416, %p417
    %p419 = scmp.ne.s32.totalorder %s407, %s408
    %p420 = scmp.eq.s32.totalorder %s28, 1
    %p421 = por %p419, %p420
    %p423 = scmp.ne.s32.totalorder %s408, %s422
    %p424 = scmp.eq.s32.totalorder %s28, 0
    %p425 = por %p423, %p424
    %p426 = scmp.le.s32.totalorder 1, %s22
    %p427 = scmp.lt.s32.totalorder %s22, 3
    %p428 = pnand %p426, %p427
    %p429 = pneg %p428
    // Predicated region
    $region9: #{dino_siamese_forward.3} parent=5 // pred_check
      _
    $region10: #{dino_siamese_forward.3} parent=5 // pred_check_branch
      %431 = sbr.rel (%p428) target = $region12
    $region11: #{dino_siamese_forward.3} parent=5 // pred_region
      %s432 = ssub.s32 %s22, 1
      // Predicated region
      $region13: #{dino_siamese_forward.3} parent=11 // pred_check
        %p433 = pneg %p43
      $region14: #{dino_siamese_forward.3} parent=11 // pred_check_branch
        %435 = sbr.rel (%p433) target = $region16
      $region15: #{dino_siamese_forward.3} parent=11 // pred_region
        _
      $region16: #{dino_siamese_forward.3} parent=11 // pred_fallthru
        _
      // Predicated region
      $region17: #{dino_siamese_forward.3} parent=11 // pred_check
        %p436 = pneg %p64
      $region18: #{dino_siamese_forward.3} parent=11 // pred_check_branch
        %438 = sbr.rel (%p436) target = $region20
      $region19: #{dino_siamese_forward.3} parent=11 // pred_region
        _
      $region20: #{dino_siamese_forward.3} parent=11 // pred_fallthru
        _
      // Predicated region
      $region21: #{dino_siamese_forward.3} parent=11 // pred_check
        %p439 = pneg %p85
      $region22: #{dino_siamese_forward.3} parent=11 // pred_check_branch
        %441 = sbr.rel (%p439) target = $region24
      $region23: #{dino_siamese_forward.3} parent=11 // pred_region
        _
      $region24: #{dino_siamese_forward.3} parent=11 // pred_fallthru
        _
    $region12: #{dino_siamese_forward.3} parent=5 // pred_fallthru
      _
    %p442 = scmp.lt.s32.totalorder %s22, 2
    // Predicated region
    $region25: #{dino_siamese_forward.3} parent=5 // pred_check
      %p443 = pneg %p442
    $region26: #{dino_siamese_forward.3} parent=5 // pred_check_branch
      %445 = sbr.rel (%p443) target = $region28
    $region27: #{dino_siamese_forward.3} parent=5 // pred_region
      // Predicated region
      $region29: #{dino_siamese_forward.3} parent=27 // pred_check
        %p446 = pneg %p105
      $region30: #{dino_siamese_forward.3} parent=27 // pred_check_branch
        %448 = sbr.rel (%p446) target = $region32
      $region31: #{dino_siamese_forward.3} parent=27 // pred_region
        %p449 = scmp.lt.s32.totalorder %s22, 1
        %s450 = scalar_select %p449, %s22, 1
        %s451 = scalar_lea.vmem %s4, %s450
      $region32: #{dino_siamese_forward.3} parent=27 // pred_fallthru
        _
      // Predicated region
      $region33: #{dino_siamese_forward.3} parent=27 // pred_check
        %p452 = pneg %p131
      $region34: #{dino_siamese_forward.3} parent=27 // pred_check_branch
        %454 = sbr.rel (%p452) target = $region36
      $region35: #{dino_siamese_forward.3} parent=27 // pred_region
        %p455 = scmp.lt.s32.totalorder %s22, 1
        %s456 = scalar_select %p455, %s22, 1
        %s457 = scalar_lea.vmem %s5, %s456
      $region36: #{dino_siamese_forward.3} parent=27 // pred_fallthru
        _
      // Predicated region
      $region37: #{dino_siamese_forward.3} parent=27 // pred_check
        %p458 = pneg %p157
      $region38: #{dino_siamese_forward.3} parent=27 // pred_check_branch
        %460 = sbr.rel (%p458) target = $region40
      $region39: #{dino_siamese_forward.3} parent=27 // pred_region
        %p461 = scmp.lt.s32.totalorder %s22, 1
        %s462 = scalar_select %p461, %s22, 1
        %s463 = smul.addr %s462, 48
        %s464 = smul.addr %s463, 4
        %s465 = scalar_lea.vmem %s6, %s464
      $region40: #{dino_siamese_forward.3} parent=27 // pred_fallthru
        _
      // Predicated region
      $region41: #{dino_siamese_forward.3} parent=27 // pred_check
        %p466 = pneg %p183
      $region42: #{dino_siamese_forward.3} parent=27 // pred_check_branch
        %468 = sbr.rel (%p466) target = $region44
      $region43: #{dino_siamese_forward.3} parent=27 // pred_region
        %p469 = scmp.lt.s32.totalorder %s22, 1
        %s470 = scalar_select %p469, %s22, 1
        %s471 = smul.addr %s470, 3
        %s472 = scalar_lea.vmem %s7, %s471
      $region44: #{dino_siamese_forward.3} parent=27 // pred_fallthru
        _
      // Predicated region
      $region45: #{dino_siamese_forward.3} parent=27 // pred_check
        %p473 = pneg %p209
      $region46: #{dino_siamese_forward.3} parent=27 // pred_check_branch
        %475 = sbr.rel (%p473) target = $region48
      $region47: #{dino_siamese_forward.3} parent=27 // pred_region
        %p476 = scmp.lt.s32.totalorder %s22, 1
        %s477 = scalar_select %p476, %s22, 1
        %s478 = smul.addr %s477, 16
        %s479 = smul.addr %s478, 4
        %s480 = scalar_lea.vmem %s8, %s479
      $region48: #{dino_siamese_forward.3} parent=27 // pred_fallthru
        _
      // Predicated region
      $region49: #{dino_siamese_forward.3} parent=27 // pred_check
        %p481 = pneg %p235
      $region50: #{dino_siamese_forward.3} parent=27 // pred_check_branch
        %483 = sbr.rel (%p481) target = $region52
      $region51: #{dino_siamese_forward.3} parent=27 // pred_region
        %p484 = scmp.lt.s32.totalorder %s22, 1
        %s485 = scalar_select %p484, %s22, 1
        %s486 = scalar_lea.vmem %s9, %s485
      $region52: #{dino_siamese_forward.3} parent=27 // pred_fallthru
        _
      // Predicated region
      $region53: #{dino_siamese_forward.3} parent=27 // pred_check
        %p487 = pneg %p261
      $region54: #{dino_siamese_forward.3} parent=27 // pred_check_branch
        %489 = sbr.rel (%p487) target = $region56
      $region55: #{dino_siamese_forward.3} parent=27 // pred_region
        %p490 = scmp.lt.s32.totalorder %s22, 1
        %s491 = scalar_select %p490, %s22, 1
        %s492 = scalar_lea.vmem %s10, %s491
      $region56: #{dino_siamese_forward.3} parent=27 // pred_fallthru
        _
      // Predicated region
      $region57: #{dino_siamese_forward.3} parent=27 // pred_check
        %p493 = pneg %p287
      $region58: #{dino_siamese_forward.3} parent=27 // pred_check_branch
        %495 = sbr.rel (%p493) target = $region60
      $region59: #{dino_siamese_forward.3} parent=27 // pred_region
        %p496 = scmp.lt.s32.totalorder %s22, 1
        %s497 = scalar_select %p496, %s22, 1
        %s498 = scalar_lea.vmem %s11, %s497
      $region60: #{dino_siamese_forward.3} parent=27 // pred_fallthru
        _
      // Predicated region
      $region61: #{dino_siamese_forward.3} parent=27 // pred_check
        %p499 = pneg %p313
      $region62: #{dino_siamese_forward.3} parent=27 // pred_check_branch
        %501 = sbr.rel (%p499) target = $region64
      $region63: #{dino_siamese_forward.3} parent=27 // pred_region
        %p502 = scmp.lt.s32.totalorder %s22, 1
        %s503 = scalar_select %p502, %s22, 1
        %s504 = smul.addr %s503, 64
        %s505 = smul.addr %s504, 4
        %s506 = scalar_lea.vmem %s12, %s505
      $region64: #{dino_siamese_forward.3} parent=27 // pred_fallthru
        _
      // Predicated region
      $region65: #{dino_siamese_forward.3} parent=27 // pred_check
        %p507 = pneg %p339
      $region66: #{dino_siamese_forward.3} parent=27 // pred_check_branch
        %509 = sbr.rel (%p507) target = $region68
      $region67: #{dino_siamese_forward.3} parent=27 // pred_region
        %p510 = scmp.lt.s32.totalorder %s22, 1
        %s511 = scalar_select %p510, %s22, 1
        %s512 = smul.addr %s511, 4
        %s513 = scalar_lea.vmem %s13, %s512
      $region68: #{dino_siamese_forward.3} parent=27 // pred_fallthru
        _
      // Predicated region
      $region69: #{dino_siamese_forward.3} parent=27 // pred_check
        %p514 = pneg %p365
      $region70: #{dino_siamese_forward.3} parent=27 // pred_check_branch
        %516 = sbr.rel (%p514) target = $region72
      $region71: #{dino_siamese_forward.3} parent=27 // pred_region
        %p517 = scmp.lt.s32.totalorder %s22, 1
        %s518 = scalar_select %p517, %s22, 1
        %s519 = smul.addr %s518, 64
        %s520 = smul.addr %s519, 4
        %s521 = scalar_lea.vmem %s14, %s520
      $region72: #{dino_siamese_forward.3} parent=27 // pred_fallthru
        _
      // Predicated region
      $region73: #{dino_siamese_forward.3} parent=27 // pred_check
        %p522 = pneg %p391
      $region74: #{dino_siamese_forward.3} parent=27 // pred_check_branch
        %524 = sbr.rel (%p522) target = $region76
      $region75: #{dino_siamese_forward.3} parent=27 // pred_region
        %p525 = scmp.lt.s32.totalorder %s22, 1
        %s526 = scalar_select %p525, %s22, 1
        %s527 = scalar_lea.vmem %s15, %s526
      $region76: #{dino_siamese_forward.3} parent=27 // pred_fallthru
        _
    $region28: #{dino_siamese_forward.3} parent=5 // pred_fallthru
      _
    %p528 = scmp.le.s32.totalorder 1, %s22
    %p529 = scmp.lt.s32.totalorder %s22, 3
    %p530 = pnand %p528, %p529
    %p531 = pneg %p530
    // Predicated region
    $region77: #{dino_siamese_forward.3} parent=5 // pred_check
      _
    $region78: #{dino_siamese_forward.3} parent=5 // pred_check_branch
      %533 = sbr.rel (%p530) target = $region80
    $region79: #{dino_siamese_forward.3} parent=5 // pred_region
      %s534 = ssub.s32 %s22, 1
      %p535 = pneg %p43
      %p536 = pneg %p40
      %p537 = pneg %p64
      %p538 = pneg %p61
      %p539 = pneg %p85
      %p540 = pneg %p82
      %p541 = scmp.lt.s32.totalorder %s27, 1
      %s542 = scalar_select %p541, %s27, 1
      %s543 = scalar_lea.vmem %s4, %s542
      %p544 = pneg %p111
      %p545 = pneg %p108
      %p546 = scmp.lt.s32.totalorder %s27, 1
      %s547 = scalar_select %p546, %s27, 1
      %s548 = scalar_lea.vmem %s5, %s547
      %p549 = pneg %p137
      %p550 = pneg %p134
      %p551 = scmp.lt.s32.totalorder %s27, 1
      %s552 = scalar_select %p551, %s27, 1
      %s553 = smul.addr %s552, 48
      %s554 = smul.addr %s553, 4
      %s555 = scalar_lea.vmem %s6, %s554
      %p556 = pneg %p163
      %p557 = pneg %p160
      %p558 = scmp.lt.s32.totalorder %s27, 1
      %s559 = scalar_select %p558, %s27, 1
      %s560 = smul.addr %s559, 3
      %s561 = scalar_lea.vmem %s7, %s560
      %p562 = pneg %p189
      %p563 = pneg %p186
      %p564 = scmp.lt.s32.totalorder %s27, 1
      %s565 = scalar_select %p564, %s27, 1
      %s566 = smul.addr %s565, 16
      %s567 = smul.addr %s566, 4
      %s568 = scalar_lea.vmem %s8, %s567
      %p569 = pneg %p215
      %p570 = pneg %p212
      %p571 = scmp.lt.s32.totalorder %s27, 1
      %s572 = scalar_select %p571, %s27, 1
      %s573 = scalar_lea.vmem %s9, %s572
      %p574 = pneg %p241
      %p575 = pneg %p238
      %p576 = scmp.lt.s32.totalorder %s27, 1
      %s577 = scalar_select %p576, %s27, 1
      %s578 = scalar_lea.vmem %s10, %s577
      %p579 = pneg %p267
      %p580 = pneg %p264
      %p581 = scmp.lt.s32.totalorder %s27, 1
      %s582 = scalar_select %p581, %s27, 1
      %s583 = scalar_lea.vmem %s11, %s582
      %p584 = pneg %p293
      %p585 = pneg %p290
      %p586 = scmp.lt.s32.totalorder %s27, 1
      %s587 = scalar_select %p586, %s27, 1
      %s588 = smul.addr %s587, 64
      %s589 = smul.addr %s588, 4
      %s590 = scalar_lea.vmem %s12, %s589
      %p591 = pneg %p319
      %p592 = pneg %p316
      %p593 = scmp.lt.s32.totalorder %s27, 1
      %s594 = scalar_select %p593, %s27, 1
      %s595 = smul.addr %s594, 4
      %s596 = scalar_lea.vmem %s13, %s595
      %p597 = pneg %p345
      %p598 = pneg %p342
      %p599 = scmp.lt.s32.totalorder %s27, 1
      %s600 = scalar_select %p599, %s27, 1
      %s601 = smul.addr %s600, 64
      %s602 = smul.addr %s601, 4
      %s603 = scalar_lea.vmem %s14, %s602
      %p604 = pneg %p371
      %p605 = pneg %p368
      %p606 = scmp.lt.s32.totalorder %s27, 1
      %s607 = scalar_select %p606, %s27, 1
      %s608 = scalar_lea.vmem %s15, %s607
      %p609 = pneg %p397
      %p610 = pneg %p394
      %p611 = pneg %p418
      %p612 = pneg %p415
      %p613 = scmp.lt.s32.totalorder %s27, 1
      %s614 = scalar_select %p613, %s27, 1
      %s615 = scalar_lea.vmem %s4, %s614
      %p616 = scmp.lt.s32.totalorder %s27, 1
      %s617 = scalar_select %p616, %s27, 1
      %s618 = scalar_lea.vmem %s5, %s617
      %p619 = scmp.lt.s32.totalorder %s27, 1
      %s620 = scalar_select %p619, %s27, 1
      %s621 = smul.addr %s620, 48
      %s622 = smul.addr %s621, 4
      %s623 = scalar_lea.vmem %s6, %s622
      %p624 = scmp.lt.s32.totalorder %s27, 1
      %s625 = scalar_select %p624, %s27, 1
      %s626 = smul.addr %s625, 3
      %s627 = scalar_lea.vmem %s7, %s626
      %p628 = scmp.lt.s32.totalorder %s27, 1
      %s629 = scalar_select %p628, %s27, 1
      %s630 = smul.addr %s629, 16
      %s631 = smul.addr %s630, 4
      %s632 = scalar_lea.vmem %s8, %s631
      %p633 = scmp.lt.s32.totalorder %s27, 1
      %s634 = scalar_select %p633, %s27, 1
      %s635 = scalar_lea.vmem %s9, %s634
      %p636 = scmp.lt.s32.totalorder %s27, 1
      %s637 = scalar_select %p636, %s27, 1
      %s638 = scalar_lea.vmem %s10, %s637
      %p639 = scmp.lt.s32.totalorder %s27, 1
      %s640 = scalar_select %p639, %s27, 1
      %s641 = scalar_lea.vmem %s11, %s640
      %p642 = scmp.lt.s32.totalorder %s27, 1
      %s643 = scalar_select %p642, %s27, 1
      %s644 = smul.addr %s643, 64
      %s645 = smul.addr %s644, 4
      %s646 = scalar_lea.vmem %s12, %s645
      %p647 = scmp.lt.s32.totalorder %s27, 1
      %s648 = scalar_select %p647, %s27, 1
      %s649 = smul.addr %s648, 4
      %s650 = scalar_lea.vmem %s13, %s649
      %p651 = scmp.lt.s32.totalorder %s27, 1
      %s652 = scalar_select %p651, %s27, 1
      %s653 = smul.addr %s652, 64
      %s654 = smul.addr %s653, 4
      %s655 = scalar_lea.vmem %s14, %s654
      %p656 = scmp.lt.s32.totalorder %s27, 1
      %s657 = scalar_select %p656, %s27, 1
      %s658 = scalar_lea.vmem %s15, %s657
      %p660 = scmp.eq.s32.totalorder %s27, 0
      // Predicated region
      $region81: #{dino_siamese_forward.3} parent=79 // pred_check
        %p661 = pneg %p660
      $region82: #{dino_siamese_forward.3} parent=79 // pred_check_branch
        %663 = sbr.rel (%p661) target = $region84
      $region83: #{dino_siamese_forward.3} parent=79 // pred_region
        %p665 = scmp.lt.u32.totalorder 32, 8
        %p666 = pneg %p665
        // Predicated region
        $region85: #{dino_siamese_forward.3} parent=83 // pred_check
          _
        $region86: #{dino_siamese_forward.3} parent=83 // pred_check_branch
          %668 = sbr.rel (%p665) target = $region88
        $region87: #{dino_siamese_forward.3} parent=83 // pred_region
          %s684 = sand.u32 32, 7
          %p685 = scmp.eq.s32.totalorder %s684, 0
          // Predicated region
          $region100: #{dino_siamese_forward.3} parent=87 // pred_check
            %p686 = pneg %p685
          $region101: #{dino_siamese_forward.3} parent=87 // pred_check_branch
            %688 = sbr.rel (%p686) target = $region103
          $region102: #{dino_siamese_forward.3} parent=87 // pred_region
            loop: start=0, step=1, limit=1
            $region104: #{dino_siamese_forward.3} parent=102 // loop_pre_header
              _
            $region105: #{dino_siamese_forward.3} parent=102 // loop_header
              %s690 = sphi 0, %s694
              %p691 = scmp.ge.s32.totalorder %s690, 1
              %s695 = sphi %s0, %s0
              %s696 = sphi [#allocation2], [#allocation2]
            $region106: #{dino_siamese_forward.3} parent=102 // loop_header_branch
              %693 = sbr.rel (%p691) target = $region110
            $region107: #{dino_siamese_forward.3} parent=102 // loop_body
              %v697 = vld [vmem:[%s695] sm:$0xff]
              %698 = vst [vmem:[%s696] sm:$0xff] %v697
              %v699 = vld [vmem:[%s695 + $0x8] sm:$0xff]
              %700 = vst [vmem:[%s696 + $0x8] sm:$0xff] %v699
              %v701 = vld [vmem:[%s695 + $0x10] sm:$0xff]
              %702 = vst [vmem:[%s696 + $0x10] sm:$0xff] %v701
              %v703 = vld [vmem:[%s695 + $0x18] sm:$0xff]
              %704 = vst [vmem:[%s696 + $0x18] sm:$0xff] %v703
            $region108: #{dino_siamese_forward.3} parent=102 // loop_footer
              %s694 = sadd.s32 1, %s690
            $region109: #{dino_siamese_forward.3} parent=102 // loop_footer_branch
              %689 = sbr.rel target = $region105
            $region110: #{dino_siamese_forward.3} parent=102 // loop_exit
              _
          $region103: #{dino_siamese_forward.3} parent=87 // pred_fallthru
            _
          %p705 = pneg %p685
          // Predicated region
          $region111: #{dino_siamese_forward.3} parent=87 // pred_check
            _
          $region112: #{dino_siamese_forward.3} parent=87 // pred_check_branch
            %707 = sbr.rel (%p685) target = $region114
          $region113: #{dino_siamese_forward.3} parent=87 // pred_region
            %s708 = sand.u32 32, 7
          $region114: #{dino_siamese_forward.3} parent=87 // pred_fallthru
            _
        $region88: #{dino_siamese_forward.3} parent=83 // pred_fallthru
          _
        // Predicated region
        $region89: #{dino_siamese_forward.3} parent=83 // pred_check
          %p669 = pneg %p665
        $region90: #{dino_siamese_forward.3} parent=83 // pred_check_branch
          %671 = sbr.rel (%p669) target = $region92
        $region91: #{dino_siamese_forward.3} parent=83 // pred_region
          %s672 = sshll.u32 1, 32
          %s673 = ssub.s32 %s672, 1
          loop: start=0, step=1, limit=1
          $region93: #{dino_siamese_forward.3} parent=91 // loop_pre_header
            _
          $region94: #{dino_siamese_forward.3} parent=91 // loop_header
            %s675 = sphi 0, %s679
            %p676 = scmp.ge.s32.totalorder %s675, 1
            %s680 = sphi %s0, %s0
            %s681 = sphi [#allocation2], [#allocation2]
          $region95: #{dino_siamese_forward.3} parent=91 // loop_header_branch
            %678 = sbr.rel (%p676) target = $region99
          $region96: #{dino_siamese_forward.3} parent=91 // loop_body
            %v682 = vld [vmem:[%s680] sm:%s673]
            %683 = vst [vmem:[%s681] sm:%s673] %v682
          $region97: #{dino_siamese_forward.3} parent=91 // loop_footer
            %s679 = sadd.s32 1, %s675
          $region98: #{dino_siamese_forward.3} parent=91 // loop_footer_branch
            %674 = sbr.rel target = $region94
          $region99: #{dino_siamese_forward.3} parent=91 // loop_exit
            _
        $region92: #{dino_siamese_forward.3} parent=83 // pred_fallthru
          _
        // Predicated region
        $region115: #{dino_siamese_forward.3} parent=83 // pred_check
          _
        $region116: #{dino_siamese_forward.3} parent=83 // pred_check_branch
          %711 = sbr.rel (0) target = $region118
        $region117: #{dino_siamese_forward.3} parent=83 // pred_region
          %712 = vsyncadd [#allocation3], 512
        $region118: #{dino_siamese_forward.3} parent=83 // pred_fallthru
          _
        %s713 = smul.u32 32, 1
        %s714 = sshll.u32 %s713, 4
        %715 = dma.done [#allocation3], %s714
      $region84: #{dino_siamese_forward.3} parent=79 // pred_fallthru
        _
      %v716 = vld [vmem:[#allocation2] sm:$0xff]
      %v717 = vld [vmem:[#allocation2 + $0x8] sm:$0xff]
      %v718 = vld [vmem:[#allocation2 + $0x10] sm:$0xff]
      %v719 = vld [vmem:[#allocation2 + $0x18] sm:$0xff]
      %v720 = vld [vmem:[%s615] sm:$0x1]
      %v721 = vld [vmem:[%s618] sm:$0x1]
      %722 = vadd.xlane.f32.xlu0 %v716
      %v723 = vpop.xlane.xlu0 %722
      %724 = vadd.xlane.f32.xlu0 %v717
      %v725 = vpop.xlane.xlu0 %724
      %726 = vadd.xlane.f32.xlu0 %v718
      %v727 = vpop.xlane.xlu0 %726
      %728 = vadd.xlane.f32.xlu0 %v719
      %v729 = vpop.xlane.xlu0 %728
      %v730 = vrcp.pop 128.0
      %v731 = vmul.f32 %v723, %v730
      %v732 = vmul.f32 %v725, %v730
      %v733 = vmul.f32 %v727, %v730
      %v734 = vmul.f32 %v729, %v730
      %v735 = vsub.f32 %v716, %v731
      %v736 = vsub.f32 %v717, %v732
      %v737 = vsub.f32 %v718, %v733
      %v738 = vsub.f32 %v719, %v734
      %v739 = vmul.f32 %v735, %v735
      %v740 = vmul.f32 %v736, %v736
      %v741 = vmul.f32 %v737, %v737
      %v742 = vmul.f32 %v738, %v738
      %743 = vadd.xlane.f32.xlu0 %v739
      %v744 = vpop.xlane.xlu0 %743
      %745 = vadd.xlane.f32.xlu0 %v740
      %v746 = vpop.xlane.xlu0 %745
      %747 = vadd.xlane.f32.xlu0 %v741
      %v748 = vpop.xlane.xlu0 %747
      %749 = vadd.xlane.f32.xlu0 %v742
      %v750 = vpop.xlane.xlu0 %749
      %v751 = vmul.f32 %v744, %v730
      %v752 = vmul.f32 %v746, %v730
      %v753 = vmul.f32 %v748, %v730
      %v754 = vmul.f32 %v750, %v730
      %v755 = vadd.f32 %v751, 1e-06
      %v756 = vadd.f32 %v752, 1e-06
      %v757 = vadd.f32 %v753, 1e-06
      %v758 = vadd.f32 %v754, 1e-06
      %v759 = vrsqrt.pop %v755
      %v760 = vrsqrt.pop %v756
      %v761 = vrsqrt.pop %v757
      %v762 = vrsqrt.pop %v758
      %v763 = vmul.f32 %v735, %v759
      %v764 = vmul.f32 %v736, %v760
      %v765 = vmul.f32 %v737, %v761
      %v766 = vmul.f32 %v738, %v762
      %v768 = vlaneseq
      %v769 = vshrl.u32 %v768, 7
      %v770 = vsub.s32 0, %v769
      %v771 = vrot.slane %v720, %v770
      %v773 = vmul.f32 %v763, %v771
      %v774 = vmul.f32 %v764, %v771
      %v775 = vmul.f32 %v765, %v771
      %v776 = vmul.f32 %v766, %v771
      %v778 = vlaneseq
      %v779 = vshrl.u32 %v778, 7
      %v780 = vsub.s32 0, %v779
      %v781 = vrot.slane %v721, %v780
      %v783 = vadd.f32 %v773, %v781
      %v784 = vadd.f32 %v774, %v781
      %v785 = vadd.f32 %v775, %v781
      %v786 = vadd.f32 %v776, %v781
      %v787 = vpack.c.bf16 %v784, %v783
      %v788 = vpack.c.bf16 %v786, %v785
      %v789 = vld [vmem:[%s623] sm:$0xff]
      %v790 = vld [vmem:[%s623 + $0x8] sm:$0xf]
      %v791 = vld [vmem:[%s623 + $0xc] sm:$0xff]
      %v792 = vld [vmem:[%s623 + $0x14] sm:$0xf]
      %v793 = vld [vmem:[%s623 + $0x18] sm:$0xff]
      %v794 = vld [vmem:[%s623 + $0x20] sm:$0xf]
      %v795 = vld [vmem:[%s623 + $0x24] sm:$0xff]
      %v796 = vld [vmem:[%s623 + $0x2c] sm:$0xf]
      %v797 = vld [vmem:[%s623 + $0x30] sm:$0xff]
      %v798 = vld [vmem:[%s623 + $0x38] sm:$0xf]
      %v799 = vld [vmem:[%s623 + $0x3c] sm:$0xff]
      %v800 = vld [vmem:[%s623 + $0x44] sm:$0xf]
      %v801 = vld [vmem:[%s623 + $0x48] sm:$0xff]
      %v802 = vld [vmem:[%s623 + $0x50] sm:$0xf]
      %v803 = vld [vmem:[%s623 + $0x54] sm:$0xff]
      %v804 = vld [vmem:[%s623 + $0x5c] sm:$0xf]
      %v805 = vld [vmem:[%s623 + $0x60] sm:$0xff]
      %v806 = vld [vmem:[%s623 + $0x68] sm:$0xf]
      %v807 = vld [vmem:[%s623 + $0x6c] sm:$0xff]
      %v808 = vld [vmem:[%s623 + $0x74] sm:$0xf]
      %v809 = vld [vmem:[%s623 + $0x78] sm:$0xff]
      %v810 = vld [vmem:[%s623 + $0x80] sm:$0xf]
      %v811 = vld [vmem:[%s623 + $0x84] sm:$0xff]
      %v812 = vld [vmem:[%s623 + $0x8c] sm:$0xf]
      %v813 = vld [vmem:[%s623 + $0x90] sm:$0xff]
      %v814 = vld [vmem:[%s623 + $0x98] sm:$0xf]
      %v815 = vld [vmem:[%s623 + $0x9c] sm:$0xff]
      %v816 = vld [vmem:[%s623 + $0xa4] sm:$0xf]
      %v817 = vld [vmem:[%s623 + $0xa8] sm:$0xff]
      %v818 = vld [vmem:[%s623 + $0xb0] sm:$0xf]
      %v819 = vld [vmem:[%s623 + $0xb4] sm:$0xff]
      %v820 = vld [vmem:[%s623 + $0xbc] sm:$0xf]
      %v821 = vld [vmem:[%s627] sm:$0x7]
      %v823 = vlaneseq
      %v824 = vshrl.u32 %v823, 7
      %v825 = vsub.s32 0, %v824
      %v826 = vrot.slane %v821, %v825
      %v827 = vlaneseq
      %v828 = vshrl.u32 %v827, 7
      %v829 = vsub.s32 1, %v828
      %v830 = vrot.slane %v821, %v829
      %v831 = vlaneseq
      %v832 = vshrl.u32 %v831, 7
      %v833 = vsub.s32 2, %v832
      %v834 = vrot.slane %v821, %v833
      %v870 = vunpack.c.l.b16 %v789
      %v871 = vunpack.c.h.b16 %v789
      %v872 = vunpack.c.l.b16 %v790
      %v873 = vunpack.c.l.b16 %v791
      %v874 = vunpack.c.h.b16 %v791
      %v875 = vunpack.c.l.b16 %v792
      %v876 = vunpack.c.l.b16 %v793
      %v877 = vunpack.c.h.b16 %v793
      %v878 = vunpack.c.l.b16 %v794
      %v879 = vunpack.c.l.b16 %v795
      %v880 = vunpack.c.h.b16 %v795
      %v881 = vunpack.c.l.b16 %v796
      %v882 = vunpack.c.l.b16 %v797
      %v883 = vunpack.c.h.b16 %v797
      %v884 = vunpack.c.l.b16 %v798
      %v885 = vunpack.c.l.b16 %v799
      %v886 = vunpack.c.h.b16 %v799
      %v887 = vunpack.c.l.b16 %v800
      %v888 = vunpack.c.l.b16 %v801
      %v889 = vunpack.c.h.b16 %v801
      %v890 = vunpack.c.l.b16 %v802
      %v891 = vunpack.c.l.b16 %v803
      %v892 = vunpack.c.h.b16 %v803
      %v893 = vunpack.c.l.b16 %v804
      %v894 = vunpack.c.l.b16 %v805
      %v895 = vunpack.c.h.b16 %v805
      %v896 = vunpack.c.l.b16 %v806
      %v897 = vunpack.c.l.b16 %v807
      %v898 = vunpack.c.h.b16 %v807
      %v899 = vunpack.c.l.b16 %v808
      %v900 = vunpack.c.l.b16 %v809
      %v901 = vunpack.c.h.b16 %v809
      %v902 = vunpack.c.l.b16 %v810
      %v903 = vunpack.c.l.b16 %v811
      %v904 = vunpack.c.h.b16 %v811
      %v905 = vunpack.c.l.b16 %v812
      %v906 = vunpack.c.l.b16 %v813
      %v907 = vunpack.c.h.b16 %v813
      %v908 = vunpack.c.l.b16 %v814
      %v909 = vunpack.c.l.b16 %v815
      %v910 = vunpack.c.h.b16 %v815
      %v911 = vunpack.c.l.b16 %v816
      %v912 = vunpack.c.l.b16 %v817
      %v913 = vunpack.c.h.b16 %v817
      %v914 = vunpack.c.l.b16 %v818
      %v915 = vunpack.c.l.b16 %v819
      %v916 = vunpack.c.h.b16 %v819
      %v917 = vunpack.c.l.b16 %v820
      %v918 = vpack.c.b16 %v873, %v870
      %v919 = vpack.c.b16 %v874, %v871
      %v920 = vpack.c.b16 %v875, %v872
      %v921 = vpack.c.b16 %v879, %v876
      %v922 = vpack.c.b16 %v880, %v877
      %v923 = vpack.c.b16 %v881, %v878
      %v924 = vpack.c.b16 %v885, %v882
      %v925 = vpack.c.b16 %v886, %v883
      %v926 = vpack.c.b16 %v887, %v884
      %v927 = vpack.c.b16 %v891, %v888
      %v928 = vpack.c.b16 %v892, %v889
      %v929 = vpack.c.b16 %v893, %v890
      %v930 = vpack.c.b16 %v897, %v894
      %v931 = vpack.c.b16 %v898, %v895
      %v932 = vpack.c.b16 %v899, %v896
      %v933 = vpack.c.b16 %v903, %v900
      %v934 = vpack.c.b16 %v904, %v901
      %v935 = vpack.c.b16 %v905, %v902
      %v936 = vpack.c.b16 %v909, %v906
      %v937 = vpack.c.b16 %v910, %v907
      %v938 = vpack.c.b16 %v911, %v908
      %v939 = vpack.c.b16 %v915, %v912
      %v940 = vpack.c.b16 %v916, %v913
      %v941 = vpack.c.b16 %v917, %v914
      %966 = vmatprep.subr.bf16.mxu0 %v940
      %967 = vmatpush1.bf16.msra.mxu0 %v939
      %968 = vmatprep.subr.bf16.mxu0 %v937
      %969 = vmatpush1.bf16.msra.mxu0 %v936
      %970 = vmatprep.subr.bf16.mxu0 %v934
      %971 = vmatpush1.bf16.msra.mxu0 %v933
      %972 = vmatprep.subr.bf16.mxu0 %v931
      %973 = vmatpush1.bf16.msra.mxu0 %v930
      %974 = vmatprep.subr.bf16.mxu0 %v928
      %975 = vmatpush1.bf16.msra.mxu0 %v927
      %976 = vmatprep.subr.bf16.mxu0 %v925
      %977 = vmatpush1.bf16.msra.mxu0 %v924
      %978 = vmatprep.subr.bf16.mxu0 %v922
      %979 = vmatpush1.bf16.msra.mxu0 %v921
      %980 = vmatprep.subr.bf16.mxu0 %v919
      %981 = vmatpush1.bf16.msra.mxu0 %v918
      %982 = vmatprep.subr.bf16.mxu0 0
      %983 = vmatpush2.bf16.msra.mxu0 0
      %984 = vmatprep.subr.bf16.mxu0 0
      %985 = vmatpush2.bf16.msra.mxu0 0
      %986 = vmatprep.subr.bf16.mxu0 0
      %987 = vmatpush2.bf16.msra.mxu0 0
      %988 = vmatprep.subr.bf16.mxu0 0
      %989 = vmatpush2.bf16.msra.mxu0 0
      %990 = vmatprep.subr.bf16.mxu0 0
      %991 = vmatpush2.bf16.msra.mxu0 0
      %992 = vmatprep.subr.bf16.mxu0 0
      %993 = vmatpush2.bf16.msra.mxu0 0
      %994 = vmatprep.subr.bf16.mxu0 0
      %995 = vmatpush2.bf16.msra.mxu0 0
      %996 = vmatprep.subr.bf16.mxu0 0
      %997 = vmatpush2.bf16.msra.mxu0 0
      %998 = vmatprep.mubr.bf16.mxu0 0
      %999 = vmatmul.mubr.bf16.gmra.mxu0 %v787
      %v1000 = vpop.f32.mrf.mxu0
      %v1001 = vadd.f32 %v826, %v1000
      %v1002 = vpop.f32.mrf.mxu0
      %v1003 = vadd.f32 %v830, %v1002
      %v1004 = vpop.f32.mrf.mxu0
      %v1005 = vadd.f32 %v826, %v1004
      %v1006 = vpop.f32.mrf.mxu0
      %v1007 = vadd.f32 %v830, %v1006
      %1008 = vmatprep.mubr.bf16.mxu0 0
      %1009 = vmatmul.mubr.bf16.gmra.mxu0 %v788
      %v1010 = vpop.f32.mrf.mxu0
      %v1011 = vadd.f32 %v826, %v1010
      %v1012 = vpop.f32.mrf.mxu0
      %v1013 = vadd.f32 %v830, %v1012
      %v1014 = vpop.f32.mrf.mxu0
      %v1015 = vadd.f32 %v826, %v1014
      %v1016 = vpop.f32.mrf.mxu0
      %v1017 = vadd.f32 %v830, %v1016
      %1018 = vdwg.mxu0
      %1019 = vmatprep.subr.bf16.mxu0 0
      %1020 = vmatpush1.bf16.msra.mxu0 %v941
      %1021 = vmatprep.subr.bf16.mxu0 0
      %1022 = vmatpush1.bf16.msra.mxu0 %v938
      %1023 = vmatprep.subr.bf16.mxu0 0
      %1024 = vmatpush1.bf16.msra.mxu0 %v935
      %1025 = vmatprep.subr.bf16.mxu0 0
      %1026 = vmatpush1.bf16.msra.mxu0 %v932
      %1027 = vmatprep.subr.bf16.mxu0 0
      %1028 = vmatpush1.bf16.msra.mxu0 %v929
      %1029 = vmatprep.subr.bf16.mxu0 0
      %1030 = vmatpush1.bf16.msra.mxu0 %v926
      %1031 = vmatprep.subr.bf16.mxu0 0
      %1032 = vmatpush1.bf16.msra.mxu0 %v923
      %1033 = vmatprep.subr.bf16.mxu0 0
      %1034 = vmatpush1.bf16.msra.mxu0 %v920
      %1035 = vmatprep.subr.bf16.mxu0 0
      %1036 = vmatpush2.bf16.msra.mxu0 0
      %1037 = vmatprep.subr.bf16.mxu0 0
      %1038 = vmatpush2.bf16.msra.mxu0 0
      %1039 = vmatprep.subr.bf16.mxu0 0
      %1040 = vmatpush2.bf16.msra.mxu0 0
      %1041 = vmatprep.subr.bf16.mxu0 0
      %1042 = vmatpush2.bf16.msra.mxu0 0
      %1043 = vmatprep.subr.bf16.mxu0 0
      %1044 = vmatpush2.bf16.msra.mxu0 0
      %1045 = vmatprep.subr.bf16.mxu0 0
      %1046 = vmatpush2.bf16.msra.mxu0 0
      %1047 = vmatprep.subr.bf16.mxu0 0
      %1048 = vmatpush2.bf16.msra.mxu0 0
      %1049 = vmatprep.subr.bf16.mxu0 0
      %1050 = vmatpush2.bf16.msra.mxu0 0
      %1051 = vmatprep.mubr.bf16.mxu0 0
      %1052 = vmatmul.mubr.bf16.gmra.mxu0 %v787
      %v1053 = vpop.f32.mrf.mxu0
      %v1054 = vadd.f32 %v834, %v1053
      %v1055 = vpop.f32.mrf.mxu0
      %v1056 = vpop.f32.mrf.mxu0
      %v1057 = vadd.f32 %v834, %v1056
      %v1058 = vpop.f32.mrf.mxu0
      %1059 = vmatprep.mubr.bf16.mxu0 0
      %1060 = vmatmul.mubr.bf16.gmra.mxu0 %v788
      %v1061 = vpop.f32.mrf.mxu0
      %v1062 = vadd.f32 %v834, %v1061
      %v1063 = vpop.f32.mrf.mxu0
      %v1064 = vpop.f32.mrf.mxu0
      %v1065 = vadd.f32 %v834, %v1064
      %v1066 = vpop.f32.mrf.mxu0
      %1067 = vdwg.mxu0
      %v1068 = vmul.f32 %v1001, 0.17677669
      %v1069 = vmul.f32 %v1005, 0.17677669
      %v1070 = vmul.f32 %v1011, 0.17677669
      %v1071 = vmul.f32 %v1015, 0.17677669
      %1076 = vrot.lane.b32.xlu0 %v1068, 96
      %v1077 = vpop.permute.xlu0 %1076
      %1078 = vrot.lane.b32.xlu0 %v1069, 96
      %v1079 = vpop.permute.xlu0 %1078
      %1080 = vrot.lane.b32.xlu0 %v1070, 96
      %v1081 = vpop.permute.xlu0 %1080
      %1082 = vrot.lane.b32.xlu0 %v1071, 96
      %v1083 = vpop.permute.xlu0 %1082
      %1088 = vrot.lane.b32.xlu0 %v1068, 64
      %v1089 = vpop.permute.xlu0 %1088
      %1090 = vrot.lane.b32.xlu0 %v1069, 64
      %v1091 = vpop.permute.xlu0 %1090
      %1092 = vrot.lane.b32.xlu0 %v1070, 64
      %v1093 = vpop.permute.xlu0 %1092
      %1094 = vrot.lane.b32.xlu0 %v1071, 64
      %v1095 = vpop.permute.xlu0 %1094
      %1100 = vrot.lane.b32.xlu0 %v1068, 32
      %v1101 = vpop.permute.xlu0 %1100
      %1102 = vrot.lane.b32.xlu0 %v1069, 32
      %v1103 = vpop.permute.xlu0 %1102
      %1104 = vrot.lane.b32.xlu0 %v1070, 32
      %v1105 = vpop.permute.xlu0 %1104
      %1106 = vrot.lane.b32.xlu0 %v1071, 32
      %v1107 = vpop.permute.xlu0 %1106
      %v1112 = vpack.c.bf16 %v1068, %v1068
      %v1113 = vpack.c.bf16 %v1069, %v1069
      %v1114 = vpack.c.bf16 %v1070, %v1070
      %v1115 = vpack.c.bf16 %v1071, %v1071
      %v1116 = vpack.c.bf16 %v1077, %v1077
      %v1117 = vpack.c.bf16 %v1079, %v1079
      %v1118 = vpack.c.bf16 %v1081, %v1081
      %v1119 = vpack.c.bf16 %v1083, %v1083
      %v1120 = vpack.c.bf16 %v1089, %v1089
      %v1121 = vpack.c.bf16 %v1091, %v1091
      %v1122 = vpack.c.bf16 %v1093, %v1093
      %v1123 = vpack.c.bf16 %v1095, %v1095
      %v1124 = vpack.c.bf16 %v1101, %v1101
      %v1125 = vpack.c.bf16 %v1103, %v1103
      %v1126 = vpack.c.bf16 %v1105, %v1105
      %v1127 = vpack.c.bf16 %v1107, %v1107
      %1132 = vrot.lane.b32.xlu0 %v1003, 96
      %v1133 = vpop.permute.xlu0 %1132
      %1134 = vrot.lane.b32.xlu0 %v1007, 96
      %v1135 = vpop.permute.xlu0 %1134
      %1136 = vrot.lane.b32.xlu0 %v1013, 96
      %v1137 = vpop.permute.xlu0 %1136
      %1138 = vrot.lane.b32.xlu0 %v1017, 96
      %v1139 = vpop.permute.xlu0 %1138
      %1144 = vrot.lane.b32.xlu0 %v1003, 64
      %v1145 = vpop.permute.xlu0 %1144
      %1146 = vrot.lane.b32.xlu0 %v1007, 64
      %v1147 = vpop.permute.xlu0 %1146
      %1148 = vrot.lane.b32.xlu0 %v1013, 64
      %v1149 = vpop.permute.xlu0 %1148
      %1150 = vrot.lane.b32.xlu0 %v1017, 64
      %v1151 = vpop.permute.xlu0 %1150
      %1156 = vrot.lane.b32.xlu0 %v1003, 32
      %v1157 = vpop.permute.xlu0 %1156
      %1158 = vrot.lane.b32.xlu0 %v1007, 32
      %v1159 = vpop.permute.xlu0 %1158
      %1160 = vrot.lane.b32.xlu0 %v1013, 32
      %v1161 = vpop.permute.xlu0 %1160
      %1162 = vrot.lane.b32.xlu0 %v1017, 32
      %v1163 = vpop.permute.xlu0 %1162
      %v1168 = vpack.c.bf16 %v1003, %v1003
      %v1169 = vpack.c.bf16 %v1007, %v1007
      %v1170 = vpack.c.bf16 %v1013, %v1013
      %v1171 = vpack.c.bf16 %v1017, %v1017
      %v1172 = vpack.c.bf16 %v1133, %v1133
      %v1173 = vpack.c.bf16 %v1135, %v1135
      %v1174 = vpack.c.bf16 %v1137, %v1137
      %v1175 = vpack.c.bf16 %v1139, %v1139
      %v1176 = vpack.c.bf16 %v1145, %v1145
      %v1177 = vpack.c.bf16 %v1147, %v1147
      %v1178 = vpack.c.bf16 %v1149, %v1149
      %v1179 = vpack.c.bf16 %v1151, %v1151
      %v1180 = vpack.c.bf16 %v1157, %v1157
      %v1181 = vpack.c.bf16 %v1159, %v1159
      %v1182 = vpack.c.bf16 %v1161, %v1161
      %v1183 = vpack.c.bf16 %v1163, %v1163
      %1188 = vrot.lane.b32.xlu0 %v1054, 96
      %v1189 = vpop.permute.xlu0 %1188
      %1190 = vrot.lane.b32.xlu0 %v1057, 96
      %v1191 = vpop.permute.xlu0 %1190
      %1192 = vrot.lane.b32.xlu0 %v1062, 96
      %v1193 = vpop.permute.xlu0 %1192
      %1194 = vrot.lane.b32.xlu0 %v1065, 96
      %v1195 = vpop.permute.xlu0 %1194
      %1200 = vrot.lane.b32.xlu0 %v1054, 64
      %v1201 = vpop.permute.xlu0 %1200
      %1202 = vrot.lane.b32.xlu0 %v1057, 64
      %v1203 = vpop.permute.xlu0 %1202
      %1204 = vrot.lane.b32.xlu0 %v1062, 64
      %v1205 = vpop.permute.xlu0 %1204
      %1206 = vrot.lane.b32.xlu0 %v1065, 64
      %v1207 = vpop.permute.xlu0 %1206
      %1212 = vrot.lane.b32.xlu0 %v1054, 32
      %v1213 = vpop.permute.xlu0 %1212
      %1214 = vrot.lane.b32.xlu0 %v1057, 32
      %v1215 = vpop.permute.xlu0 %1214
      %1216 = vrot.lane.b32.xlu0 %v1062, 32
      %v1217 = vpop.permute.xlu0 %1216
      %1218 = vrot.lane.b32.xlu0 %v1065, 32
      %v1219 = vpop.permute.xlu0 %1218
      %v1224 = vpack.c.bf16 %v1054, %v1054
      %v1225 = vpack.c.bf16 %v1057, %v1057
      %v1226 = vpack.c.bf16 %v1062, %v1062
      %v1227 = vpack.c.bf16 %v1065, %v1065
      %v1228 = vpack.c.bf16 %v1189, %v1189
      %v1229 = vpack.c.bf16 %v1191, %v1191
      %v1230 = vpack.c.bf16 %v1193, %v1193
      %v1231 = vpack.c.bf16 %v1195, %v1195
      %v1232 = vpack.c.bf16 %v1201, %v1201
      %v1233 = vpack.c.bf16 %v1203, %v1203
      %v1234 = vpack.c.bf16 %v1205, %v1205
      %v1235 = vpack.c.bf16 %v1207, %v1207
      %v1236 = vpack.c.bf16 %v1213, %v1213
      %v1237 = vpack.c.bf16 %v1215, %v1215
      %v1238 = vpack.c.bf16 %v1217, %v1217
      %v1239 = vpack.c.bf16 %v1219, %v1219
      %v1240 = vld [vmem:[%s1] sm:$0x1]
      %v1242 = vlaneseq
      %v1243 = vshrl.u32 %v1242, 7
      %v1244 = vsub.s32 0, %v1243
      %v1245 = vrot.slane %v1240, %v1244
      %vm1247 = vcmask 261120
      %v1249 = vsel %vm1247, %v1112, 0
      %v1252 = vsel %vm1247, %v1168, 0
      %1254 = vmatprep.subr.bf16.mxu0 0
      %1255 = vmatpush1.bf16.xpose.msra.mxu0 0
      %1256 = vmatprep.subr.bf16.mxu0 0
      %1257 = vmatpush1.bf16.xpose.msra.mxu0 0
      %1258 = vmatprep.subr.bf16.mxu0 0
      %1259 = vmatpush1.bf16.xpose.msra.mxu0 0
      %1260 = vmatprep.subr.bf16.mxu0 0
      %1261 = vmatpush1.bf16.xpose.msra.mxu0 0
      %1262 = vmatprep.subr.bf16.mxu0 0
      %1263 = vmatpush1.bf16.xpose.msra.mxu0 0
      %1264 = vmatprep.subr.bf16.mxu0 0
      %1265 = vmatpush1.bf16.xpose.msra.mxu0 0
      %1266 = vmatprep.subr.bf16.mxu0 0
      %1267 = vmatpush1.bf16.xpose.msra.mxu0 0
      %1268 = vmatprep.subr.bf16.mxu0 0
      %1269 = vmatpush1.bf16.xpose.msra.mxu0 %v1252
      %1270 = vmatprep.subr.bf16.mxu0 0
      %1271 = vmatpush2.bf16.xpose.msra.mxu0 0
      %1272 = vmatprep.subr.bf16.mxu0 0
      %1273 = vmatpush2.bf16.xpose.msra.mxu0 0
      %1274 = vmatprep.subr.bf16.mxu0 0
      %1275 = vmatpush2.bf16.xpose.msra.mxu0 0
      %1276 = vmatprep.subr.bf16.mxu0 0
      %1277 = vmatpush2.bf16.xpose.msra.mxu0 0
      %1278 = vmatprep.subr.bf16.mxu0 0
      %1279 = vmatpush2.bf16.xpose.msra.mxu0 0
      %1280 = vmatprep.subr.bf16.mxu0 0
      %1281 = vmatpush2.bf16.xpose.msra.mxu0 0
      %1282 = vmatprep.subr.bf16.mxu0 0
      %1283 = vmatpush2.bf16.xpose.msra.mxu0 0
      %1284 = vmatprep.subr.bf16.mxu0 0
      %1285 = vmatpush2.bf16.xpose.msra.mxu0 0
      %1286 = vmatprep.mubr.bf16.mxu0 0
      %1287 = vmatmul.mubr.bf16.gmra.mxu0 %v1249
      %v1288 = vpop.f32.mrf.mxu0
      %v1289 = vadd.f32 %v1245, %v1288
      %v1290 = vpop.f32.mrf.mxu0
      %v1291 = vpop.f32.mrf.mxu0
      %v1292 = vpop.f32.mrf.mxu0
      %1293 = vdwg.mxu0
      %v1295 = vsel %vm1247, %v1113, 0
      %v1298 = vsel %vm1247, %v1169, 0
      %1300 = vmatprep.subr.bf16.mxu0 0
      %1301 = vmatpush1.bf16.xpose.msra.mxu0 0
      %1302 = vmatprep.subr.bf16.mxu0 0
      %1303 = vmatpush1.bf16.xpose.msra.mxu0 0
      %1304 = vmatprep.subr.bf16.mxu0 0
      %1305 = vmatpush1.bf16.xpose.msra.mxu0 0
      %1306 = vmatprep.subr.bf16.mxu0 0
      %1307 = vmatpush1.bf16.xpose.msra.mxu0 0
      %1308 = vmatprep.subr.bf16.mxu0 0
      %1309 = vmatpush1.bf16.xpose.msra.mxu0 0
      %1310 = vmatprep.subr.bf16.mxu0 0
      %1311 = vmatpush1.bf16.xpose.msra.mxu0 0
      %1312 = vmatprep.subr.bf16.mxu0 0
      %1313 = vmatpush1.bf16.xpose.msra.mxu0 0
      %1314 = vmatprep.subr.bf16.mxu0 0
      %1315 = vmatpush1.bf16.xpose.msra.mxu0 %v1298
      %1316 = vmatprep.subr.bf16.mxu0 0
      %1317 = vmatpush2.bf16.xpose.msra.mxu0 0
      %1318 = vmatprep.subr.bf16.mxu0 0
      %1319 = vmatpush2.bf16.xpose.msra.mxu0 0
      %1320 = vmatprep.subr.bf16.mxu0 0
      %1321 = vmatpush2.bf16.xpose.msra.mxu0 0
      %1322 = vmatprep.subr.bf16.mxu0 0
      %1323 = vmatpush2.bf16.xpose.msra.mxu0 0
      %1324 = vmatprep.subr.bf16.mxu0 0
      %1325 = vmatpush2.bf16.xpose.msra.mxu0 0
      %1326 = vmatprep.subr.bf16.mxu0 0
      %1327 = vmatpush2.bf16.xpose.msra.mxu0 0
      %1328 = vmatprep.subr.bf16.mxu0 0
      %1329 = vmatpush2.bf16.xpose.msra.mxu0 0
      %1330 = vmatprep.subr.bf16.mxu0 0
      %1331 = vmatpush2.bf16.xpose.msra.mxu0 0
      %1332 = vmatprep.mubr.bf16.mxu0 0
      %1333 = vmatmul.mubr.bf16.gmra.mxu0 %v1295
      %v1334 = vpop.f32.mrf.mxu0
      %v1335 = vadd.f32 %v1245, %v1334
      %v1336 = vpop.f32.mrf.mxu0
      %v1337 = vpop.f32.mrf.mxu0
      %v1338 = vpop.f32.mrf.mxu0
      %1339 = vdwg.mxu0
      %v1341 = vsel %vm1247, %v1114, 0
      %v1344 = vsel %vm1247, %v1170, 0
      %1346 = vmatprep.subr.bf16.mxu0 0
      %1347 = vmatpush1.bf16.xpose.msra.mxu0 0
      %1348 = vmatprep.subr.bf16.mxu0 0
      %1349 = vmatpush1.bf16.xpose.msra.mxu0 0
      %1350 = vmatprep.subr.bf16.mxu0 0
      %1351 = vmatpush1.bf16.xpose.msra.mxu0 0
      %1352 = vmatprep.subr.bf16.mxu0 0
      %1353 = vmatpush1.bf16.xpose.msra.mxu0 0
      %1354 = vmatprep.subr.bf16.mxu0 0
      %1355 = vmatpush1.bf16.xpose.msra.mxu0 0
      %1356 = vmatprep.subr.bf16.mxu0 0
      %1357 = vmatpush1.bf16.xpose.msra.mxu0 0
      %1358 = vmatprep.subr.bf16.mxu0 0
      %1359 = vmatpush1.bf16.xpose.msra.mxu0 0
      %1360 = vmatprep.subr.bf16.mxu0 0
      %1361 = vmatpush1.bf16.xpose.msra.mxu0 %v1344
      %1362 = vmatprep.subr.bf16.mxu0 0
      %1363 = vmatpush2.bf16.xpose.msra.mxu0 0
      %1364 = vmatprep.subr.bf16.mxu0 0
      %1365 = vmatpush2.bf16.xpose.msra.mxu0 0
      %1366 = vmatprep.subr.bf16.mxu0 0
      %1367 = vmatpush2.bf16.xpose.msra.mxu0 0
      %1368 = vmatprep.subr.bf16.mxu0 0
      %1369 = vmatpush2.bf16.xpose.msra.mxu0 0
      %1370 = vmatprep.subr.bf16.mxu0 0
      %1371 = vmatpush2.bf16.xpose.msra.mxu0 0
      %1372 = vmatprep.subr.bf16.mxu0 0
      %1373 = vmatpush2.bf16.xpose.msra.mxu0 0
      %1374 = vmatprep.subr.bf16.mxu0 0
      %1375 = vmatpush2.bf16.xpose.msra.mxu0 0
      %1376 = vmatprep.subr.bf16.mxu0 0
      %1377 = vmatpush2.bf16.xpose.msra.mxu0 0
      %1378 = vmatprep.mubr.bf16.mxu0 0
      %1379 = vmatmul.mubr.bf16.gmra.mxu0 %v1341
      %v1380 = vpop.f32.mrf.mxu0
      %v1381 = vadd.f32 %v1245, %v1380
      %v1382 = vpop.f32.mrf.mxu0
      %v1383 = vpop.f32.mrf.mxu0
      %v1384 = vpop.f32.mrf.mxu0
      %1385 = vdwg.mxu0
      %v1387 = vsel %vm1247, %v1115, 0
      %v1390 = vsel %vm1247, %v1171, 0
      %1392 = vmatprep.subr.bf16.mxu0 0
      %1393 = vmatpush1.bf16.xpose.msra.mxu0 0
      %1394 = vmatprep.subr.bf16.mxu0 0
      %1395 = vmatpush1.bf16.xpose.msra.mxu0 0
      %1396 = vmatprep.subr.bf16.mxu0 0
      %1397 = vmatpush1.bf16.xpose.msra.mxu0 0
      %1398 = vmatprep.subr.bf16.mxu0 0
      %1399 = vmatpush1.bf16.xpose.msra.mxu0 0
      %1400 = vmatprep.subr.bf16.mxu0 0
      %1401 = vmatpush1.bf16.xpose.msra.mxu0 0
      %1402 = vmatprep.subr.bf16.mxu0 0
      %1403 = vmatpush1.bf16.xpose.msra.mxu0 0
      %1404 = vmatprep.subr.bf16.mxu0 0
      %1405 = vmatpush1.bf16.xpose.msra.mxu0 0
      %1406 = vmatprep.subr.bf16.mxu0 0
      %1407 = vmatpush1.bf16.xpose.msra.mxu0 %v1390
      %1408 = vmatprep.subr.bf16.mxu0 0
      %1409 = vmatpush2.bf16.xpose.msra.mxu0 0
      %1410 = vmatprep.subr.bf16.mxu0 0
      %1411 = vmatpush2.bf16.xpose.msra.mxu0 0
      %1412 = vmatprep.subr.bf16.mxu0 0
      %1413 = vmatpush2.bf16.xpose.msra.mxu0 0
      %1414 = vmatprep.subr.bf16.mxu0 0
      %1415 = vmatpush2.bf16.xpose.msra.mxu0 0
      %1416 = vmatprep.subr.bf16.mxu0 0
      %1417 = vmatpush2.bf16.xpose.msra.mxu0 0
      %1418 = vmatprep.subr.bf16.mxu0 0
      %1419 = vmatpush2.bf16.xpose.msra.mxu0 0
      %1420 = vmatprep.subr.bf16.mxu0 0
      %1421 = vmatpush2.bf16.xpose.msra.mxu0 0
      %1422 = vmatprep.subr.bf16.mxu0 0
      %1423 = vmatpush2.bf16.xpose.msra.mxu0 0
      %1424 = vmatprep.mubr.bf16.mxu0 0
      %1425 = vmatmul.mubr.bf16.gmra.mxu0 %v1387
      %v1426 = vpop.f32.mrf.mxu0
      %v1427 = vadd.f32 %v1245, %v1426
      %v1428 = vpop.f32.mrf.mxu0
      %v1429 = vpop.f32.mrf.mxu0
      %v1430 = vpop.f32.mrf.mxu0
      %1431 = vdwg.mxu0
      %v1433 = vsel %vm1247, %v1116, 0
      %v1436 = vsel %vm1247, %v1172, 0
      %1438 = vmatprep.subr.bf16.mxu0 0
      %1439 = vmatpush1.bf16.xpose.msra.mxu0 0
      %1440 = vmatprep.subr.bf16.mxu0 0
      %1441 = vmatpush1.bf16.xpose.msra.mxu0 0
      %1442 = vmatprep.subr.bf16.mxu0 0
      %1443 = vmatpush1.bf16.xpose.msra.mxu0 0
      %1444 = vmatprep.subr.bf16.mxu0 0
      %1445 = vmatpush1.bf16.xpose.msra.mxu0 0
      %1446 = vmatprep.subr.bf16.mxu0 0
      %1447 = vmatpush1.bf16.xpose.msra.mxu0 0
      %1448 = vmatprep.subr.bf16.mxu0 0
      %1449 = vmatpush1.bf16.xpose.msra.mxu0 0
      %1450 = vmatprep.subr.bf16.mxu0 0
      %1451 = vmatpush1.bf16.xpose.msra.mxu0 0
      %1452 = vmatprep.subr.bf16.mxu0 0
      %1453 = vmatpush1.bf16.xpose.msra.mxu0 %v1436
      %1454 = vmatprep.subr.bf16.mxu0 0
      %1455 = vmatpush2.bf16.xpose.msra.mxu0 0
      %1456 = vmatprep.subr.bf16.mxu0 0
      %1457 = vmatpush2.bf16.xpose.msra.mxu0 0
      %1458 = vmatprep.subr.bf16.mxu0 0
      %1459 = vmatpush2.bf16.xpose.msra.mxu0 0
      %1460 = vmatprep.subr.bf16.mxu0 0
      %1461 = vmatpush2.bf16.xpose.msra.mxu0 0
      %1462 = vmatprep.subr.bf16.mxu0 0
      %1463 = vmatpush2.bf16.xpose.msra.mxu0 0
      %1464 = vmatprep.subr.bf16.mxu0 0
      %1465 = vmatpush2.bf16.xpose.msra.mxu0 0
      %1466 = vmatprep.subr.bf16.mxu0 0
      %1467 = vmatpush2.bf16.xpose.msra.mxu0 0
      %1468 = vmatprep.subr.bf16.mxu0 0
      %1469 = vmatpush2.bf16.xpose.msra.mxu0 0
      %1470 = vmatprep.mubr.bf16.mxu0 0
      %1471 = vmatmul.mubr.bf16.gmra.mxu0 %v1433
      %v1472 = vpop.f32.mrf.mxu0
      %v1473 = vadd.f32 %v1245, %v1472
      %v1474 = vpop.f32.mrf.mxu0
      %v1475 = vpop.f32.mrf.mxu0
      %v1476 = vpop.f32.mrf.mxu0
      %1477 = vdwg.mxu0
      %v1479 = vsel %vm1247, %v1117, 0
      %v1482 = vsel %vm1247, %v1173, 0
      %1484 = vmatprep.subr.bf16.mxu0 0
      %1485 = vmatpush1.bf16.xpose.msra.mxu0 0
      %1486 = vmatprep.subr.bf16.mxu0 0
      %1487 = vmatpush1.bf16.xpose.msra.mxu0 0
      %1488 = vmatprep.subr.bf16.mxu0 0
      %1489 = vmatpush1.bf16.xpose.msra.mxu0 0
      %1490 = vmatprep.subr.bf16.mxu0 0
      %1491 = vmatpush1.bf16.xpose.msra.mxu0 0
      %1492 = vmatprep.subr.bf16.mxu0 0
      %1493 = vmatpush1.bf16.xpose.msra.mxu0 0
      %1494 = vmatprep.subr.bf16.mxu0 0
      %1495 = vmatpush1.bf16.xpose.msra.mxu0 0
      %1496 = vmatprep.subr.bf16.mxu0 0
      %1497 = vmatpush1.bf16.xpose.msra.mxu0 0
      %1498 = vmatprep.subr.bf16.mxu0 0
      %1499 = vmatpush1.bf16.xpose.msra.mxu0 %v1482
      %1500 = vmatprep.subr.bf16.mxu0 0
      %1501 = vmatpush2.bf16.xpose.msra.mxu0 0
      %1502 = vmatprep.subr.bf16.mxu0 0
      %1503 = vmatpush2.bf16.xpose.msra.mxu0 0
      %1504 = vmatprep.subr.bf16.mxu0 0
      %1505 = vmatpush2.bf16.xpose.msra.mxu0 0
      %1506 = vmatprep.subr.bf16.mxu0 0
      %1507 = vmatpush2.bf16.xpose.msra.mxu0 0
      %1508 = vmatprep.subr.bf16.mxu0 0
      %1509 = vmatpush2.bf16.xpose.msra.mxu0 0
      %1510 = vmatprep.subr.bf16.mxu0 0
      %1511 = vmatpush2.bf16.xpose.msra.mxu0 0
      %1512 = vmatprep.subr.bf16.mxu0 0
      %1513 = vmatpush2.bf16.xpose.msra.mxu0 0
      %1514 = vmatprep.subr.bf16.mxu0 0
      %1515 = vmatpush2.bf16.xpose.msra.mxu0 0
      %1516 = vmatprep.mubr.bf16.mxu0 0
      %1517 = vmatmul.mubr.bf16.gmra.mxu0 %v1479
      %v1518 = vpop.f32.mrf.mxu0
      %v1519 = vadd.f32 %v1245, %v1518
      %v1520 = vpop.f32.mrf.mxu0
      %v1521 = vpop.f32.mrf.mxu0
      %v1522 = vpop.f32.mrf.mxu0
      %1523 = vdwg.mxu0
      %v1525 = vsel %vm1247, %v1118, 0
      %v1528 = vsel %vm1247, %v1174, 0
      %1530 = vmatprep.subr.bf16.mxu0 0
      %1531 = vmatpush1.bf16.xpose.msra.mxu0 0
      %1532 = vmatprep.subr.bf16.mxu0 0
      %1533 = vmatpush1.bf16.xpose.msra.mxu0 0
      %1534 = vmatprep.subr.bf16.mxu0 0
      %1535 = vmatpush1.bf16.xpose.msra.mxu0 0
      %1536 = vmatprep.subr.bf16.mxu0 0
      %1537 = vmatpush1.bf16.xpose.msra.mxu0 0
      %1538 = vmatprep.subr.bf16.mxu0 0
      %1539 = vmatpush1.bf16.xpose.msra.mxu0 0
      %1540 = vmatprep.subr.bf16.mxu0 0
      %1541 = vmatpush1.bf16.xpose.msra.mxu0 0
      %1542 = vmatprep.subr.bf16.mxu0 0
      %1543 = vmatpush1.bf16.xpose.msra.mxu0 0
      %1544 = vmatprep.subr.bf16.mxu0 0
      %1545 = vmatpush1.bf16.xpose.msra.mxu0 %v1528
      %1546 = vmatprep.subr.bf16.mxu0 0
      %1547 = vmatpush2.bf16.xpose.msra.mxu0 0
      %1548 = vmatprep.subr.bf16.mxu0 0
      %1549 = vmatpush2.bf16.xpose.msra.mxu0 0
      %1550 = vmatprep.subr.bf16.mxu0 0
      %1551 = vmatpush2.bf16.xpose.msra.mxu0 0
      %1552 = vmatprep.subr.bf16.mxu0 0
      %1553 = vmatpush2.bf16.xpose.msra.mxu0 0
      %1554 = vmatprep.subr.bf16.mxu0 0
      %1555 = vmatpush2.bf16.xpose.msra.mxu0 0
      %1556 = vmatprep.subr.bf16.mxu0 0
      %1557 = vmatpush2.bf16.xpose.msra.mxu0 0
      %1558 = vmatprep.subr.bf16.mxu0 0
      %1559 = vmatpush2.bf16.xpose.msra.mxu0 0
      %1560 = vmatprep.subr.bf16.mxu0 0
      %1561 = vmatpush2.bf16.xpose.msra.mxu0 0
      %1562 = vmatprep.mubr.bf16.mxu0 0
      %1563 = vmatmul.mubr.bf16.gmra.mxu0 %v1525
      %v1564 = vpop.f32.mrf.mxu0
      %v1565 = vadd.f32 %v1245, %v1564
      %v1566 = vpop.f32.mrf.mxu0
      %v1567 = vpop.f32.mrf.mxu0
      %v1568 = vpop.f32.mrf.mxu0
      %1569 = vdwg.mxu0
      %v1571 = vsel %vm1247, %v1119, 0
      %v1574 = vsel %vm1247, %v1175, 0
      %1576 = vmatprep.subr.bf16.mxu0 0
      %1577 = vmatpush1.bf16.xpose.msra.mxu0 0
      %1578 = vmatprep.subr.bf16.mxu0 0
      %1579 = vmatpush1.bf16.xpose.msra.mxu0 0
      %1580 = vmatprep.subr.bf16.mxu0 0
      %1581 = vmatpush1.bf16.xpose.msra.mxu0 0
      %1582 = vmatprep.subr.bf16.mxu0 0
      %1583 = vmatpush1.bf16.xpose.msra.mxu0 0
      %1584 = vmatprep.subr.bf16.mxu0 0
      %1585 = vmatpush1.bf16.xpose.msra.mxu0 0
      %1586 = vmatprep.subr.bf16.mxu0 0
      %1587 = vmatpush1.bf16.xpose.msra.mxu0 0
      %1588 = vmatprep.subr.bf16.mxu0 0
      %1589 = vmatpush1.bf16.xpose.msra.mxu0 0
      %1590 = vmatprep.subr.bf16.mxu0 0
      %1591 = vmatpush1.bf16.xpose.msra.mxu0 %v1574
      %1592 = vmatprep.subr.bf16.mxu0 0
      %1593 = vmatpush2.bf16.xpose.msra.mxu0 0
      %1594 = vmatprep.subr.bf16.mxu0 0
      %1595 = vmatpush2.bf16.xpose.msra.mxu0 0
      %1596 = vmatprep.subr.bf16.mxu0 0
      %1597 = vmatpush2.bf16.xpose.msra.mxu0 0
      %1598 = vmatprep.subr.bf16.mxu0 0
      %1599 = vmatpush2.bf16.xpose.msra.mxu0 0
      %1600 = vmatprep.subr.bf16.mxu0 0
      %1601 = vmatpush2.bf16.xpose.msra.mxu0 0
      %1602 = vmatprep.subr.bf16.mxu0 0
      %1603 = vmatpush2.bf16.xpose.msra.mxu0 0
      %1604 = vmatprep.subr.bf16.mxu0 0
      %1605 = vmatpush2.bf16.xpose.msra.mxu0 0
      %1606 = vmatprep.subr.bf16.mxu0 0
      %1607 = vmatpush2.bf16.xpose.msra.mxu0 0
      %1608 = vmatprep.mubr.bf16.mxu0 0
      %1609 = vmatmul.mubr.bf16.gmra.mxu0 %v1571
      %v1610 = vpop.f32.mrf.mxu0
      %v1611 = vadd.f32 %v1245, %v1610
      %v1612 = vpop.f32.mrf.mxu0
      %v1613 = vpop.f32.mrf.mxu0
      %v1614 = vpop.f32.mrf.mxu0
      %1615 = vdwg.mxu0
      %v1617 = vsel %vm1247, %v1120, 0
      %v1620 = vsel %vm1247, %v1176, 0
      %1622 = vmatprep.subr.bf16.mxu0 0
      %1623 = vmatpush1.bf16.xpose.msra.mxu0 0
      %1624 = vmatprep.subr.bf16.mxu0 0
      %1625 = vmatpush1.bf16.xpose.msra.mxu0 0
      %1626 = vmatprep.subr.bf16.mxu0 0
      %1627 = vmatpush1.bf16.xpose.msra.mxu0 0
      %1628 = vmatprep.subr.bf16.mxu0 0
      %1629 = vmatpush1.bf16.xpose.msra.mxu0 0
      %1630 = vmatprep.subr.bf16.mxu0 0
      %1631 = vmatpush1.bf16.xpose.msra.mxu0 0
      %1632 = vmatprep.subr.bf16.mxu0 0
      %1633 = vmatpush1.bf16.xpose.msra.mxu0 0
      %1634 = vmatprep.subr.bf16.mxu0 0
      %1635 = vmatpush1.bf16.xpose.msra.mxu0 0
      %1636 = vmatprep.subr.bf16.mxu0 0
      %1637 = vmatpush1.bf16.xpose.msra.mxu0 %v1620
      %1638 = vmatprep.subr.bf16.mxu0 0
      %1639 = vmatpush2.bf16.xpose.msra.mxu0 0
      %1640 = vmatprep.subr.bf16.mxu0 0
      %1641 = vmatpush2.bf16.xpose.msra.mxu0 0
      %1642 = vmatprep.subr.bf16.mxu0 0
      %1643 = vmatpush2.bf16.xpose.msra.mxu0 0
      %1644 = vmatprep.subr.bf16.mxu0 0
      %1645 = vmatpush2.bf16.xpose.msra.mxu0 0
      %1646 = vmatprep.subr.bf16.mxu0 0
      %1647 = vmatpush2.bf16.xpose.msra.mxu0 0
      %1648 = vmatprep.subr.bf16.mxu0 0
      %1649 = vmatpush2.bf16.xpose.msra.mxu0 0
      %1650 = vmatprep.subr.bf16.mxu0 0
      %1651 = vmatpush2.bf16.xpose.msra.mxu0 0
      %1652 = vmatprep.subr.bf16.mxu0 0
      %1653 = vmatpush2.bf16.xpose.msra.mxu0 0
      %1654 = vmatprep.mubr.bf16.mxu0 0
      %1655 = vmatmul.mubr.bf16.gmra.mxu0 %v1617
      %v1656 = vpop.f32.mrf.mxu0
      %v1657 = vadd.f32 %v1245, %v1656
      %v1658 = vpop.f32.mrf.mxu0
      %v1659 = vpop.f32.mrf.mxu0
      %v1660 = vpop.f32.mrf.mxu0
      %1661 = vdwg.mxu0
      %v1663 = vsel %vm1247, %v1121, 0
      %v1666 = vsel %vm1247, %v1177, 0
      %1668 = vmatprep.subr.bf16.mxu0 0
      %1669 = vmatpush1.bf16.xpose.msra.mxu0 0
      %1670 = vmatprep.subr.bf16.mxu0 0
      %1671 = vmatpush1.bf16.xpose.msra.mxu0 0
      %1672 = vmatprep.subr.bf16.mxu0 0
      %1673 = vmatpush1.bf16.xpose.msra.mxu0 0
      %1674 = vmatprep.subr.bf16.mxu0 0
      %1675 = vmatpush1.bf16.xpose.msra.mxu0 0
      %1676 = vmatprep.subr.bf16.mxu0 0
      %1677 = vmatpush1.bf16.xpose.msra.mxu0 0
      %1678 = vmatprep.subr.bf16.mxu0 0
      %1679 = vmatpush1.bf16.xpose.msra.mxu0 0
      %1680 = vmatprep.subr.bf16.mxu0 0
      %1681 = vmatpush1.bf16.xpose.msra.mxu0 0
      %1682 = vmatprep.subr.bf16.mxu0 0
      %1683 = vmatpush1.bf16.xpose.msra.mxu0 %v1666
      %1684 = vmatprep.subr.bf16.mxu0 0
      %1685 = vmatpush2.bf16.xpose.msra.mxu0 0
      %1686 = vmatprep.subr.bf16.mxu0 0
      %1687 = vmatpush2.bf16.xpose.msra.mxu0 0
      %1688 = vmatprep.subr.bf16.mxu0 0
      %1689 = vmatpush2.bf16.xpose.msra.mxu0 0
      %1690 = vmatprep.subr.bf16.mxu0 0
      %1691 = vmatpush2.bf16.xpose.msra.mxu0 0
      %1692 = vmatprep.subr.bf16.mxu0 0
      %1693 = vmatpush2.bf16.xpose.msra.mxu0 0
      %1694 = vmatprep.subr.bf16.mxu0 0
      %1695 = vmatpush2.bf16.xpose.msra.mxu0 0
      %1696 = vmatprep.subr.bf16.mxu0 0
      %1697 = vmatpush2.bf16.xpose.msra.mxu0 0
      %1698 = vmatprep.subr.bf16.mxu0 0
      %1699 = vmatpush2.bf16.xpose.msra.mxu0 0
      %1700 = vmatprep.mubr.bf16.mxu0 0
      %1701 = vmatmul.mubr.bf16.gmra.mxu0 %v1663
      %v1702 = vpop.f32.mrf.mxu0
      %v1703 = vadd.f32 %v1245, %v1702
      %v1704 = vpop.f32.mrf.mxu0
      %v1705 = vpop.f32.mrf.mxu0
      %v1706 = vpop.f32.mrf.mxu0
      %1707 = vdwg.mxu0
      %v1709 = vsel %vm1247, %v1122, 0
      %v1712 = vsel %vm1247, %v1178, 0
      %1714 = vmatprep.subr.bf16.mxu0 0
      %1715 = vmatpush1.bf16.xpose.msra.mxu0 0
      %1716 = vmatprep.subr.bf16.mxu0 0
      %1717 = vmatpush1.bf16.xpose.msra.mxu0 0
      %1718 = vmatprep.subr.bf16.mxu0 0
      %1719 = vmatpush1.bf16.xpose.msra.mxu0 0
      %1720 = vmatprep.subr.bf16.mxu0 0
      %1721 = vmatpush1.bf16.xpose.msra.mxu0 0
      %1722 = vmatprep.subr.bf16.mxu0 0
      %1723 = vmatpush1.bf16.xpose.msra.mxu0 0
      %1724 = vmatprep.subr.bf16.mxu0 0
      %1725 = vmatpush1.bf16.xpose.msra.mxu0 0
      %1726 = vmatprep.subr.bf16.mxu0 0
      %1727 = vmatpush1.bf16.xpose.msra.mxu0 0
      %1728 = vmatprep.subr.bf16.mxu0 0
      %1729 = vmatpush1.bf16.xpose.msra.mxu0 %v1712
      %1730 = vmatprep.subr.bf16.mxu0 0
      %1731 = vmatpush2.bf16.xpose.msra.mxu0 0
      %1732 = vmatprep.subr.bf16.mxu0 0
      %1733 = vmatpush2.bf16.xpose.msra.mxu0 0
      %1734 = vmatprep.subr.bf16.mxu0 0
      %1735 = vmatpush2.bf16.xpose.msra.mxu0 0
      %1736 = vmatprep.subr.bf16.mxu0 0
      %1737 = vmatpush2.bf16.xpose.msra.mxu0 0
      %1738 = vmatprep.subr.bf16.mxu0 0
      %1739 = vmatpush2.bf16.xpose.msra.mxu0 0
      %1740 = vmatprep.subr.bf16.mxu0 0
      %1741 = vmatpush2.bf16.xpose.msra.mxu0 0
      %1742 = vmatprep.subr.bf16.mxu0 0
      %1743 = vmatpush2.bf16.xpose.msra.mxu0 0
      %1744 = vmatprep.subr.bf16.mxu0 0
      %1745 = vmatpush2.bf16.xpose.msra.mxu0 0
      %1746 = vmatprep.mubr.bf16.mxu0 0
      %1747 = vmatmul.mubr.bf16.gmra.mxu0 %v1709
      %v1748 = vpop.f32.mrf.mxu0
      %v1749 = vadd.f32 %v1245, %v1748
      %v1750 = vpop.f32.mrf.mxu0
      %v1751 = vpop.f32.mrf.mxu0
      %v1752 = vpop.f32.mrf.mxu0
      %1753 = vdwg.mxu0
      %v1755 = vsel %vm1247, %v1123, 0
      %v1758 = vsel %vm1247, %v1179, 0
      %1760 = vmatprep.subr.bf16.mxu0 0
      %1761 = vmatpush1.bf16.xpose.msra.mxu0 0
      %1762 = vmatprep.subr.bf16.mxu0 0
      %1763 = vmatpush1.bf16.xpose.msra.mxu0 0
      %1764 = vmatprep.subr.bf16.mxu0 0
      %1765 = vmatpush1.bf16.xpose.msra.mxu0 0
      %1766 = vmatprep.subr.bf16.mxu0 0
      %1767 = vmatpush1.bf16.xpose.msra.mxu0 0
      %1768 = vmatprep.subr.bf16.mxu0 0
      %1769 = vmatpush1.bf16.xpose.msra.mxu0 0
      %1770 = vmatprep.subr.bf16.mxu0 0
      %1771 = vmatpush1.bf16.xpose.msra.mxu0 0
      %1772 = vmatprep.subr.bf16.mxu0 0
      %1773 = vmatpush1.bf16.xpose.msra.mxu0 0
      %1774 = vmatprep.subr.bf16.mxu0 0
      %1775 = vmatpush1.bf16.xpose.msra.mxu0 %v1758
      %1776 = vmatprep.subr.bf16.mxu0 0
      %1777 = vmatpush2.bf16.xpose.msra.mxu0 0
      %1778 = vmatprep.subr.bf16.mxu0 0
      %1779 = vmatpush2.bf16.xpose.msra.mxu0 0
      %1780 = vmatprep.subr.bf16.mxu0 0
      %1781 = vmatpush2.bf16.xpose.msra.mxu0 0
      %1782 = vmatprep.subr.bf16.mxu0 0
      %1783 = vmatpush2.bf16.xpose.msra.mxu0 0
      %1784 = vmatprep.subr.bf16.mxu0 0
      %1785 = vmatpush2.bf16.xpose.msra.mxu0 0
      %1786 = vmatprep.subr.bf16.mxu0 0
      %1787 = vmatpush2.bf16.xpose.msra.mxu0 0
      %1788 = vmatprep.subr.bf16.mxu0 0
      %1789 = vmatpush2.bf16.xpose.msra.mxu0 0
      %1790 = vmatprep.subr.bf16.mxu0 0
      %1791 = vmatpush2.bf16.xpose.msra.mxu0 0
      %1792 = vmatprep.mubr.bf16.mxu0 0
      %1793 = vmatmul.mubr.bf16.gmra.mxu0 %v1755
      %v1794 = vpop.f32.mrf.mxu0
      %v1795 = vadd.f32 %v1245, %v1794
      %v1796 = vpop.f32.mrf.mxu0
      %v1797 = vpop.f32.mrf.mxu0
      %v1798 = vpop.f32.mrf.mxu0
      %1799 = vdwg.mxu0
      %v1801 = vsel %vm1247, %v1124, 0
      %v1804 = vsel %vm1247, %v1180, 0
      %1806 = vmatprep.subr.bf16.mxu0 0
      %1807 = vmatpush1.bf16.xpose.msra.mxu0 0
      %1808 = vmatprep.subr.bf16.mxu0 0
      %1809 = vmatpush1.bf16.xpose.msra.mxu0 0
      %1810 = vmatprep.subr.bf16.mxu0 0
      %1811 = vmatpush1.bf16.xpose.msra.mxu0 0
      %1812 = vmatprep.subr.bf16.mxu0 0
      %1813 = vmatpush1.bf16.xpose.msra.mxu0 0
      %1814 = vmatprep.subr.bf16.mxu0 0
      %1815 = vmatpush1.bf16.xpose.msra.mxu0 0
      %1816 = vmatprep.subr.bf16.mxu0 0
      %1817 = vmatpush1.bf16.xpose.msra.mxu0 0
      %1818 = vmatprep.subr.bf16.mxu0 0
      %1819 = vmatpush1.bf16.xpose.msra.mxu0 0
      %1820 = vmatprep.subr.bf16.mxu0 0
      %1821 = vmatpush1.bf16.xpose.msra.mxu0 %v1804
      %1822 = vmatprep.subr.bf16.mxu0 0
      %1823 = vmatpush2.bf16.xpose.msra.mxu0 0
      %1824 = vmatprep.subr.bf16.mxu0 0
      %1825 = vmatpush2.bf16.xpose.msra.mxu0 0
      %1826 = vmatprep.subr.bf16.mxu0 0
      %1827 = vmatpush2.bf16.xpose.msra.mxu0 0
      %1828 = vmatprep.subr.bf16.mxu0 0
      %1829 = vmatpush2.bf16.xpose.msra.mxu0 0
      %1830 = vmatprep.subr.bf16.mxu0 0
      %1831 = vmatpush2.bf16.xpose.msra.mxu0 0
      %1832 = vmatprep.subr.bf16.mxu0 0
      %1833 = vmatpush2.bf16.xpose.msra.mxu0 0
      %1834 = vmatprep.subr.bf16.mxu0 0
      %1835 = vmatpush2.bf16.xpose.msra.mxu0 0
      %1836 = vmatprep.subr.bf16.mxu0 0
      %1837 = vmatpush2.bf16.xpose.msra.mxu0 0
      %1838 = vmatprep.mubr.bf16.mxu0 0
      %1839 = vmatmul.mubr.bf16.gmra.mxu0 %v1801
      %v1840 = vpop.f32.mrf.mxu0
      %v1841 = vadd.f32 %v1245, %v1840
      %v1842 = vpop.f32.mrf.mxu0
      %v1843 = vpop.f32.mrf.mxu0
      %v1844 = vpop.f32.mrf.mxu0
      %1845 = vdwg.mxu0
      %v1847 = vsel %vm1247, %v1125, 0
      %v1850 = vsel %vm1247, %v1181, 0
      %1852 = vmatprep.subr.bf16.mxu0 0
      %1853 = vmatpush1.bf16.xpose.msra.mxu0 0
      %1854 = vmatprep.subr.bf16.mxu0 0
      %1855 = vmatpush1.bf16.xpose.msra.mxu0 0
      %1856 = vmatprep.subr.bf16.mxu0 0
      %1857 = vmatpush1.bf16.xpose.msra.mxu0 0
      %1858 = vmatprep.subr.bf16.mxu0 0
      %1859 = vmatpush1.bf16.xpose.msra.mxu0 0
      %1860 = vmatprep.subr.bf16.mxu0 0
      %1861 = vmatpush1.bf16.xpose.msra.mxu0 0
      %1862 = vmatprep.subr.bf16.mxu0 0
      %1863 = vmatpush1.bf16.xpose.msra.mxu0 0
      %1864 = vmatprep.subr.bf16.mxu0 0
      %1865 = vmatpush1.bf16.xpose.msra.mxu0 0
      %1866 = vmatprep.subr.bf16.mxu0 0
      %1867 = vmatpush1.bf16.xpose.msra.mxu0 %v1850
      %1868 = vmatprep.subr.bf16.mxu0 0
      %1869 = vmatpush2.bf16.xpose.msra.mxu0 0
      %1870 = vmatprep.subr.bf16.mxu0 0
      %1871 = vmatpush2.bf16.xpose.msra.mxu0 0
      %1872 = vmatprep.subr.bf16.mxu0 0
      %1873 = vmatpush2.bf16.xpose.msra.mxu0 0
      %1874 = vmatprep.subr.bf16.mxu0 0
      %1875 = vmatpush2.bf16.xpose.msra.mxu0 0
      %1876 = vmatprep.subr.bf16.mxu0 0
      %1877 = vmatpush2.bf16.xpose.msra.mxu0 0
      %1878 = vmatprep.subr.bf16.mxu0 0
      %1879 = vmatpush2.bf16.xpose.msra.mxu0 0
      %1880 = vmatprep.subr.bf16.mxu0 0
      %1881 = vmatpush2.bf16.xpose.msra.mxu0 0
      %1882 = vmatprep.subr.bf16.mxu0 0
      %1883 = vmatpush2.bf16.xpose.msra.mxu0 0
      %1884 = vmatprep.mubr.bf16.mxu0 0
      %1885 = vmatmul.mubr.bf16.gmra.mxu0 %v1847
      %v1886 = vpop.f32.mrf.mxu0
      %v1887 = vadd.f32 %v1245, %v1886
      %v1888 = vpop.f32.mrf.mxu0
      %v1889 = vpop.f32.mrf.mxu0
      %v1890 = vpop.f32.mrf.mxu0
      %1891 = vdwg.mxu0
      %v1893 = vsel %vm1247, %v1126, 0
      %v1896 = vsel %vm1247, %v1182, 0
      %1898 = vmatprep.subr.bf16.mxu0 0
      %1899 = vmatpush1.bf16.xpose.msra.mxu0 0
      %1900 = vmatprep.subr.bf16.mxu0 0
      %1901 = vmatpush1.bf16.xpose.msra.mxu0 0
      %1902 = vmatprep.subr.bf16.mxu0 0
      %1903 = vmatpush1.bf16.xpose.msra.mxu0 0
      %1904 = vmatprep.subr.bf16.mxu0 0
      %1905 = vmatpush1.bf16.xpose.msra.mxu0 0
      %1906 = vmatprep.subr.bf16.mxu0 0
      %1907 = vmatpush1.bf16.xpose.msra.mxu0 0
      %1908 = vmatprep.subr.bf16.mxu0 0
      %1909 = vmatpush1.bf16.xpose.msra.mxu0 0
      %1910 = vmatprep.subr.bf16.mxu0 0
      %1911 = vmatpush1.bf16.xpose.msra.mxu0 0
      %1912 = vmatprep.subr.bf16.mxu0 0
      %1913 = vmatpush1.bf16.xpose.msra.mxu0 %v1896
      %1914 = vmatprep.subr.bf16.mxu0 0
      %1915 = vmatpush2.bf16.xpose.msra.mxu0 0
      %1916 = vmatprep.subr.bf16.mxu0 0
      %1917 = vmatpush2.bf16.xpose.msra.mxu0 0
      %1918 = vmatprep.subr.bf16.mxu0 0
      %1919 = vmatpush2.bf16.xpose.msra.mxu0 0
      %1920 = vmatprep.subr.bf16.mxu0 0
      %1921 = vmatpush2.bf16.xpose.msra.mxu0 0
      %1922 = vmatprep.subr.bf16.mxu0 0
      %1923 = vmatpush2.bf16.xpose.msra.mxu0 0
      %1924 = vmatprep.subr.bf16.mxu0 0
      %1925 = vmatpush2.bf16.xpose.msra.mxu0 0
      %1926 = vmatprep.subr.bf16.mxu0 0
      %1927 = vmatpush2.bf16.xpose.msra.mxu0 0
      %1928 = vmatprep.subr.bf16.mxu0 0
      %1929 = vmatpush2.bf16.xpose.msra.mxu0 0
      %1930 = vmatprep.mubr.bf16.mxu0 0
      %1931 = vmatmul.mubr.bf16.gmra.mxu0 %v1893
      %v1932 = vpop.f32.mrf.mxu0
      %v1933 = vadd.f32 %v1245, %v1932
      %v1934 = vpop.f32.mrf.mxu0
      %v1935 = vpop.f32.mrf.mxu0
      %v1936 = vpop.f32.mrf.mxu0
      %1937 = vdwg.mxu0
      %v1939 = vsel %vm1247, %v1127, 0
      %v1942 = vsel %vm1247, %v1183, 0
      %1944 = vmatprep.subr.bf16.mxu0 0
      %1945 = vmatpush1.bf16.xpose.msra.mxu0 0
      %1946 = vmatprep.subr.bf16.mxu0 0
      %1947 = vmatpush1.bf16.xpose.msra.mxu0 0
      %1948 = vmatprep.subr.bf16.mxu0 0
      %1949 = vmatpush1.bf16.xpose.msra.mxu0 0
      %1950 = vmatprep.subr.bf16.mxu0 0
      %1951 = vmatpush1.bf16.xpose.msra.mxu0 0
      %1952 = vmatprep.subr.bf16.mxu0 0
      %1953 = vmatpush1.bf16.xpose.msra.mxu0 0
      %1954 = vmatprep.subr.bf16.mxu0 0
      %1955 = vmatpush1.bf16.xpose.msra.mxu0 0
      %1956 = vmatprep.subr.bf16.mxu0 0
      %1957 = vmatpush1.bf16.xpose.msra.mxu0 0
      %1958 = vmatprep.subr.bf16.mxu0 0
      %1959 = vmatpush1.bf16.xpose.msra.mxu0 %v1942
      %1960 = vmatprep.subr.bf16.mxu0 0
      %1961 = vmatpush2.bf16.xpose.msra.mxu0 0
      %1962 = vmatprep.subr.bf16.mxu0 0
      %1963 = vmatpush2.bf16.xpose.msra.mxu0 0
      %1964 = vmatprep.subr.bf16.mxu0 0
      %1965 = vmatpush2.bf16.xpose.msra.mxu0 0
      %1966 = vmatprep.subr.bf16.mxu0 0
      %1967 = vmatpush2.bf16.xpose.msra.mxu0 0
      %1968 = vmatprep.subr.bf16.mxu0 0
      %1969 = vmatpush2.bf16.xpose.msra.mxu0 0
      %1970 = vmatprep.subr.bf16.mxu0 0
      %1971 = vmatpush2.bf16.xpose.msra.mxu0 0
      %1972 = vmatprep.subr.bf16.mxu0 0
      %1973 = vmatpush2.bf16.xpose.msra.mxu0 0
      %1974 = vmatprep.subr.bf16.mxu0 0
      %1975 = vmatpush2.bf16.xpose.msra.mxu0 0
      %1976 = vmatprep.mubr.bf16.mxu0 0
      %1977 = vmatmul.mubr.bf16.gmra.mxu0 %v1939
      %v1978 = vpop.f32.mrf.mxu0
      %v1979 = vadd.f32 %v1245, %v1978
      %v1980 = vpop.f32.mrf.mxu0
      %v1981 = vpop.f32.mrf.mxu0
      %v1982 = vpop.f32.mrf.mxu0
      %1983 = vdwg.mxu0
      %vm1984 = vcmask 64512
      %v1985 = vsel %vm1984, %v1289, -inf
      %1986 = vmax.xlane.f32.xlu0 %v1985
      %v1987 = vpop.xlane.xlu0 %1986
      %v1988 = vsel %vm1984, %v1335, -inf
      %1989 = vmax.xlane.f32.xlu0 %v1988
      %v1990 = vpop.xlane.xlu0 %1989
      %v1991 = vsel %vm1984, %v1381, -inf
      %1992 = vmax.xlane.f32.xlu0 %v1991
      %v1993 = vpop.xlane.xlu0 %1992
      %v1994 = vsel %vm1984, %v1427, -inf
      %1995 = vmax.xlane.f32.xlu0 %v1994
      %v1996 = vpop.xlane.xlu0 %1995
      %v1997 = vsel %vm1984, %v1473, -inf
      %1998 = vmax.xlane.f32.xlu0 %v1997
      %v1999 = vpop.xlane.xlu0 %1998
      %v2000 = vsel %vm1984, %v1519, -inf
      %2001 = vmax.xlane.f32.xlu0 %v2000
      %v2002 = vpop.xlane.xlu0 %2001
      %v2003 = vsel %vm1984, %v1565, -inf
      %2004 = vmax.xlane.f32.xlu0 %v2003
      %v2005 = vpop.xlane.xlu0 %2004
      %v2006 = vsel %vm1984, %v1611, -inf
      %2007 = vmax.xlane.f32.xlu0 %v2006
      %v2008 = vpop.xlane.xlu0 %2007
      %v2009 = vsel %vm1984, %v1657, -inf
      %2010 = vmax.xlane.f32.xlu0 %v2009
      %v2011 = vpop.xlane.xlu0 %2010
      %v2012 = vsel %vm1984, %v1703, -inf
      %2013 = vmax.xlane.f32.xlu0 %v2012
      %v2014 = vpop.xlane.xlu0 %2013
      %v2015 = vsel %vm1984, %v1749, -inf
      %2016 = vmax.xlane.f32.xlu0 %v2015
      %v2017 = vpop.xlane.xlu0 %2016
      %v2018 = vsel %vm1984, %v1795, -inf
      %2019 = vmax.xlane.f32.xlu0 %v2018
      %v2020 = vpop.xlane.xlu0 %2019
      %v2021 = vsel %vm1984, %v1841, -inf
      %2022 = vmax.xlane.f32.xlu0 %v2021
      %v2023 = vpop.xlane.xlu0 %2022
      %v2024 = vsel %vm1984, %v1887, -inf
      %2025 = vmax.xlane.f32.xlu0 %v2024
      %v2026 = vpop.xlane.xlu0 %2025
      %v2027 = vsel %vm1984, %v1933, -inf
      %2028 = vmax.xlane.f32.xlu0 %v2027
      %v2029 = vpop.xlane.xlu0 %2028
      %v2030 = vsel %vm1984, %v1979, -inf
      %2031 = vmax.xlane.f32.xlu0 %v2030
      %v2032 = vpop.xlane.xlu0 %2031
      %v2033 = vsub.f32 %v1289, %v1987
      %v2034 = vsub.f32 %v1335, %v1990
      %v2035 = vsub.f32 %v1381, %v1993
      %v2036 = vsub.f32 %v1427, %v1996
      %v2037 = vsub.f32 %v1473, %v1999
      %v2038 = vsub.f32 %v1519, %v2002
      %v2039 = vsub.f32 %v1565, %v2005
      %v2040 = vsub.f32 %v1611, %v2008
      %v2041 = vsub.f32 %v1657, %v2011
      %v2042 = vsub.f32 %v1703, %v2014
      %v2043 = vsub.f32 %v1749, %v2017
      %v2044 = vsub.f32 %v1795, %v2020
      %v2045 = vsub.f32 %v1841, %v2023
      %v2046 = vsub.f32 %v1887, %v2026
      %v2047 = vsub.f32 %v1933, %v2029
      %v2048 = vsub.f32 %v1979, %v2032
      %v2049 = vmul.f32 %v2033, 1.442695
      %v2050 = vpow.pop %v2049
      %v2051 = vmul.f32 %v2034, 1.442695
      %v2052 = vpow.pop %v2051
      %v2053 = vmul.f32 %v2035, 1.442695
      %v2054 = vpow.pop %v2053
      %v2055 = vmul.f32 %v2036, 1.442695
      %v2056 = vpow.pop %v2055
      %v2057 = vmul.f32 %v2037, 1.442695
      %v2058 = vpow.pop %v2057
      %v2059 = vmul.f32 %v2038, 1.442695
      %v2060 = vpow.pop %v2059
      %v2061 = vmul.f32 %v2039, 1.442695
      %v2062 = vpow.pop %v2061
      %v2063 = vmul.f32 %v2040, 1.442695
      %v2064 = vpow.pop %v2063
      %v2065 = vmul.f32 %v2041, 1.442695
      %v2066 = vpow.pop %v2065
      %v2067 = vmul.f32 %v2042, 1.442695
      %v2068 = vpow.pop %v2067
      %v2069 = vmul.f32 %v2043, 1.442695
      %v2070 = vpow.pop %v2069
      %v2071 = vmul.f32 %v2044, 1.442695
      %v2072 = vpow.pop %v2071
      %v2073 = vmul.f32 %v2045, 1.442695
      %v2074 = vpow.pop %v2073
      %v2075 = vmul.f32 %v2046, 1.442695
      %v2076 = vpow.pop %v2075
      %v2077 = vmul.f32 %v2047, 1.442695
      %v2078 = vpow.pop %v2077
      %v2079 = vmul.f32 %v2048, 1.442695
      %v2080 = vpow.pop %v2079
      %v2081 = vsel %vm1984, %v2050, 0.0
      %2082 = vadd.xlane.f32.xlu0 %v2081
      %v2083 = vpop.xlane.xlu0 %2082
      %v2084 = vsel %vm1984, %v2052, 0.0
      %2085 = vadd.xlane.f32.xlu0 %v2084
      %v2086 = vpop.xlane.xlu0 %2085
      %v2087 = vsel %vm1984, %v2054, 0.0
      %2088 = vadd.xlane.f32.xlu0 %v2087
      %v2089 = vpop.xlane.xlu0 %2088
      %v2090 = vsel %vm1984, %v2056, 0.0
      %2091 = vadd.xlane.f32.xlu0 %v2090
      %v2092 = vpop.xlane.xlu0 %2091
      %v2093 = vsel %vm1984, %v2058, 0.0
      %2094 = vadd.xlane.f32.xlu0 %v2093
      %v2095 = vpop.xlane.xlu0 %2094
      %v2096 = vsel %vm1984, %v2060, 0.0
      %2097 = vadd.xlane.f32.xlu0 %v2096
      %v2098 = vpop.xlane.xlu0 %2097
      %v2099 = vsel %vm1984, %v2062, 0.0
      %2100 = vadd.xlane.f32.xlu0 %v2099
      %v2101 = vpop.xlane.xlu0 %2100
      %v2102 = vsel %vm1984, %v2064, 0.0
      %2103 = vadd.xlane.f32.xlu0 %v2102
      %v2104 = vpop.xlane.xlu0 %2103
      %v2105 = vsel %vm1984, %v2066, 0.0
      %2106 = vadd.xlane.f32.xlu0 %v2105
      %v2107 = vpop.xlane.xlu0 %2106
      %v2108 = vsel %vm1984, %v2068, 0.0
      %2109 = vadd.xlane.f32.xlu0 %v2108
      %v2110 = vpop.xlane.xlu0 %2109
      %v2111 = vsel %vm1984, %v2070, 0.0
      %2112 = vadd.xlane.f32.xlu0 %v2111
      %v2113 = vpop.xlane.xlu0 %2112
      %v2114 = vsel %vm1984, %v2072, 0.0
      %2115 = vadd.xlane.f32.xlu0 %v2114
      %v2116 = vpop.xlane.xlu0 %2115
      %v2117 = vsel %vm1984, %v2074, 0.0
      %2118 = vadd.xlane.f32.xlu0 %v2117
      %v2119 = vpop.xlane.xlu0 %2118
      %v2120 = vsel %vm1984, %v2076, 0.0
      %2121 = vadd.xlane.f32.xlu0 %v2120
      %v2122 = vpop.xlane.xlu0 %2121
      %v2123 = vsel %vm1984, %v2078, 0.0
      %2124 = vadd.xlane.f32.xlu0 %v2123
      %v2125 = vpop.xlane.xlu0 %2124
      %v2126 = vsel %vm1984, %v2080, 0.0
      %2127 = vadd.xlane.f32.xlu0 %v2126
      %v2128 = vpop.xlane.xlu0 %2127
      %v2129 = vrcp.pop %v2083
      %v2130 = vrcp.pop %v2086
      %v2131 = vrcp.pop %v2089
      %v2132 = vrcp.pop %v2092
      %v2133 = vrcp.pop %v2095
      %v2134 = vrcp.pop %v2098
      %v2135 = vrcp.pop %v2101
      %v2136 = vrcp.pop %v2104
      %v2137 = vrcp.pop %v2107
      %v2138 = vrcp.pop %v2110
      %v2139 = vrcp.pop %v2113
      %v2140 = vrcp.pop %v2116
      %v2141 = vrcp.pop %v2119
      %v2142 = vrcp.pop %v2122
      %v2143 = vrcp.pop %v2125
      %v2144 = vrcp.pop %v2128
      %v2145 = vmul.f32 %v2050, %v2129
      %v2146 = vmul.f32 %v2052, %v2130
      %v2147 = vmul.f32 %v2054, %v2131
      %v2148 = vmul.f32 %v2056, %v2132
      %v2149 = vmul.f32 %v2058, %v2133
      %v2150 = vmul.f32 %v2060, %v2134
      %v2151 = vmul.f32 %v2062, %v2135
      %v2152 = vmul.f32 %v2064, %v2136
      %v2153 = vmul.f32 %v2066, %v2137
      %v2154 = vmul.f32 %v2068, %v2138
      %v2155 = vmul.f32 %v2070, %v2139
      %v2156 = vmul.f32 %v2072, %v2140
      %v2157 = vmul.f32 %v2074, %v2141
      %v2158 = vmul.f32 %v2076, %v2142
      %v2159 = vmul.f32 %v2078, %v2143
      %v2160 = vmul.f32 %v2080, %v2144
      %v2161 = vpack.c.bf16 %v2145, %v2145
      %v2162 = vpack.c.bf16 %v2146, %v2146
      %v2163 = vpack.c.bf16 %v2147, %v2147
      %v2164 = vpack.c.bf16 %v2148, %v2148
      %v2165 = vpack.c.bf16 %v2149, %v2149
      %v2166 = vpack.c.bf16 %v2150, %v2150
      %v2167 = vpack.c.bf16 %v2151, %v2151
      %v2168 = vpack.c.bf16 %v2152, %v2152
      %v2169 = vpack.c.bf16 %v2153, %v2153
      %v2170 = vpack.c.bf16 %v2154, %v2154
      %v2171 = vpack.c.bf16 %v2155, %v2155
      %v2172 = vpack.c.bf16 %v2156, %v2156
      %v2173 = vpack.c.bf16 %v2157, %v2157
      %v2174 = vpack.c.bf16 %v2158, %v2158
      %v2175 = vpack.c.bf16 %v2159, %v2159
      %v2176 = vpack.c.bf16 %v2160, %v2160
      %v2178 = vsel %vm1984, %v2161, 0
      %vm2180 = vcmask 1043456
      %v2182 = vsel %vm2180, %v1224, 0
      %2184 = vmatprep.subr.bf16.mxu0 0
      %2185 = vmatpush1.bf16.msra.mxu0 0
      %2186 = vmatprep.subr.bf16.mxu0 0
      %2187 = vmatpush1.bf16.msra.mxu0 0
      %2188 = vmatprep.subr.bf16.mxu0 0
      %2189 = vmatpush1.bf16.msra.mxu0 0
      %2190 = vmatprep.subr.bf16.mxu0 0
      %2191 = vmatpush1.bf16.msra.mxu0 0
      %2192 = vmatprep.subr.bf16.mxu0 0
      %2193 = vmatpush1.bf16.msra.mxu0 0
      %2194 = vmatprep.subr.bf16.mxu0 0
      %2195 = vmatpush1.bf16.msra.mxu0 0
      %2196 = vmatprep.subr.bf16.mxu0 0
      %2197 = vmatpush1.bf16.msra.mxu0 0
      %2198 = vmatprep.subr.bf16.mxu0 0
      %2199 = vmatpush1.bf16.msra.mxu0 %v2182
      %2200 = vmatprep.subr.bf16.mxu0 0
      %2201 = vmatpush2.bf16.msra.mxu0 0
      %2202 = vmatprep.subr.bf16.mxu0 0
      %2203 = vmatpush2.bf16.msra.mxu0 0
      %2204 = vmatprep.subr.bf16.mxu0 0
      %2205 = vmatpush2.bf16.msra.mxu0 0
      %2206 = vmatprep.subr.bf16.mxu0 0
      %2207 = vmatpush2.bf16.msra.mxu0 0
      %2208 = vmatprep.subr.bf16.mxu0 0
      %2209 = vmatpush2.bf16.msra.mxu0 0
      %2210 = vmatprep.subr.bf16.mxu0 0
      %2211 = vmatpush2.bf16.msra.mxu0 0
      %2212 = vmatprep.subr.bf16.mxu0 0
      %2213 = vmatpush2.bf16.msra.mxu0 0
      %2214 = vmatprep.subr.bf16.mxu0 0
      %2215 = vmatpush2.bf16.msra.mxu0 0
      %2216 = vmatprep.mubr.bf16.mxu0 0
      %2217 = vmatmul.mubr.bf16.gmra.mxu0 %v2178
      %v2218 = vpop.f32.mrf.mxu0
      %v2219 = vadd.f32 0.0, %v2218
      %v2220 = vpop.f32.mrf.mxu0
      %v2221 = vpop.f32.mrf.mxu0
      %v2222 = vpop.f32.mrf.mxu0
      %2223 = vdwg.mxu0
      %v2225 = vsel %vm1984, %v2162, 0
      %v2228 = vsel %vm2180, %v1225, 0
      %2230 = vmatprep.subr.bf16.mxu0 0
      %2231 = vmatpush1.bf16.msra.mxu0 0
      %2232 = vmatprep.subr.bf16.mxu0 0
      %2233 = vmatpush1.bf16.msra.mxu0 0
      %2234 = vmatprep.subr.bf16.mxu0 0
      %2235 = vmatpush1.bf16.msra.mxu0 0
      %2236 = vmatprep.subr.bf16.mxu0 0
      %2237 = vmatpush1.bf16.msra.mxu0 0
      %2238 = vmatprep.subr.bf16.mxu0 0
      %2239 = vmatpush1.bf16.msra.mxu0 0
      %2240 = vmatprep.subr.bf16.mxu0 0
      %2241 = vmatpush1.bf16.msra.mxu0 0
      %2242 = vmatprep.subr.bf16.mxu0 0
      %2243 = vmatpush1.bf16.msra.mxu0 0
      %2244 = vmatprep.subr.bf16.mxu0 0
      %2245 = vmatpush1.bf16.msra.mxu0 %v2228
      %2246 = vmatprep.subr.bf16.mxu0 0
      %2247 = vmatpush2.bf16.msra.mxu0 0
      %2248 = vmatprep.subr.bf16.mxu0 0
      %2249 = vmatpush2.bf16.msra.mxu0 0
      %2250 = vmatprep.subr.bf16.mxu0 0
      %2251 = vmatpush2.bf16.msra.mxu0 0
      %2252 = vmatprep.subr.bf16.mxu0 0
      %2253 = vmatpush2.bf16.msra.mxu0 0
      %2254 = vmatprep.subr.bf16.mxu0 0
      %2255 = vmatpush2.bf16.msra.mxu0 0
      %2256 = vmatprep.subr.bf16.mxu0 0
      %2257 = vmatpush2.bf16.msra.mxu0 0
      %2258 = vmatprep.subr.bf16.mxu0 0
      %2259 = vmatpush2.bf16.msra.mxu0 0
      %2260 = vmatprep.subr.bf16.mxu0 0
      %2261 = vmatpush2.bf16.msra.mxu0 0
      %2262 = vmatprep.mubr.bf16.mxu0 0
      %2263 = vmatmul.mubr.bf16.gmra.mxu0 %v2225
      %v2264 = vpop.f32.mrf.mxu0
      %v2265 = vadd.f32 0.0, %v2264
      %v2266 = vpop.f32.mrf.mxu0
      %v2267 = vpop.f32.mrf.mxu0
      %v2268 = vpop.f32.mrf.mxu0
      %2269 = vdwg.mxu0
      %v2271 = vsel %vm1984, %v2163, 0
      %v2274 = vsel %vm2180, %v1226, 0
      %2276 = vmatprep.subr.bf16.mxu0 0
      %2277 = vmatpush1.bf16.msra.mxu0 0
      %2278 = vmatprep.subr.bf16.mxu0 0
      %2279 = vmatpush1.bf16.msra.mxu0 0
      %2280 = vmatprep.subr.bf16.mxu0 0
      %2281 = vmatpush1.bf16.msra.mxu0 0
      %2282 = vmatprep.subr.bf16.mxu0 0
      %2283 = vmatpush1.bf16.msra.mxu0 0
      %2284 = vmatprep.subr.bf16.mxu0 0
      %2285 = vmatpush1.bf16.msra.mxu0 0
      %2286 = vmatprep.subr.bf16.mxu0 0
      %2287 = vmatpush1.bf16.msra.mxu0 0
      %2288 = vmatprep.subr.bf16.mxu0 0
      %2289 = vmatpush1.bf16.msra.mxu0 0
      %2290 = vmatprep.subr.bf16.mxu0 0
      %2291 = vmatpush1.bf16.msra.mxu0 %v2274
      %2292 = vmatprep.subr.bf16.mxu0 0
      %2293 = vmatpush2.bf16.msra.mxu0 0
      %2294 = vmatprep.subr.bf16.mxu0 0
      %2295 = vmatpush2.bf16.msra.mxu0 0
      %2296 = vmatprep.subr.bf16.mxu0 0
      %2297 = vmatpush2.bf16.msra.mxu0 0
      %2298 = vmatprep.subr.bf16.mxu0 0
      %2299 = vmatpush2.bf16.msra.mxu0 0
      %2300 = vmatprep.subr.bf16.mxu0 0
      %2301 = vmatpush2.bf16.msra.mxu0 0
      %2302 = vmatprep.subr.bf16.mxu0 0
      %2303 = vmatpush2.bf16.msra.mxu0 0
      %2304 = vmatprep.subr.bf16.mxu0 0
      %2305 = vmatpush2.bf16.msra.mxu0 0
      %2306 = vmatprep.subr.bf16.mxu0 0
      %2307 = vmatpush2.bf16.msra.mxu0 0
      %2308 = vmatprep.mubr.bf16.mxu0 0
      %2309 = vmatmul.mubr.bf16.gmra.mxu0 %v2271
      %v2310 = vpop.f32.mrf.mxu0
      %v2311 = vadd.f32 0.0, %v2310
      %v2312 = vpop.f32.mrf.mxu0
      %v2313 = vpop.f32.mrf.mxu0
      %v2314 = vpop.f32.mrf.mxu0
      %2315 = vdwg.mxu0
      %v2317 = vsel %vm1984, %v2164, 0
      %v2320 = vsel %vm2180, %v1227, 0
      %2322 = vmatprep.subr.bf16.mxu0 0
      %2323 = vmatpush1.bf16.msra.mxu0 0
      %2324 = vmatprep.subr.bf16.mxu0 0
      %2325 = vmatpush1.bf16.msra.mxu0 0
      %2326 = vmatprep.subr.bf16.mxu0 0
      %2327 = vmatpush1.bf16.msra.mxu0 0
      %2328 = vmatprep.subr.bf16.mxu0 0
      %2329 = vmatpush1.bf16.msra.mxu0 0
      %2330 = vmatprep.subr.bf16.mxu0 0
      %2331 = vmatpush1.bf16.msra.mxu0 0
      %2332 = vmatprep.subr.bf16.mxu0 0
      %2333 = vmatpush1.bf16.msra.mxu0 0
      %2334 = vmatprep.subr.bf16.mxu0 0
      %2335 = vmatpush1.bf16.msra.mxu0 0
      %2336 = vmatprep.subr.bf16.mxu0 0
      %2337 = vmatpush1.bf16.msra.mxu0 %v2320
      %2338 = vmatprep.subr.bf16.mxu0 0
      %2339 = vmatpush2.bf16.msra.mxu0 0
      %2340 = vmatprep.subr.bf16.mxu0 0
      %2341 = vmatpush2.bf16.msra.mxu0 0
      %2342 = vmatprep.subr.bf16.mxu0 0
      %2343 = vmatpush2.bf16.msra.mxu0 0
      %2344 = vmatprep.subr.bf16.mxu0 0
      %2345 = vmatpush2.bf16.msra.mxu0 0
      %2346 = vmatprep.subr.bf16.mxu0 0
      %2347 = vmatpush2.bf16.msra.mxu0 0
      %2348 = vmatprep.subr.bf16.mxu0 0
      %2349 = vmatpush2.bf16.msra.mxu0 0
      %2350 = vmatprep.subr.bf16.mxu0 0
      %2351 = vmatpush2.bf16.msra.mxu0 0
      %2352 = vmatprep.subr.bf16.mxu0 0
      %2353 = vmatpush2.bf16.msra.mxu0 0
      %2354 = vmatprep.mubr.bf16.mxu0 0
      %2355 = vmatmul.mubr.bf16.gmra.mxu0 %v2317
      %v2356 = vpop.f32.mrf.mxu0
      %v2357 = vadd.f32 0.0, %v2356
      %v2358 = vpop.f32.mrf.mxu0
      %v2359 = vpop.f32.mrf.mxu0
      %v2360 = vpop.f32.mrf.mxu0
      %2361 = vdwg.mxu0
      %v2363 = vsel %vm1984, %v2165, 0
      %v2366 = vsel %vm2180, %v1228, 0
      %2368 = vmatprep.subr.bf16.mxu0 0
      %2369 = vmatpush1.bf16.msra.mxu0 0
      %2370 = vmatprep.subr.bf16.mxu0 0
      %2371 = vmatpush1.bf16.msra.mxu0 0
      %2372 = vmatprep.subr.bf16.mxu0 0
      %2373 = vmatpush1.bf16.msra.mxu0 0
      %2374 = vmatprep.subr.bf16.mxu0 0
      %2375 = vmatpush1.bf16.msra.mxu0 0
      %2376 = vmatprep.subr.bf16.mxu0 0
      %2377 = vmatpush1.bf16.msra.mxu0 0
      %2378 = vmatprep.subr.bf16.mxu0 0
      %2379 = vmatpush1.bf16.msra.mxu0 0
      %2380 = vmatprep.subr.bf16.mxu0 0
      %2381 = vmatpush1.bf16.msra.mxu0 0
      %2382 = vmatprep.subr.bf16.mxu0 0
      %2383 = vmatpush1.bf16.msra.mxu0 %v2366
      %2384 = vmatprep.subr.bf16.mxu0 0
      %2385 = vmatpush2.bf16.msra.mxu0 0
      %2386 = vmatprep.subr.bf16.mxu0 0
      %2387 = vmatpush2.bf16.msra.mxu0 0
      %2388 = vmatprep.subr.bf16.mxu0 0
      %2389 = vmatpush2.bf16.msra.mxu0 0
      %2390 = vmatprep.subr.bf16.mxu0 0
      %2391 = vmatpush2.bf16.msra.mxu0 0
      %2392 = vmatprep.subr.bf16.mxu0 0
      %2393 = vmatpush2.bf16.msra.mxu0 0
      %2394 = vmatprep.subr.bf16.mxu0 0
      %2395 = vmatpush2.bf16.msra.mxu0 0
      %2396 = vmatprep.subr.bf16.mxu0 0
      %2397 = vmatpush2.bf16.msra.mxu0 0
      %2398 = vmatprep.subr.bf16.mxu0 0
      %2399 = vmatpush2.bf16.msra.mxu0 0
      %2400 = vmatprep.mubr.bf16.mxu0 0
      %2401 = vmatmul.mubr.bf16.gmra.mxu0 %v2363
      %v2402 = vpop.f32.mrf.mxu0
      %v2403 = vadd.f32 0.0, %v2402
      %v2404 = vpop.f32.mrf.mxu0
      %v2405 = vpop.f32.mrf.mxu0
      %v2406 = vpop.f32.mrf.mxu0
      %2407 = vdwg.mxu0
      %v2409 = vsel %vm1984, %v2166, 0
      %v2412 = vsel %vm2180, %v1229, 0
      %2414 = vmatprep.subr.bf16.mxu0 0
      %2415 = vmatpush1.bf16.msra.mxu0 0
      %2416 = vmatprep.subr.bf16.mxu0 0
      %2417 = vmatpush1.bf16.msra.mxu0 0
      %2418 = vmatprep.subr.bf16.mxu0 0
      %2419 = vmatpush1.bf16.msra.mxu0 0
      %2420 = vmatprep.subr.bf16.mxu0 0
      %2421 = vmatpush1.bf16.msra.mxu0 0
      %2422 = vmatprep.subr.bf16.mxu0 0
      %2423 = vmatpush1.bf16.msra.mxu0 0
      %2424 = vmatprep.subr.bf16.mxu0 0
      %2425 = vmatpush1.bf16.msra.mxu0 0
      %2426 = vmatprep.subr.bf16.mxu0 0
      %2427 = vmatpush1.bf16.msra.mxu0 0
      %2428 = vmatprep.subr.bf16.mxu0 0
      %2429 = vmatpush1.bf16.msra.mxu0 %v2412
      %2430 = vmatprep.subr.bf16.mxu0 0
      %2431 = vmatpush2.bf16.msra.mxu0 0
      %2432 = vmatprep.subr.bf16.mxu0 0
      %2433 = vmatpush2.bf16.msra.mxu0 0
      %2434 = vmatprep.subr.bf16.mxu0 0
      %2435 = vmatpush2.bf16.msra.mxu0 0
      %2436 = vmatprep.subr.bf16.mxu0 0
      %2437 = vmatpush2.bf16.msra.mxu0 0
      %2438 = vmatprep.subr.bf16.mxu0 0
      %2439 = vmatpush2.bf16.msra.mxu0 0
      %2440 = vmatprep.subr.bf16.mxu0 0
      %2441 = vmatpush2.bf16.msra.mxu0 0
      %2442 = vmatprep.subr.bf16.mxu0 0
      %2443 = vmatpush2.bf16.msra.mxu0 0
      %2444 = vmatprep.subr.bf16.mxu0 0
      %2445 = vmatpush2.bf16.msra.mxu0 0
      %2446 = vmatprep.mubr.bf16.mxu0 0
      %2447 = vmatmul.mubr.bf16.gmra.mxu0 %v2409
      %v2448 = vpop.f32.mrf.mxu0
      %v2449 = vadd.f32 0.0, %v2448
      %v2450 = vpop.f32.mrf.mxu0
      %v2451 = vpop.f32.mrf.mxu0
      %v2452 = vpop.f32.mrf.mxu0
      %2453 = vdwg.mxu0
      %v2455 = vsel %vm1984, %v2167, 0
      %v2458 = vsel %vm2180, %v1230, 0
      %2460 = vmatprep.subr.bf16.mxu0 0
      %2461 = vmatpush1.bf16.msra.mxu0 0
      %2462 = vmatprep.subr.bf16.mxu0 0
      %2463 = vmatpush1.bf16.msra.mxu0 0
      %2464 = vmatprep.subr.bf16.mxu0 0
      %2465 = vmatpush1.bf16.msra.mxu0 0
      %2466 = vmatprep.subr.bf16.mxu0 0
      %2467 = vmatpush1.bf16.msra.mxu0 0
      %2468 = vmatprep.subr.bf16.mxu0 0
      %2469 = vmatpush1.bf16.msra.mxu0 0
      %2470 = vmatprep.subr.bf16.mxu0 0
      %2471 = vmatpush1.bf16.msra.mxu0 0
      %2472 = vmatprep.subr.bf16.mxu0 0
      %2473 = vmatpush1.bf16.msra.mxu0 0
      %2474 = vmatprep.subr.bf16.mxu0 0
      %2475 = vmatpush1.bf16.msra.mxu0 %v2458
      %2476 = vmatprep.subr.bf16.mxu0 0
      %2477 = vmatpush2.bf16.msra.mxu0 0
      %2478 = vmatprep.subr.bf16.mxu0 0
      %2479 = vmatpush2.bf16.msra.mxu0 0
      %2480 = vmatprep.subr.bf16.mxu0 0
      %2481 = vmatpush2.bf16.msra.mxu0 0
      %2482 = vmatprep.subr.bf16.mxu0 0
      %2483 = vmatpush2.bf16.msra.mxu0 0
      %2484 = vmatprep.subr.bf16.mxu0 0
      %2485 = vmatpush2.bf16.msra.mxu0 0
      %2486 = vmatprep.subr.bf16.mxu0 0
      %2487 = vmatpush2.bf16.msra.mxu0 0
      %2488 = vmatprep.subr.bf16.mxu0 0
      %2489 = vmatpush2.bf16.msra.mxu0 0
      %2490 = vmatprep.subr.bf16.mxu0 0
      %2491 = vmatpush2.bf16.msra.mxu0 0
      %2492 = vmatprep.mubr.bf16.mxu0 0
      %2493 = vmatmul.mubr.bf16.gmra.mxu0 %v2455
      %v2494 = vpop.f32.mrf.mxu0
      %v2495 = vadd.f32 0.0, %v2494
      %v2496 = vpop.f32.mrf.mxu0
      %v2497 = vpop.f32.mrf.mxu0
      %v2498 = vpop.f32.mrf.mxu0
      %2499 = vdwg.mxu0
      %v2501 = vsel %vm1984, %v2168, 0
      %v2504 = vsel %vm2180, %v1231, 0
      %2506 = vmatprep.subr.bf16.mxu0 0
      %2507 = vmatpush1.bf16.msra.mxu0 0
      %2508 = vmatprep.subr.bf16.mxu0 0
      %2509 = vmatpush1.bf16.msra.mxu0 0
      %2510 = vmatprep.subr.bf16.mxu0 0
      %2511 = vmatpush1.bf16.msra.mxu0 0
      %2512 = vmatprep.subr.bf16.mxu0 0
      %2513 = vmatpush1.bf16.msra.mxu0 0
      %2514 = vmatprep.subr.bf16.mxu0 0
      %2515 = vmatpush1.bf16.msra.mxu0 0
      %2516 = vmatprep.subr.bf16.mxu0 0
      %2517 = vmatpush1.bf16.msra.mxu0 0
      %2518 = vmatprep.subr.bf16.mxu0 0
      %2519 = vmatpush1.bf16.msra.mxu0 0
      %2520 = vmatprep.subr.bf16.mxu0 0
      %2521 = vmatpush1.bf16.msra.mxu0 %v2504
      %2522 = vmatprep.subr.bf16.mxu0 0
      %2523 = vmatpush2.bf16.msra.mxu0 0
      %2524 = vmatprep.subr.bf16.mxu0 0
      %2525 = vmatpush2.bf16.msra.mxu0 0
      %2526 = vmatprep.subr.bf16.mxu0 0
      %2527 = vmatpush2.bf16.msra.mxu0 0
      %2528 = vmatprep.subr.bf16.mxu0 0
      %2529 = vmatpush2.bf16.msra.mxu0 0
      %2530 = vmatprep.subr.bf16.mxu0 0
      %2531 = vmatpush2.bf16.msra.mxu0 0
      %2532 = vmatprep.subr.bf16.mxu0 0
      %2533 = vmatpush2.bf16.msra.mxu0 0
      %2534 = vmatprep.subr.bf16.mxu0 0
      %2535 = vmatpush2.bf16.msra.mxu0 0
      %2536 = vmatprep.subr.bf16.mxu0 0
      %2537 = vmatpush2.bf16.msra.mxu0 0
      %2538 = vmatprep.mubr.bf16.mxu0 0
      %2539 = vmatmul.mubr.bf16.gmra.mxu0 %v2501
      %v2540 = vpop.f32.mrf.mxu0
      %v2541 = vadd.f32 0.0, %v2540
      %v2542 = vpop.f32.mrf.mxu0
      %v2543 = vpop.f32.mrf.mxu0
      %v2544 = vpop.f32.mrf.mxu0
      %2545 = vdwg.mxu0
      %v2547 = vsel %vm1984, %v2169, 0
      %v2550 = vsel %vm2180, %v1232, 0
      %2552 = vmatprep.subr.bf16.mxu0 0
      %2553 = vmatpush1.bf16.msra.mxu0 0
      %2554 = vmatprep.subr.bf16.mxu0 0
      %2555 = vmatpush1.bf16.msra.mxu0 0
      %2556 = vmatprep.subr.bf16.mxu0 0
      %2557 = vmatpush1.bf16.msra.mxu0 0
      %2558 = vmatprep.subr.bf16.mxu0 0
      %2559 = vmatpush1.bf16.msra.mxu0 0
      %2560 = vmatprep.subr.bf16.mxu0 0
      %2561 = vmatpush1.bf16.msra.mxu0 0
      %2562 = vmatprep.subr.bf16.mxu0 0
      %2563 = vmatpush1.bf16.msra.mxu0 0
      %2564 = vmatprep.subr.bf16.mxu0 0
      %2565 = vmatpush1.bf16.msra.mxu0 0
      %2566 = vmatprep.subr.bf16.mxu0 0
      %2567 = vmatpush1.bf16.msra.mxu0 %v2550
      %2568 = vmatprep.subr.bf16.mxu0 0
      %2569 = vmatpush2.bf16.msra.mxu0 0
      %2570 = vmatprep.subr.bf16.mxu0 0
      %2571 = vmatpush2.bf16.msra.mxu0 0
      %2572 = vmatprep.subr.bf16.mxu0 0
      %2573 = vmatpush2.bf16.msra.mxu0 0
      %2574 = vmatprep.subr.bf16.mxu0 0
      %2575 = vmatpush2.bf16.msra.mxu0 0
      %2576 = vmatprep.subr.bf16.mxu0 0
      %2577 = vmatpush2.bf16.msra.mxu0 0
      %2578 = vmatprep.subr.bf16.mxu0 0
      %2579 = vmatpush2.bf16.msra.mxu0 0
      %2580 = vmatprep.subr.bf16.mxu0 0
      %2581 = vmatpush2.bf16.msra.mxu0 0
      %2582 = vmatprep.subr.bf16.mxu0 0
      %2583 = vmatpush2.bf16.msra.mxu0 0
      %2584 = vmatprep.mubr.bf16.mxu0 0
      %2585 = vmatmul.mubr.bf16.gmra.mxu0 %v2547
      %v2586 = vpop.f32.mrf.mxu0
      %v2587 = vadd.f32 0.0, %v2586
      %v2588 = vpop.f32.mrf.mxu0
      %v2589 = vpop.f32.mrf.mxu0
      %v2590 = vpop.f32.mrf.mxu0
      %2591 = vdwg.mxu0
      %v2593 = vsel %vm1984, %v2170, 0
      %v2596 = vsel %vm2180, %v1233, 0
      %2598 = vmatprep.subr.bf16.mxu0 0
      %2599 = vmatpush1.bf16.msra.mxu0 0
      %2600 = vmatprep.subr.bf16.mxu0 0
      %2601 = vmatpush1.bf16.msra.mxu0 0
      %2602 = vmatprep.subr.bf16.mxu0 0
      %2603 = vmatpush1.bf16.msra.mxu0 0
      %2604 = vmatprep.subr.bf16.mxu0 0
      %2605 = vmatpush1.bf16.msra.mxu0 0
      %2606 = vmatprep.subr.bf16.mxu0 0
      %2607 = vmatpush1.bf16.msra.mxu0 0
      %2608 = vmatprep.subr.bf16.mxu0 0
      %2609 = vmatpush1.bf16.msra.mxu0 0
      %2610 = vmatprep.subr.bf16.mxu0 0
      %2611 = vmatpush1.bf16.msra.mxu0 0
      %2612 = vmatprep.subr.bf16.mxu0 0
      %2613 = vmatpush1.bf16.msra.mxu0 %v2596
      %2614 = vmatprep.subr.bf16.mxu0 0
      %2615 = vmatpush2.bf16.msra.mxu0 0
      %2616 = vmatprep.subr.bf16.mxu0 0
      %2617 = vmatpush2.bf16.msra.mxu0 0
      %2618 = vmatprep.subr.bf16.mxu0 0
      %2619 = vmatpush2.bf16.msra.mxu0 0
      %2620 = vmatprep.subr.bf16.mxu0 0
      %2621 = vmatpush2.bf16.msra.mxu0 0
      %2622 = vmatprep.subr.bf16.mxu0 0
      %2623 = vmatpush2.bf16.msra.mxu0 0
      %2624 = vmatprep.subr.bf16.mxu0 0
      %2625 = vmatpush2.bf16.msra.mxu0 0
      %2626 = vmatprep.subr.bf16.mxu0 0
      %2627 = vmatpush2.bf16.msra.mxu0 0
      %2628 = vmatprep.subr.bf16.mxu0 0
      %2629 = vmatpush2.bf16.msra.mxu0 0
      %2630 = vmatprep.mubr.bf16.mxu0 0
      %2631 = vmatmul.mubr.bf16.gmra.mxu0 %v2593
      %v2632 = vpop.f32.mrf.mxu0
      %v2633 = vadd.f32 0.0, %v2632
      %v2634 = vpop.f32.mrf.mxu0
      %v2635 = vpop.f32.mrf.mxu0
      %v2636 = vpop.f32.mrf.mxu0
      %2637 = vdwg.mxu0
      %v2639 = vsel %vm1984, %v2171, 0
      %v2642 = vsel %vm2180, %v1234, 0
      %2644 = vmatprep.subr.bf16.mxu0 0
      %2645 = vmatpush1.bf16.msra.mxu0 0
      %2646 = vmatprep.subr.bf16.mxu0 0
      %2647 = vmatpush1.bf16.msra.mxu0 0
      %2648 = vmatprep.subr.bf16.mxu0 0
      %2649 = vmatpush1.bf16.msra.mxu0 0
      %2650 = vmatprep.subr.bf16.mxu0 0
      %2651 = vmatpush1.bf16.msra.mxu0 0
      %2652 = vmatprep.subr.bf16.mxu0 0
      %2653 = vmatpush1.bf16.msra.mxu0 0
      %2654 = vmatprep.subr.bf16.mxu0 0
      %2655 = vmatpush1.bf16.msra.mxu0 0
      %2656 = vmatprep.subr.bf16.mxu0 0
      %2657 = vmatpush1.bf16.msra.mxu0 0
      %2658 = vmatprep.subr.bf16.mxu0 0
      %2659 = vmatpush1.bf16.msra.mxu0 %v2642
      %2660 = vmatprep.subr.bf16.mxu0 0
      %2661 = vmatpush2.bf16.msra.mxu0 0
      %2662 = vmatprep.subr.bf16.mxu0 0
      %2663 = vmatpush2.bf16.msra.mxu0 0
      %2664 = vmatprep.subr.bf16.mxu0 0
      %2665 = vmatpush2.bf16.msra.mxu0 0
      %2666 = vmatprep.subr.bf16.mxu0 0
      %2667 = vmatpush2.bf16.msra.mxu0 0
      %2668 = vmatprep.subr.bf16.mxu0 0
      %2669 = vmatpush2.bf16.msra.mxu0 0
      %2670 = vmatprep.subr.bf16.mxu0 0
      %2671 = vmatpush2.bf16.msra.mxu0 0
      %2672 = vmatprep.subr.bf16.mxu0 0
      %2673 = vmatpush2.bf16.msra.mxu0 0
      %2674 = vmatprep.subr.bf16.mxu0 0
      %2675 = vmatpush2.bf16.msra.mxu0 0
      %2676 = vmatprep.mubr.bf16.mxu0 0
      %2677 = vmatmul.mubr.bf16.gmra.mxu0 %v2639
      %v2678 = vpop.f32.mrf.mxu0
      %v2679 = vadd.f32 0.0, %v2678
      %v2680 = vpop.f32.mrf.mxu0
      %v2681 = vpop.f32.mrf.mxu0
      %v2682 = vpop.f32.mrf.mxu0
      %2683 = vdwg.mxu0
      %v2685 = vsel %vm1984, %v2172, 0
      %v2688 = vsel %vm2180, %v1235, 0
      %2690 = vmatprep.subr.bf16.mxu0 0
      %2691 = vmatpush1.bf16.msra.mxu0 0
      %2692 = vmatprep.subr.bf16.mxu0 0
      %2693 = vmatpush1.bf16.msra.mxu0 0
      %2694 = vmatprep.subr.bf16.mxu0 0
      %2695 = vmatpush1.bf16.msra.mxu0 0
      %2696 = vmatprep.subr.bf16.mxu0 0
      %2697 = vmatpush1.bf16.msra.mxu0 0
      %2698 = vmatprep.subr.bf16.mxu0 0
      %2699 = vmatpush1.bf16.msra.mxu0 0
      %2700 = vmatprep.subr.bf16.mxu0 0
      %2701 = vmatpush1.bf16.msra.mxu0 0
      %2702 = vmatprep.subr.bf16.mxu0 0
      %2703 = vmatpush1.bf16.msra.mxu0 0
      %2704 = vmatprep.subr.bf16.mxu0 0
      %2705 = vmatpush1.bf16.msra.mxu0 %v2688
      %2706 = vmatprep.subr.bf16.mxu0 0
      %2707 = vmatpush2.bf16.msra.mxu0 0
      %2708 = vmatprep.subr.bf16.mxu0 0
      %2709 = vmatpush2.bf16.msra.mxu0 0
      %2710 = vmatprep.subr.bf16.mxu0 0
      %2711 = vmatpush2.bf16.msra.mxu0 0
      %2712 = vmatprep.subr.bf16.mxu0 0
      %2713 = vmatpush2.bf16.msra.mxu0 0
      %2714 = vmatprep.subr.bf16.mxu0 0
      %2715 = vmatpush2.bf16.msra.mxu0 0
      %2716 = vmatprep.subr.bf16.mxu0 0
      %2717 = vmatpush2.bf16.msra.mxu0 0
      %2718 = vmatprep.subr.bf16.mxu0 0
      %2719 = vmatpush2.bf16.msra.mxu0 0
      %2720 = vmatprep.subr.bf16.mxu0 0
      %2721 = vmatpush2.bf16.msra.mxu0 0
      %2722 = vmatprep.mubr.bf16.mxu0 0
      %2723 = vmatmul.mubr.bf16.gmra.mxu0 %v2685
      %v2724 = vpop.f32.mrf.mxu0
      %v2725 = vadd.f32 0.0, %v2724
      %v2726 = vpop.f32.mrf.mxu0
      %v2727 = vpop.f32.mrf.mxu0
      %v2728 = vpop.f32.mrf.mxu0
      %2729 = vdwg.mxu0
      %v2731 = vsel %vm1984, %v2173, 0
      %v2734 = vsel %vm2180, %v1236, 0
      %2736 = vmatprep.subr.bf16.mxu0 0
      %2737 = vmatpush1.bf16.msra.mxu0 0
      %2738 = vmatprep.subr.bf16.mxu0 0
      %2739 = vmatpush1.bf16.msra.mxu0 0
      %2740 = vmatprep.subr.bf16.mxu0 0
      %2741 = vmatpush1.bf16.msra.mxu0 0
      %2742 = vmatprep.subr.bf16.mxu0 0
      %2743 = vmatpush1.bf16.msra.mxu0 0
      %2744 = vmatprep.subr.bf16.mxu0 0
      %2745 = vmatpush1.bf16.msra.mxu0 0
      %2746 = vmatprep.subr.bf16.mxu0 0
      %2747 = vmatpush1.bf16.msra.mxu0 0
      %2748 = vmatprep.subr.bf16.mxu0 0
      %2749 = vmatpush1.bf16.msra.mxu0 0
      %2750 = vmatprep.subr.bf16.mxu0 0
      %2751 = vmatpush1.bf16.msra.mxu0 %v2734
      %2752 = vmatprep.subr.bf16.mxu0 0
      %2753 = vmatpush2.bf16.msra.mxu0 0
      %2754 = vmatprep.subr.bf16.mxu0 0
      %2755 = vmatpush2.bf16.msra.mxu0 0
      %2756 = vmatprep.subr.bf16.mxu0 0
      %2757 = vmatpush2.bf16.msra.mxu0 0
      %2758 = vmatprep.subr.bf16.mxu0 0
      %2759 = vmatpush2.bf16.msra.mxu0 0
      %2760 = vmatprep.subr.bf16.mxu0 0
      %2761 = vmatpush2.bf16.msra.mxu0 0
      %2762 = vmatprep.subr.bf16.mxu0 0
      %2763 = vmatpush2.bf16.msra.mxu0 0
      %2764 = vmatprep.subr.bf16.mxu0 0
      %2765 = vmatpush2.bf16.msra.mxu0 0
      %2766 = vmatprep.subr.bf16.mxu0 0
      %2767 = vmatpush2.bf16.msra.mxu0 0
      %2768 = vmatprep.mubr.bf16.mxu0 0
      %2769 = vmatmul.mubr.bf16.gmra.mxu0 %v2731
      %v2770 = vpop.f32.mrf.mxu0
      %v2771 = vadd.f32 0.0, %v2770
      %v2772 = vpop.f32.mrf.mxu0
      %v2773 = vpop.f32.mrf.mxu0
      %v2774 = vpop.f32.mrf.mxu0
      %2775 = vdwg.mxu0
      %v2777 = vsel %vm1984, %v2174, 0
      %v2780 = vsel %vm2180, %v1237, 0
      %2782 = vmatprep.subr.bf16.mxu0 0
      %2783 = vmatpush1.bf16.msra.mxu0 0
      %2784 = vmatprep.subr.bf16.mxu0 0
      %2785 = vmatpush1.bf16.msra.mxu0 0
      %2786 = vmatprep.subr.bf16.mxu0 0
      %2787 = vmatpush1.bf16.msra.mxu0 0
      %2788 = vmatprep.subr.bf16.mxu0 0
      %2789 = vmatpush1.bf16.msra.mxu0 0
      %2790 = vmatprep.subr.bf16.mxu0 0
      %2791 = vmatpush1.bf16.msra.mxu0 0
      %2792 = vmatprep.subr.bf16.mxu0 0
      %2793 = vmatpush1.bf16.msra.mxu0 0
      %2794 = vmatprep.subr.bf16.mxu0 0
      %2795 = vmatpush1.bf16.msra.mxu0 0
      %2796 = vmatprep.subr.bf16.mxu0 0
      %2797 = vmatpush1.bf16.msra.mxu0 %v2780
      %2798 = vmatprep.subr.bf16.mxu0 0
      %2799 = vmatpush2.bf16.msra.mxu0 0
      %2800 = vmatprep.subr.bf16.mxu0 0
      %2801 = vmatpush2.bf16.msra.mxu0 0
      %2802 = vmatprep.subr.bf16.mxu0 0
      %2803 = vmatpush2.bf16.msra.mxu0 0
      %2804 = vmatprep.subr.bf16.mxu0 0
      %2805 = vmatpush2.bf16.msra.mxu0 0
      %2806 = vmatprep.subr.bf16.mxu0 0
      %2807 = vmatpush2.bf16.msra.mxu0 0
      %2808 = vmatprep.subr.bf16.mxu0 0
      %2809 = vmatpush2.bf16.msra.mxu0 0
      %2810 = vmatprep.subr.bf16.mxu0 0
      %2811 = vmatpush2.bf16.msra.mxu0 0
      %2812 = vmatprep.subr.bf16.mxu0 0
      %2813 = vmatpush2.bf16.msra.mxu0 0
      %2814 = vmatprep.mubr.bf16.mxu0 0
      %2815 = vmatmul.mubr.bf16.gmra.mxu0 %v2777
      %v2816 = vpop.f32.mrf.mxu0
      %v2817 = vadd.f32 0.0, %v2816
      %v2818 = vpop.f32.mrf.mxu0
      %v2819 = vpop.f32.mrf.mxu0
      %v2820 = vpop.f32.mrf.mxu0
      %2821 = vdwg.mxu0
      %v2823 = vsel %vm1984, %v2175, 0
      %v2826 = vsel %vm2180, %v1238, 0
      %2828 = vmatprep.subr.bf16.mxu0 0
      %2829 = vmatpush1.bf16.msra.mxu0 0
      %2830 = vmatprep.subr.bf16.mxu0 0
      %2831 = vmatpush1.bf16.msra.mxu0 0
      %2832 = vmatprep.subr.bf16.mxu0 0
      %2833 = vmatpush1.bf16.msra.mxu0 0
      %2834 = vmatprep.subr.bf16.mxu0 0
      %2835 = vmatpush1.bf16.msra.mxu0 0
      %2836 = vmatprep.subr.bf16.mxu0 0
      %2837 = vmatpush1.bf16.msra.mxu0 0
      %2838 = vmatprep.subr.bf16.mxu0 0
      %2839 = vmatpush1.bf16.msra.mxu0 0
      %2840 = vmatprep.subr.bf16.mxu0 0
      %2841 = vmatpush1.bf16.msra.mxu0 0
      %2842 = vmatprep.subr.bf16.mxu0 0
      %2843 = vmatpush1.bf16.msra.mxu0 %v2826
      %2844 = vmatprep.subr.bf16.mxu0 0
      %2845 = vmatpush2.bf16.msra.mxu0 0
      %2846 = vmatprep.subr.bf16.mxu0 0
      %2847 = vmatpush2.bf16.msra.mxu0 0
      %2848 = vmatprep.subr.bf16.mxu0 0
      %2849 = vmatpush2.bf16.msra.mxu0 0
      %2850 = vmatprep.subr.bf16.mxu0 0
      %2851 = vmatpush2.bf16.msra.mxu0 0
      %2852 = vmatprep.subr.bf16.mxu0 0
      %2853 = vmatpush2.bf16.msra.mxu0 0
      %2854 = vmatprep.subr.bf16.mxu0 0
      %2855 = vmatpush2.bf16.msra.mxu0 0
      %2856 = vmatprep.subr.bf16.mxu0 0
      %2857 = vmatpush2.bf16.msra.mxu0 0
      %2858 = vmatprep.subr.bf16.mxu0 0
      %2859 = vmatpush2.bf16.msra.mxu0 0
      %2860 = vmatprep.mubr.bf16.mxu0 0
      %2861 = vmatmul.mubr.bf16.gmra.mxu0 %v2823
      %v2862 = vpop.f32.mrf.mxu0
      %v2863 = vadd.f32 0.0, %v2862
      %v2864 = vpop.f32.mrf.mxu0
      %v2865 = vpop.f32.mrf.mxu0
      %v2866 = vpop.f32.mrf.mxu0
      %2867 = vdwg.mxu0
      %v2869 = vsel %vm1984, %v2176, 0
      %v2872 = vsel %vm2180, %v1239, 0
      %2874 = vmatprep.subr.bf16.mxu0 0
      %2875 = vmatpush1.bf16.msra.mxu0 0
      %2876 = vmatprep.subr.bf16.mxu0 0
      %2877 = vmatpush1.bf16.msra.mxu0 0
      %2878 = vmatprep.subr.bf16.mxu0 0
      %2879 = vmatpush1.bf16.msra.mxu0 0
      %2880 = vmatprep.subr.bf16.mxu0 0
      %2881 = vmatpush1.bf16.msra.mxu0 0
      %2882 = vmatprep.subr.bf16.mxu0 0
      %2883 = vmatpush1.bf16.msra.mxu0 0
      %2884 = vmatprep.subr.bf16.mxu0 0
      %2885 = vmatpush1.bf16.msra.mxu0 0
      %2886 = vmatprep.subr.bf16.mxu0 0
      %2887 = vmatpush1.bf16.msra.mxu0 0
      %2888 = vmatprep.subr.bf16.mxu0 0
      %2889 = vmatpush1.bf16.msra.mxu0 %v2872
      %2890 = vmatprep.subr.bf16.mxu0 0
      %2891 = vmatpush2.bf16.msra.mxu0 0
      %2892 = vmatprep.subr.bf16.mxu0 0
      %2893 = vmatpush2.bf16.msra.mxu0 0
      %2894 = vmatprep.subr.bf16.mxu0 0
      %2895 = vmatpush2.bf16.msra.mxu0 0
      %2896 = vmatprep.subr.bf16.mxu0 0
      %2897 = vmatpush2.bf16.msra.mxu0 0
      %2898 = vmatprep.subr.bf16.mxu0 0
      %2899 = vmatpush2.bf16.msra.mxu0 0
      %2900 = vmatprep.subr.bf16.mxu0 0
      %2901 = vmatpush2.bf16.msra.mxu0 0
      %2902 = vmatprep.subr.bf16.mxu0 0
      %2903 = vmatpush2.bf16.msra.mxu0 0
      %2904 = vmatprep.subr.bf16.mxu0 0
      %2905 = vmatpush2.bf16.msra.mxu0 0
      %2906 = vmatprep.mubr.bf16.mxu0 0
      %2907 = vmatmul.mubr.bf16.gmra.mxu0 %v2869
      %v2908 = vpop.f32.mrf.mxu0
      %v2909 = vadd.f32 0.0, %v2908
      %v2910 = vpop.f32.mrf.mxu0
      %v2911 = vpop.f32.mrf.mxu0
      %v2912 = vpop.f32.mrf.mxu0
      %2913 = vdwg.mxu0
      %2918 = vrot.lane.b32.xlu0 %v2403, 32
      %v2919 = vpop.permute.xlu0 %2918
      %2920 = vrot.lane.b32.xlu0 %v2449, 32
      %v2921 = vpop.permute.xlu0 %2920
      %2922 = vrot.lane.b32.xlu0 %v2495, 32
      %v2923 = vpop.permute.xlu0 %2922
      %2924 = vrot.lane.b32.xlu0 %v2541, 32
      %v2925 = vpop.permute.xlu0 %2924
      %2934 = vrot.lane.b32.xlu0 %v2587, 64
      %v2935 = vpop.permute.xlu0 %2934
      %2936 = vrot.lane.b32.xlu0 %v2633, 64
      %v2937 = vpop.permute.xlu0 %2936
      %2938 = vrot.lane.b32.xlu0 %v2679, 64
      %v2939 = vpop.permute.xlu0 %2938
      %2940 = vrot.lane.b32.xlu0 %v2725, 64
      %v2941 = vpop.permute.xlu0 %2940
      %2950 = vrot.lane.b32.xlu0 %v2771, 96
      %v2951 = vpop.permute.xlu0 %2950
      %2952 = vrot.lane.b32.xlu0 %v2817, 96
      %v2953 = vpop.permute.xlu0 %2952
      %2954 = vrot.lane.b32.xlu0 %v2863, 96
      %v2955 = vpop.permute.xlu0 %2954
      %2956 = vrot.lane.b32.xlu0 %v2909, 96
      %v2957 = vpop.permute.xlu0 %2956
      %v2962 = vsel %vm1247, %v2219, %v2919
      %v2963 = vsel %vm1247, %v2265, %v2921
      %v2964 = vsel %vm1247, %v2311, %v2923
      %v2965 = vsel %vm1247, %v2357, %v2925
      %vm2966 = vcmask 523264
      %v2967 = vsel %vm2966, %v2962, %v2935
      %v2968 = vsel %vm2966, %v2963, %v2937
      %v2969 = vsel %vm2966, %v2964, %v2939
      %v2970 = vsel %vm2966, %v2965, %v2941
      %vm2971 = vcmask 785408
      %v2972 = vsel %vm2971, %v2967, %v2951
      %v2973 = vsel %vm2971, %v2968, %v2953
      %v2974 = vsel %vm2971, %v2969, %v2955
      %v2975 = vsel %vm2971, %v2970, %v2957
      %v2976 = vpack.c.bf16 %v2973, %v2972
      %v2977 = vpack.c.bf16 %v2975, %v2974
      %v2978 = vld [vmem:[%s632] sm:$0xf]
      %v2979 = vld [vmem:[%s632 + $0x4] sm:$0xf]
      %v2980 = vld [vmem:[%s632 + $0x8] sm:$0xf]
      %v2981 = vld [vmem:[%s632 + $0xc] sm:$0xf]
      %v2982 = vld [vmem:[%s632 + $0x10] sm:$0xf]
      %v2983 = vld [vmem:[%s632 + $0x14] sm:$0xf]
      %v2984 = vld [vmem:[%s632 + $0x18] sm:$0xf]
      %v2985 = vld [vmem:[%s632 + $0x1c] sm:$0xf]
      %v2986 = vld [vmem:[%s632 + $0x20] sm:$0xf]
      %v2987 = vld [vmem:[%s632 + $0x24] sm:$0xf]
      %v2988 = vld [vmem:[%s632 + $0x28] sm:$0xf]
      %v2989 = vld [vmem:[%s632 + $0x2c] sm:$0xf]
      %v2990 = vld [vmem:[%s632 + $0x30] sm:$0xf]
      %v2991 = vld [vmem:[%s632 + $0x34] sm:$0xf]
      %v2992 = vld [vmem:[%s632 + $0x38] sm:$0xf]
      %v2993 = vld [vmem:[%s632 + $0x3c] sm:$0xf]
      %v3010 = vunpack.c.l.b16 %v2978
      %v3011 = vunpack.c.l.b16 %v2979
      %v3012 = vunpack.c.l.b16 %v2980
      %v3013 = vunpack.c.l.b16 %v2981
      %v3014 = vunpack.c.l.b16 %v2982
      %v3015 = vunpack.c.l.b16 %v2983
      %v3016 = vunpack.c.l.b16 %v2984
      %v3017 = vunpack.c.l.b16 %v2985
      %v3018 = vunpack.c.l.b16 %v2986
      %v3019 = vunpack.c.l.b16 %v2987
      %v3020 = vunpack.c.l.b16 %v2988
      %v3021 = vunpack.c.l.b16 %v2989
      %v3022 = vunpack.c.l.b16 %v2990
      %v3023 = vunpack.c.l.b16 %v2991
      %v3024 = vunpack.c.l.b16 %v2992
      %v3025 = vunpack.c.l.b16 %v2993
      %v3026 = vpack.c.b16 %v3011, %v3010
      %v3027 = vpack.c.b16 %v3013, %v3012
      %v3028 = vpack.c.b16 %v3015, %v3014
      %v3029 = vpack.c.b16 %v3017, %v3016
      %v3030 = vpack.c.b16 %v3019, %v3018
      %v3031 = vpack.c.b16 %v3021, %v3020
      %v3032 = vpack.c.b16 %v3023, %v3022
      %v3033 = vpack.c.b16 %v3025, %v3024
      %3042 = vmatprep.subr.bf16.mxu0 0
      %3043 = vmatpush1.bf16.msra.mxu0 %v3033
      %3044 = vmatprep.subr.bf16.mxu0 0
      %3045 = vmatpush1.bf16.msra.mxu0 %v3032
      %3046 = vmatprep.subr.bf16.mxu0 0
      %3047 = vmatpush1.bf16.msra.mxu0 %v3031
      %3048 = vmatprep.subr.bf16.mxu0 0
      %3049 = vmatpush1.bf16.msra.mxu0 %v3030
      %3050 = vmatprep.subr.bf16.mxu0 0
      %3051 = vmatpush1.bf16.msra.mxu0 %v3029
      %3052 = vmatprep.subr.bf16.mxu0 0
      %3053 = vmatpush1.bf16.msra.mxu0 %v3028
      %3054 = vmatprep.subr.bf16.mxu0 0
      %3055 = vmatpush1.bf16.msra.mxu0 %v3027
      %3056 = vmatprep.subr.bf16.mxu0 0
      %3057 = vmatpush1.bf16.msra.mxu0 %v3026
      %3058 = vmatprep.subr.bf16.mxu0 0
      %3059 = vmatpush2.bf16.msra.mxu0 0
      %3060 = vmatprep.subr.bf16.mxu0 0
      %3061 = vmatpush2.bf16.msra.mxu0 0
      %3062 = vmatprep.subr.bf16.mxu0 0
      %3063 = vmatpush2.bf16.msra.mxu0 0
      %3064 = vmatprep.subr.bf16.mxu0 0
      %3065 = vmatpush2.bf16.msra.mxu0 0
      %3066 = vmatprep.subr.bf16.mxu0 0
      %3067 = vmatpush2.bf16.msra.mxu0 0
      %3068 = vmatprep.subr.bf16.mxu0 0
      %3069 = vmatpush2.bf16.msra.mxu0 0
      %3070 = vmatprep.subr.bf16.mxu0 0
      %3071 = vmatpush2.bf16.msra.mxu0 0
      %3072 = vmatprep.subr.bf16.mxu0 0
      %3073 = vmatpush2.bf16.msra.mxu0 0
      %3074 = vmatprep.mubr.bf16.mxu0 0
      %3075 = vmatmul.mubr.bf16.gmra.mxu0 %v2976
      %v3076 = vpop.f32.mrf.mxu0
      %v3077 = vadd.f32 0.0, %v3076
      %v3078 = vpop.f32.mrf.mxu0
      %v3079 = vpop.f32.mrf.mxu0
      %v3080 = vadd.f32 0.0, %v3079
      %v3081 = vpop.f32.mrf.mxu0
      %3082 = vmatprep.mubr.bf16.mxu0 0
      %3083 = vmatmul.mubr.bf16.gmra.mxu0 %v2977
      %v3084 = vpop.f32.mrf.mxu0
      %v3085 = vadd.f32 0.0, %v3084
      %v3086 = vpop.f32.mrf.mxu0
      %v3087 = vpop.f32.mrf.mxu0
      %v3088 = vadd.f32 0.0, %v3087
      %v3089 = vpop.f32.mrf.mxu0
      %3090 = vdwg.mxu0
      %v3091 = vadd.f32 %v716, %v3077
      %v3092 = vadd.f32 %v717, %v3080
      %v3093 = vadd.f32 %v718, %v3085
      %v3094 = vadd.f32 %v719, %v3088
      %v3095 = vld [vmem:[%s635] sm:$0x1]
      %v3097 = vlaneseq
      %v3098 = vshrl.u32 %v3097, 7
      %v3099 = vsub.s32 0, %v3098
      %v3100 = vrot.slane %v3095, %v3099
      %v3102 = vadd.f32 %v3091, %v3100
      %v3103 = vadd.f32 %v3092, %v3100
      %v3104 = vadd.f32 %v3093, %v3100
      %v3105 = vadd.f32 %v3094, %v3100
      %v3106 = vld [vmem:[%s638] sm:$0x1]
      %v3107 = vld [vmem:[%s641] sm:$0x1]
      %3108 = vadd.xlane.f32.xlu0 %v3102
      %v3109 = vpop.xlane.xlu0 %3108
      %3110 = vadd.xlane.f32.xlu0 %v3103
      %v3111 = vpop.xlane.xlu0 %3110
      %3112 = vadd.xlane.f32.xlu0 %v3104
      %v3113 = vpop.xlane.xlu0 %3112
      %3114 = vadd.xlane.f32.xlu0 %v3105
      %v3115 = vpop.xlane.xlu0 %3114
      %v3116 = vmul.f32 %v3109, %v730
      %v3117 = vmul.f32 %v3111, %v730
      %v3118 = vmul.f32 %v3113, %v730
      %v3119 = vmul.f32 %v3115, %v730
      %v3120 = vsub.f32 %v3102, %v3116
      %v3121 = vsub.f32 %v3103, %v3117
      %v3122 = vsub.f32 %v3104, %v3118
      %v3123 = vsub.f32 %v3105, %v3119
      %v3124 = vmul.f32 %v3120, %v3120
      %v3125 = vmul.f32 %v3121, %v3121
      %v3126 = vmul.f32 %v3122, %v3122
      %v3127 = vmul.f32 %v3123, %v3123
      %3128 = vadd.xlane.f32.xlu0 %v3124
      %v3129 = vpop.xlane.xlu0 %3128
      %3130 = vadd.xlane.f32.xlu0 %v3125
      %v3131 = vpop.xlane.xlu0 %3130
      %3132 = vadd.xlane.f32.xlu0 %v3126
      %v3133 = vpop.xlane.xlu0 %3132
      %3134 = vadd.xlane.f32.xlu0 %v3127
      %v3135 = vpop.xlane.xlu0 %3134
      %v3136 = vmul.f32 %v3129, %v730
      %v3137 = vmul.f32 %v3131, %v730
      %v3138 = vmul.f32 %v3133, %v730
      %v3139 = vmul.f32 %v3135, %v730
      %v3140 = vadd.f32 %v3136, 1e-06
      %v3141 = vadd.f32 %v3137, 1e-06
      %v3142 = vadd.f32 %v3138, 1e-06
      %v3143 = vadd.f32 %v3139, 1e-06
      %v3144 = vrsqrt.pop %v3140
      %v3145 = vrsqrt.pop %v3141
      %v3146 = vrsqrt.pop %v3142
      %v3147 = vrsqrt.pop %v3143
      %v3148 = vmul.f32 %v3120, %v3144
      %v3149 = vmul.f32 %v3121, %v3145
      %v3150 = vmul.f32 %v3122, %v3146
      %v3151 = vmul.f32 %v3123, %v3147
      %v3153 = vlaneseq
      %v3154 = vshrl.u32 %v3153, 7
      %v3155 = vsub.s32 0, %v3154
      %v3156 = vrot.slane %v3106, %v3155
      %v3158 = vmul.f32 %v3148, %v3156
      %v3159 = vmul.f32 %v3149, %v3156
      %v3160 = vmul.f32 %v3150, %v3156
      %v3161 = vmul.f32 %v3151, %v3156
      %v3163 = vlaneseq
      %v3164 = vshrl.u32 %v3163, 7
      %v3165 = vsub.s32 0, %v3164
      %v3166 = vrot.slane %v3107, %v3165
      %v3168 = vadd.f32 %v3158, %v3166
      %v3169 = vadd.f32 %v3159, %v3166
      %v3170 = vadd.f32 %v3160, %v3166
      %v3171 = vadd.f32 %v3161, %v3166
      %v3172 = vpack.c.bf16 %v3169, %v3168
      %v3173 = vpack.c.bf16 %v3171, %v3170
      %v3174 = vld [vmem:[%s646] sm:$0xff]
      %v3175 = vld [vmem:[%s646 + $0x8] sm:$0xff]
      %v3176 = vld [vmem:[%s646 + $0x10] sm:$0xff]
      %v3177 = vld [vmem:[%s646 + $0x18] sm:$0xff]
      %v3178 = vld [vmem:[%s646 + $0x20] sm:$0xff]
      %v3179 = vld [vmem:[%s646 + $0x28] sm:$0xff]
      %v3180 = vld [vmem:[%s646 + $0x30] sm:$0xff]
      %v3181 = vld [vmem:[%s646 + $0x38] sm:$0xff]
      %v3182 = vld [vmem:[%s646 + $0x40] sm:$0xff]
      %v3183 = vld [vmem:[%s646 + $0x48] sm:$0xff]
      %v3184 = vld [vmem:[%s646 + $0x50] sm:$0xff]
      %v3185 = vld [vmem:[%s646 + $0x58] sm:$0xff]
      %v3186 = vld [vmem:[%s646 + $0x60] sm:$0xff]
      %v3187 = vld [vmem:[%s646 + $0x68] sm:$0xff]
      %v3188 = vld [vmem:[%s646 + $0x70] sm:$0xff]
      %v3189 = vld [vmem:[%s646 + $0x78] sm:$0xff]
      %v3190 = vld [vmem:[%s646 + $0x80] sm:$0xff]
      %v3191 = vld [vmem:[%s646 + $0x88] sm:$0xff]
      %v3192 = vld [vmem:[%s646 + $0x90] sm:$0xff]
      %v3193 = vld [vmem:[%s646 + $0x98] sm:$0xff]
      %v3194 = vld [vmem:[%s646 + $0xa0] sm:$0xff]
      %v3195 = vld [vmem:[%s646 + $0xa8] sm:$0xff]
      %v3196 = vld [vmem:[%s646 + $0xb0] sm:$0xff]
      %v3197 = vld [vmem:[%s646 + $0xb8] sm:$0xff]
      %v3198 = vld [vmem:[%s646 + $0xc0] sm:$0xff]
      %v3199 = vld [vmem:[%s646 + $0xc8] sm:$0xff]
      %v3200 = vld [vmem:[%s646 + $0xd0] sm:$0xff]
      %v3201 = vld [vmem:[%s646 + $0xd8] sm:$0xff]
      %v3202 = vld [vmem:[%s646 + $0xe0] sm:$0xff]
      %v3203 = vld [vmem:[%s646 + $0xe8] sm:$0xff]
      %v3204 = vld [vmem:[%s646 + $0xf0] sm:$0xff]
      %v3205 = vld [vmem:[%s646 + $0xf8] sm:$0xff]
      %v3206 = vld [vmem:[%s650] sm:$0xf]
      %v3208 = vlaneseq
      %v3209 = vshrl.u32 %v3208, 7
      %v3210 = vsub.s32 0, %v3209
      %v3211 = vrot.slane %v3206, %v3210
      %v3212 = vlaneseq
      %v3213 = vshrl.u32 %v3212, 7
      %v3214 = vsub.s32 1, %v3213
      %v3215 = vrot.slane %v3206, %v3214
      %v3216 = vlaneseq
      %v3217 = vshrl.u32 %v3216, 7
      %v3218 = vsub.s32 2, %v3217
      %v3219 = vrot.slane %v3206, %v3218
      %v3220 = vlaneseq
      %v3221 = vshrl.u32 %v3220, 7
      %v3222 = vsub.s32 3, %v3221
      %v3223 = vrot.slane %v3206, %v3222
      %v3260 = vunpack.c.l.b16 %v3174
      %v3261 = vunpack.c.h.b16 %v3174
      %v3262 = vunpack.c.l.b16 %v3175
      %v3263 = vunpack.c.h.b16 %v3175
      %v3264 = vunpack.c.l.b16 %v3176
      %v3265 = vunpack.c.h.b16 %v3176
      %v3266 = vunpack.c.l.b16 %v3177
      %v3267 = vunpack.c.h.b16 %v3177
      %v3268 = vunpack.c.l.b16 %v3178
      %v3269 = vunpack.c.h.b16 %v3178
      %v3270 = vunpack.c.l.b16 %v3179
      %v3271 = vunpack.c.h.b16 %v3179
      %v3272 = vunpack.c.l.b16 %v3180
      %v3273 = vunpack.c.h.b16 %v3180
      %v3274 = vunpack.c.l.b16 %v3181
      %v3275 = vunpack.c.h.b16 %v3181
      %v3276 = vunpack.c.l.b16 %v3182
      %v3277 = vunpack.c.h.b16 %v3182
      %v3278 = vunpack.c.l.b16 %v3183
      %v3279 = vunpack.c.h.b16 %v3183
      %v3280 = vunpack.c.l.b16 %v3184
      %v3281 = vunpack.c.h.b16 %v3184
      %v3282 = vunpack.c.l.b16 %v3185
      %v3283 = vunpack.c.h.b16 %v3185
      %v3284 = vunpack.c.l.b16 %v3186
      %v3285 = vunpack.c.h.b16 %v3186
      %v3286 = vunpack.c.l.b16 %v3187
      %v3287 = vunpack.c.h.b16 %v3187
      %v3288 = vunpack.c.l.b16 %v3188
      %v3289 = vunpack.c.h.b16 %v3188
      %v3290 = vunpack.c.l.b16 %v3189
      %v3291 = vunpack.c.h.b16 %v3189
      %v3292 = vunpack.c.l.b16 %v3190
      %v3293 = vunpack.c.h.b16 %v3190
      %v3294 = vunpack.c.l.b16 %v3191
      %v3295 = vunpack.c.h.b16 %v3191
      %v3296 = vunpack.c.l.b16 %v3192
      %v3297 = vunpack.c.h.b16 %v3192
      %v3298 = vunpack.c.l.b16 %v3193
      %v3299 = vunpack.c.h.b16 %v3193
      %v3300 = vunpack.c.l.b16 %v3194
      %v3301 = vunpack.c.h.b16 %v3194
      %v3302 = vunpack.c.l.b16 %v3195
      %v3303 = vunpack.c.h.b16 %v3195
      %v3304 = vunpack.c.l.b16 %v3196
      %v3305 = vunpack.c.h.b16 %v3196
      %v3306 = vunpack.c.l.b16 %v3197
      %v3307 = vunpack.c.h.b16 %v3197
      %v3308 = vunpack.c.l.b16 %v3198
      %v3309 = vunpack.c.h.b16 %v3198
      %v3310 = vunpack.c.l.b16 %v3199
      %v3311 = vunpack.c.h.b16 %v3199
      %v3312 = vunpack.c.l.b16 %v3200
      %v3313 = vunpack.c.h.b16 %v3200
      %v3314 = vunpack.c.l.b16 %v3201
      %v3315 = vunpack.c.h.b16 %v3201
      %v3316 = vunpack.c.l.b16 %v3202
      %v3317 = vunpack.c.h.b16 %v3202
      %v3318 = vunpack.c.l.b16 %v3203
      %v3319 = vunpack.c.h.b16 %v3203
      %v3320 = vunpack.c.l.b16 %v3204
      %v3321 = vunpack.c.h.b16 %v3204
      %v3322 = vunpack.c.l.b16 %v3205
      %v3323 = vunpack.c.h.b16 %v3205
      %v3324 = vpack.c.b16 %v3264, %v3260
      %v3325 = vpack.c.b16 %v3265, %v3261
      %v3326 = vpack.c.b16 %v3266, %v3262
      %v3327 = vpack.c.b16 %v3267, %v3263
      %v3328 = vpack.c.b16 %v3272, %v3268
      %v3329 = vpack.c.b16 %v3273, %v3269
      %v3330 = vpack.c.b16 %v3274, %v3270
      %v3331 = vpack.c.b16 %v3275, %v3271
      %v3332 = vpack.c.b16 %v3280, %v3276
      %v3333 = vpack.c.b16 %v3281, %v3277
      %v3334 = vpack.c.b16 %v3282, %v3278
      %v3335 = vpack.c.b16 %v3283, %v3279
      %v3336 = vpack.c.b16 %v3288, %v3284
      %v3337 = vpack.c.b16 %v3289, %v3285
      %v3338 = vpack.c.b16 %v3290, %v3286
      %v3339 = vpack.c.b16 %v3291, %v3287
      %v3340 = vpack.c.b16 %v3296, %v3292
      %v3341 = vpack.c.b16 %v3297, %v3293
      %v3342 = vpack.c.b16 %v3298, %v3294
      %v3343 = vpack.c.b16 %v3299, %v3295
      %v3344 = vpack.c.b16 %v3304, %v3300
      %v3345 = vpack.c.b16 %v3305, %v3301
      %v3346 = vpack.c.b16 %v3306, %v3302
      %v3347 = vpack.c.b16 %v3307, %v3303
      %v3348 = vpack.c.b16 %v3312, %v3308
      %v3349 = vpack.c.b16 %v3313, %v3309
      %v3350 = vpack.c.b16 %v3314, %v3310
      %v3351 = vpack.c.b16 %v3315, %v3311
      %v3352 = vpack.c.b16 %v3320, %v3316
      %v3353 = vpack.c.b16 %v3321, %v3317
      %v3354 = vpack.c.b16 %v3322, %v3318
      %v3355 = vpack.c.b16 %v3323, %v3319
      %3388 = vmatprep.subr.bf16.mxu0 %v3353
      %3389 = vmatpush1.bf16.msra.mxu0 %v3352
      %3390 = vmatprep.subr.bf16.mxu0 %v3349
      %3391 = vmatpush1.bf16.msra.mxu0 %v3348
      %3392 = vmatprep.subr.bf16.mxu0 %v3345
      %3393 = vmatpush1.bf16.msra.mxu0 %v3344
      %3394 = vmatprep.subr.bf16.mxu0 %v3341
      %3395 = vmatpush1.bf16.msra.mxu0 %v3340
      %3396 = vmatprep.subr.bf16.mxu0 %v3337
      %3397 = vmatpush1.bf16.msra.mxu0 %v3336
      %3398 = vmatprep.subr.bf16.mxu0 %v3333
      %3399 = vmatpush1.bf16.msra.mxu0 %v3332
      %3400 = vmatprep.subr.bf16.mxu0 %v3329
      %3401 = vmatpush1.bf16.msra.mxu0 %v3328
      %3402 = vmatprep.subr.bf16.mxu0 %v3325
      %3403 = vmatpush1.bf16.msra.mxu0 %v3324
      %3404 = vmatprep.subr.bf16.mxu0 0
      %3405 = vmatpush2.bf16.msra.mxu0 0
      %3406 = vmatprep.subr.bf16.mxu0 0
      %3407 = vmatpush2.bf16.msra.mxu0 0
      %3408 = vmatprep.subr.bf16.mxu0 0
      %3409 = vmatpush2.bf16.msra.mxu0 0
      %3410 = vmatprep.subr.bf16.mxu0 0
      %3411 = vmatpush2.bf16.msra.mxu0 0
      %3412 = vmatprep.subr.bf16.mxu0 0
      %3413 = vmatpush2.bf16.msra.mxu0 0
      %3414 = vmatprep.subr.bf16.mxu0 0
      %3415 = vmatpush2.bf16.msra.mxu0 0
      %3416 = vmatprep.subr.bf16.mxu0 0
      %3417 = vmatpush2.bf16.msra.mxu0 0
      %3418 = vmatprep.subr.bf16.mxu0 0
      %3419 = vmatpush2.bf16.msra.mxu0 0
      %3420 = vmatprep.mubr.bf16.mxu0 0
      %3421 = vmatmul.mubr.bf16.gmra.mxu0 %v3172
      %v3422 = vpop.f32.mrf.mxu0
      %v3423 = vadd.f32 %v3211, %v3422
      %v3424 = vpop.f32.mrf.mxu0
      %v3425 = vadd.f32 %v3215, %v3424
      %v3426 = vpop.f32.mrf.mxu0
      %v3427 = vadd.f32 %v3211, %v3426
      %v3428 = vpop.f32.mrf.mxu0
      %v3429 = vadd.f32 %v3215, %v3428
      %3430 = vmatprep.mubr.bf16.mxu0 0
      %3431 = vmatmul.mubr.bf16.gmra.mxu0 %v3173
      %v3432 = vpop.f32.mrf.mxu0
      %v3433 = vadd.f32 %v3211, %v3432
      %v3434 = vpop.f32.mrf.mxu0
      %v3435 = vadd.f32 %v3215, %v3434
      %v3436 = vpop.f32.mrf.mxu0
      %v3437 = vadd.f32 %v3211, %v3436
      %v3438 = vpop.f32.mrf.mxu0
      %v3439 = vadd.f32 %v3215, %v3438
      %3440 = vdwg.mxu0
      %3441 = vmatprep.subr.bf16.mxu0 %v3355
      %3442 = vmatpush1.bf16.msra.mxu0 %v3354
      %3443 = vmatprep.subr.bf16.mxu0 %v3351
      %3444 = vmatpush1.bf16.msra.mxu0 %v3350
      %3445 = vmatprep.subr.bf16.mxu0 %v3347
      %3446 = vmatpush1.bf16.msra.mxu0 %v3346
      %3447 = vmatprep.subr.bf16.mxu0 %v3343
      %3448 = vmatpush1.bf16.msra.mxu0 %v3342
      %3449 = vmatprep.subr.bf16.mxu0 %v3339
      %3450 = vmatpush1.bf16.msra.mxu0 %v3338
      %3451 = vmatprep.subr.bf16.mxu0 %v3335
      %3452 = vmatpush1.bf16.msra.mxu0 %v3334
      %3453 = vmatprep.subr.bf16.mxu0 %v3331
      %3454 = vmatpush1.bf16.msra.mxu0 %v3330
      %3455 = vmatprep.subr.bf16.mxu0 %v3327
      %3456 = vmatpush1.bf16.msra.mxu0 %v3326
      %3457 = vmatprep.subr.bf16.mxu0 0
      %3458 = vmatpush2.bf16.msra.mxu0 0
      %3459 = vmatprep.subr.bf16.mxu0 0
      %3460 = vmatpush2.bf16.msra.mxu0 0
      %3461 = vmatprep.subr.bf16.mxu0 0
      %3462 = vmatpush2.bf16.msra.mxu0 0
      %3463 = vmatprep.subr.bf16.mxu0 0
      %3464 = vmatpush2.bf16.msra.mxu0 0
      %3465 = vmatprep.subr.bf16.mxu0 0
      %3466 = vmatpush2.bf16.msra.mxu0 0
      %3467 = vmatprep.subr.bf16.mxu0 0
      %3468 = vmatpush2.bf16.msra.mxu0 0
      %3469 = vmatprep.subr.bf16.mxu0 0
      %3470 = vmatpush2.bf16.msra.mxu0 0
      %3471 = vmatprep.subr.bf16.mxu0 0
      %3472 = vmatpush2.bf16.msra.mxu0 0
      %3473 = vmatprep.mubr.bf16.mxu0 0
      %3474 = vmatmul.mubr.bf16.gmra.mxu0 %v3172
      %v3475 = vpop.f32.mrf.mxu0
      %v3476 = vadd.f32 %v3219, %v3475
      %v3477 = vpop.f32.mrf.mxu0
      %v3478 = vadd.f32 %v3223, %v3477
      %v3479 = vpop.f32.mrf.mxu0
      %v3480 = vadd.f32 %v3219, %v3479
      %v3481 = vpop.f32.mrf.mxu0
      %v3482 = vadd.f32 %v3223, %v3481
      %3483 = vmatprep.mubr.bf16.mxu0 0
      %3484 = vmatmul.mubr.bf16.gmra.mxu0 %v3173
      %v3485 = vpop.f32.mrf.mxu0
      %v3486 = vadd.f32 %v3219, %v3485
      %v3487 = vpop.f32.mrf.mxu0
      %v3488 = vadd.f32 %v3223, %v3487
      %v3489 = vpop.f32.mrf.mxu0
      %v3490 = vadd.f32 %v3219, %v3489
      %v3491 = vpop.f32.mrf.mxu0
      %v3492 = vadd.f32 %v3223, %v3491
      %3493 = vdwg.mxu0
      %v3494 = vmul.f32 %v3423, %v3423
      %v3495 = vmul.f32 %v3425, %v3425
      %v3496 = vmul.f32 %v3476, %v3476
      %v3497 = vmul.f32 %v3478, %v3478
      %v3498 = vmul.f32 %v3427, %v3427
      %v3499 = vmul.f32 %v3429, %v3429
      %v3500 = vmul.f32 %v3480, %v3480
      %v3501 = vmul.f32 %v3482, %v3482
      %v3502 = vmul.f32 %v3433, %v3433
      %v3503 = vmul.f32 %v3435, %v3435
      %v3504 = vmul.f32 %v3486, %v3486
      %v3505 = vmul.f32 %v3488, %v3488
      %v3506 = vmul.f32 %v3437, %v3437
      %v3507 = vmul.f32 %v3439, %v3439
      %v3508 = vmul.f32 %v3490, %v3490
      %v3509 = vmul.f32 %v3492, %v3492
      %v3510 = vmul.f32 %v3423, %v3494
      %v3511 = vmul.f32 %v3425, %v3495
      %v3512 = vmul.f32 %v3476, %v3496
      %v3513 = vmul.f32 %v3478, %v3497
      %v3514 = vmul.f32 %v3427, %v3498
      %v3515 = vmul.f32 %v3429, %v3499
      %v3516 = vmul.f32 %v3480, %v3500
      %v3517 = vmul.f32 %v3482, %v3501
      %v3518 = vmul.f32 %v3433, %v3502
      %v3519 = vmul.f32 %v3435, %v3503
      %v3520 = vmul.f32 %v3486, %v3504
      %v3521 = vmul.f32 %v3488, %v3505
      %v3522 = vmul.f32 %v3437, %v3506
      %v3523 = vmul.f32 %v3439, %v3507
      %v3524 = vmul.f32 %v3490, %v3508
      %v3525 = vmul.f32 %v3492, %v3509
      %v3526 = vmul.f32 %v3510, 0.044715
      %v3527 = vmul.f32 %v3511, 0.044715
      %v3528 = vmul.f32 %v3512, 0.044715
      %v3529 = vmul.f32 %v3513, 0.044715
      %v3530 = vmul.f32 %v3514, 0.044715
      %v3531 = vmul.f32 %v3515, 0.044715
      %v3532 = vmul.f32 %v3516, 0.044715
      %v3533 = vmul.f32 %v3517, 0.044715
      %v3534 = vmul.f32 %v3518, 0.044715
      %v3535 = vmul.f32 %v3519, 0.044715
      %v3536 = vmul.f32 %v3520, 0.044715
      %v3537 = vmul.f32 %v3521, 0.044715
      %v3538 = vmul.f32 %v3522, 0.044715
      %v3539 = vmul.f32 %v3523, 0.044715
      %v3540 = vmul.f32 %v3524, 0.044715
      %v3541 = vmul.f32 %v3525, 0.044715
      %v3542 = vadd.f32 %v3423, %v3526
      %v3543 = vadd.f32 %v3425, %v3527
      %v3544 = vadd.f32 %v3476, %v3528
      %v3545 = vadd.f32 %v3478, %v3529
      %v3546 = vadd.f32 %v3427, %v3530
      %v3547 = vadd.f32 %v3429, %v3531
      %v3548 = vadd.f32 %v3480, %v3532
      %v3549 = vadd.f32 %v3482, %v3533
      %v3550 = vadd.f32 %v3433, %v3534
      %v3551 = vadd.f32 %v3435, %v3535
      %v3552 = vadd.f32 %v3486, %v3536
      %v3553 = vadd.f32 %v3488, %v3537
      %v3554 = vadd.f32 %v3437, %v3538
      %v3555 = vadd.f32 %v3439, %v3539
      %v3556 = vadd.f32 %v3490, %v3540
      %v3557 = vadd.f32 %v3492, %v3541
      %v3558 = vmul.f32 %v3542, 0.7978846
      %v3559 = vmul.f32 %v3543, 0.7978846
      %v3560 = vmul.f32 %v3544, 0.7978846
      %v3561 = vmul.f32 %v3545, 0.7978846
      %v3562 = vmul.f32 %v3546, 0.7978846
      %v3563 = vmul.f32 %v3547, 0.7978846
      %v3564 = vmul.f32 %v3548, 0.7978846
      %v3565 = vmul.f32 %v3549, 0.7978846
      %v3566 = vmul.f32 %v3550, 0.7978846
      %v3567 = vmul.f32 %v3551, 0.7978846
      %v3568 = vmul.f32 %v3552, 0.7978846
      %v3569 = vmul.f32 %v3553, 0.7978846
      %v3570 = vmul.f32 %v3554, 0.7978846
      %v3571 = vmul.f32 %v3555, 0.7978846
      %v3572 = vmul.f32 %v3556, 0.7978846
      %v3573 = vmul.f32 %v3557, 0.7978846
      %v3574 = vtanh.pop %v3558
      %v3575 = vtanh.pop %v3559
      %v3576 = vtanh.pop %v3560
      %v3577 = vtanh.pop %v3561
      %v3578 = vtanh.pop %v3562
      %v3579 = vtanh.pop %v3563
      %v3580 = vtanh.pop %v3564
      %v3581 = vtanh.pop %v3565
      %v3582 = vtanh.pop %v3566
      %v3583 = vtanh.pop %v3567
      %v3584 = vtanh.pop %v3568
      %v3585 = vtanh.pop %v3569
      %v3586 = vtanh.pop %v3570
      %v3587 = vtanh.pop %v3571
      %v3588 = vtanh.pop %v3572
      %v3589 = vtanh.pop %v3573
      %v3590 = vadd.f32 %v3574, 1.0
      %v3591 = vadd.f32 %v3575, 1.0
      %v3592 = vadd.f32 %v3576, 1.0
      %v3593 = vadd.f32 %v3577, 1.0
      %v3594 = vadd.f32 %v3578, 1.0
      %v3595 = vadd.f32 %v3579, 1.0
      %v3596 = vadd.f32 %v3580, 1.0
      %v3597 = vadd.f32 %v3581, 1.0
      %v3598 = vadd.f32 %v3582, 1.0
      %v3599 = vadd.f32 %v3583, 1.0
      %v3600 = vadd.f32 %v3584, 1.0
      %v3601 = vadd.f32 %v3585, 1.0
      %v3602 = vadd.f32 %v3586, 1.0
      %v3603 = vadd.f32 %v3587, 1.0
      %v3604 = vadd.f32 %v3588, 1.0
      %v3605 = vadd.f32 %v3589, 1.0
      %v3606 = vmul.f32 %v3590, 0.5
      %v3607 = vmul.f32 %v3591, 0.5
      %v3608 = vmul.f32 %v3592, 0.5
      %v3609 = vmul.f32 %v3593, 0.5
      %v3610 = vmul.f32 %v3594, 0.5
      %v3611 = vmul.f32 %v3595, 0.5
      %v3612 = vmul.f32 %v3596, 0.5
      %v3613 = vmul.f32 %v3597, 0.5
      %v3614 = vmul.f32 %v3598, 0.5
      %v3615 = vmul.f32 %v3599, 0.5
      %v3616 = vmul.f32 %v3600, 0.5
      %v3617 = vmul.f32 %v3601, 0.5
      %v3618 = vmul.f32 %v3602, 0.5
      %v3619 = vmul.f32 %v3603, 0.5
      %v3620 = vmul.f32 %v3604, 0.5
      %v3621 = vmul.f32 %v3605, 0.5
      %v3622 = vmul.f32 %v3423, %v3606
      %v3623 = vmul.f32 %v3425, %v3607
      %v3624 = vmul.f32 %v3476, %v3608
      %v3625 = vmul.f32 %v3478, %v3609
      %v3626 = vmul.f32 %v3427, %v3610
      %v3627 = vmul.f32 %v3429, %v3611
      %v3628 = vmul.f32 %v3480, %v3612
      %v3629 = vmul.f32 %v3482, %v3613
      %v3630 = vmul.f32 %v3433, %v3614
      %v3631 = vmul.f32 %v3435, %v3615
      %v3632 = vmul.f32 %v3486, %v3616
      %v3633 = vmul.f32 %v3488, %v3617
      %v3634 = vmul.f32 %v3437, %v3618
      %v3635 = vmul.f32 %v3439, %v3619
      %v3636 = vmul.f32 %v3490, %v3620
      %v3637 = vmul.f32 %v3492, %v3621
      %v3638 = vpack.c.bf16 %v3626, %v3622
      %v3639 = vpack.c.bf16 %v3627, %v3623
      %v3640 = vpack.c.bf16 %v3628, %v3624
      %v3641 = vpack.c.bf16 %v3629, %v3625
      %v3642 = vpack.c.bf16 %v3634, %v3630
      %v3643 = vpack.c.bf16 %v3635, %v3631
      %v3644 = vpack.c.bf16 %v3636, %v3632
      %v3645 = vpack.c.bf16 %v3637, %v3633
      %v3646 = vld [vmem:[%s655] sm:$0xf]
      %v3647 = vld [vmem:[%s655 + $0x4] sm:$0xf]
      %v3648 = vld [vmem:[%s655 + $0x8] sm:$0xf]
      %v3649 = vld [vmem:[%s655 + $0xc] sm:$0xf]
      %v3650 = vld [vmem:[%s655 + $0x10] sm:$0xf]
      %v3651 = vld [vmem:[%s655 + $0x14] sm:$0xf]
      %v3652 = vld [vmem:[%s655 + $0x18] sm:$0xf]
      %v3653 = vld [vmem:[%s655 + $0x1c] sm:$0xf]
      %v3654 = vld [vmem:[%s655 + $0x20] sm:$0xf]
      %v3655 = vld [vmem:[%s655 + $0x24] sm:$0xf]
      %v3656 = vld [vmem:[%s655 + $0x28] sm:$0xf]
      %v3657 = vld [vmem:[%s655 + $0x2c] sm:$0xf]
      %v3658 = vld [vmem:[%s655 + $0x30] sm:$0xf]
      %v3659 = vld [vmem:[%s655 + $0x34] sm:$0xf]
      %v3660 = vld [vmem:[%s655 + $0x38] sm:$0xf]
      %v3661 = vld [vmem:[%s655 + $0x3c] sm:$0xf]
      %v3662 = vld [vmem:[%s655 + $0x40] sm:$0xf]
      %v3663 = vld [vmem:[%s655 + $0x44] sm:$0xf]
      %v3664 = vld [vmem:[%s655 + $0x48] sm:$0xf]
      %v3665 = vld [vmem:[%s655 + $0x4c] sm:$0xf]
      %v3666 = vld [vmem:[%s655 + $0x50] sm:$0xf]
      %v3667 = vld [vmem:[%s655 + $0x54] sm:$0xf]
      %v3668 = vld [vmem:[%s655 + $0x58] sm:$0xf]
      %v3669 = vld [vmem:[%s655 + $0x5c] sm:$0xf]
      %v3670 = vld [vmem:[%s655 + $0x60] sm:$0xf]
      %v3671 = vld [vmem:[%s655 + $0x64] sm:$0xf]
      %v3672 = vld [vmem:[%s655 + $0x68] sm:$0xf]
      %v3673 = vld [vmem:[%s655 + $0x6c] sm:$0xf]
      %v3674 = vld [vmem:[%s655 + $0x70] sm:$0xf]
      %v3675 = vld [vmem:[%s655 + $0x74] sm:$0xf]
      %v3676 = vld [vmem:[%s655 + $0x78] sm:$0xf]
      %v3677 = vld [vmem:[%s655 + $0x7c] sm:$0xf]
      %v3678 = vld [vmem:[%s655 + $0x80] sm:$0xf]
      %v3679 = vld [vmem:[%s655 + $0x84] sm:$0xf]
      %v3680 = vld [vmem:[%s655 + $0x88] sm:$0xf]
      %v3681 = vld [vmem:[%s655 + $0x8c] sm:$0xf]
      %v3682 = vld [vmem:[%s655 + $0x90] sm:$0xf]
      %v3683 = vld [vmem:[%s655 + $0x94] sm:$0xf]
      %v3684 = vld [vmem:[%s655 + $0x98] sm:$0xf]
      %v3685 = vld [vmem:[%s655 + $0x9c] sm:$0xf]
      %v3686 = vld [vmem:[%s655 + $0xa0] sm:$0xf]
      %v3687 = vld [vmem:[%s655 + $0xa4] sm:$0xf]
      %v3688 = vld [vmem:[%s655 + $0xa8] sm:$0xf]
      %v3689 = vld [vmem:[%s655 + $0xac] sm:$0xf]
      %v3690 = vld [vmem:[%s655 + $0xb0] sm:$0xf]
      %v3691 = vld [vmem:[%s655 + $0xb4] sm:$0xf]
      %v3692 = vld [vmem:[%s655 + $0xb8] sm:$0xf]
      %v3693 = vld [vmem:[%s655 + $0xbc] sm:$0xf]
      %v3694 = vld [vmem:[%s655 + $0xc0] sm:$0xf]
      %v3695 = vld [vmem:[%s655 + $0xc4] sm:$0xf]
      %v3696 = vld [vmem:[%s655 + $0xc8] sm:$0xf]
      %v3697 = vld [vmem:[%s655 + $0xcc] sm:$0xf]
      %v3698 = vld [vmem:[%s655 + $0xd0] sm:$0xf]
      %v3699 = vld [vmem:[%s655 + $0xd4] sm:$0xf]
      %v3700 = vld [vmem:[%s655 + $0xd8] sm:$0xf]
      %v3701 = vld [vmem:[%s655 + $0xdc] sm:$0xf]
      %v3702 = vld [vmem:[%s655 + $0xe0] sm:$0xf]
      %v3703 = vld [vmem:[%s655 + $0xe4] sm:$0xf]
      %v3704 = vld [vmem:[%s655 + $0xe8] sm:$0xf]
      %v3705 = vld [vmem:[%s655 + $0xec] sm:$0xf]
      %v3706 = vld [vmem:[%s655 + $0xf0] sm:$0xf]
      %v3707 = vld [vmem:[%s655 + $0xf4] sm:$0xf]
      %v3708 = vld [vmem:[%s655 + $0xf8] sm:$0xf]
      %v3709 = vld [vmem:[%s655 + $0xfc] sm:$0xf]
      %v3710 = vld [vmem:[%s658] sm:$0x1]
      %v3712 = vlaneseq
      %v3713 = vshrl.u32 %v3712, 7
      %v3714 = vsub.s32 0, %v3713
      %v3715 = vrot.slane %v3710, %v3714
      %v3781 = vunpack.c.l.b16 %v3646
      %v3782 = vunpack.c.l.b16 %v3647
      %v3783 = vunpack.c.l.b16 %v3648
      %v3784 = vunpack.c.l.b16 %v3649
      %v3785 = vunpack.c.l.b16 %v3650
      %v3786 = vunpack.c.l.b16 %v3651
      %v3787 = vunpack.c.l.b16 %v3652
      %v3788 = vunpack.c.l.b16 %v3653
      %v3789 = vunpack.c.l.b16 %v3654
      %v3790 = vunpack.c.l.b16 %v3655
      %v3791 = vunpack.c.l.b16 %v3656
      %v3792 = vunpack.c.l.b16 %v3657
      %v3793 = vunpack.c.l.b16 %v3658
      %v3794 = vunpack.c.l.b16 %v3659
      %v3795 = vunpack.c.l.b16 %v3660
      %v3796 = vunpack.c.l.b16 %v3661
      %v3797 = vunpack.c.l.b16 %v3662
      %v3798 = vunpack.c.l.b16 %v3663
      %v3799 = vunpack.c.l.b16 %v3664
      %v3800 = vunpack.c.l.b16 %v3665
      %v3801 = vunpack.c.l.b16 %v3666
      %v3802 = vunpack.c.l.b16 %v3667
      %v3803 = vunpack.c.l.b16 %v3668
      %v3804 = vunpack.c.l.b16 %v3669
      %v3805 = vunpack.c.l.b16 %v3670
      %v3806 = vunpack.c.l.b16 %v3671
      %v3807 = vunpack.c.l.b16 %v3672
      %v3808 = vunpack.c.l.b16 %v3673
      %v3809 = vunpack.c.l.b16 %v3674
      %v3810 = vunpack.c.l.b16 %v3675
      %v3811 = vunpack.c.l.b16 %v3676
      %v3812 = vunpack.c.l.b16 %v3677
      %v3813 = vunpack.c.l.b16 %v3678
      %v3814 = vunpack.c.l.b16 %v3679
      %v3815 = vunpack.c.l.b16 %v3680
      %v3816 = vunpack.c.l.b16 %v3681
      %v3817 = vunpack.c.l.b16 %v3682
      %v3818 = vunpack.c.l.b16 %v3683
      %v3819 = vunpack.c.l.b16 %v3684
      %v3820 = vunpack.c.l.b16 %v3685
      %v3821 = vunpack.c.l.b16 %v3686
      %v3822 = vunpack.c.l.b16 %v3687
      %v3823 = vunpack.c.l.b16 %v3688
      %v3824 = vunpack.c.l.b16 %v3689
      %v3825 = vunpack.c.l.b16 %v3690
      %v3826 = vunpack.c.l.b16 %v3691
      %v3827 = vunpack.c.l.b16 %v3692
      %v3828 = vunpack.c.l.b16 %v3693
      %v3829 = vunpack.c.l.b16 %v3694
      %v3830 = vunpack.c.l.b16 %v3695
      %v3831 = vunpack.c.l.b16 %v3696
      %v3832 = vunpack.c.l.b16 %v3697
      %v3833 = vunpack.c.l.b16 %v3698
      %v3834 = vunpack.c.l.b16 %v3699
      %v3835 = vunpack.c.l.b16 %v3700
      %v3836 = vunpack.c.l.b16 %v3701
      %v3837 = vunpack.c.l.b16 %v3702
      %v3838 = vunpack.c.l.b16 %v3703
      %v3839 = vunpack.c.l.b16 %v3704
      %v3840 = vunpack.c.l.b16 %v3705
      %v3841 = vunpack.c.l.b16 %v3706
      %v3842 = vunpack.c.l.b16 %v3707
      %v3843 = vunpack.c.l.b16 %v3708
      %v3844 = vunpack.c.l.b16 %v3709
      %v3845 = vpack.c.b16 %v3782, %v3781
      %v3846 = vpack.c.b16 %v3784, %v3783
      %v3847 = vpack.c.b16 %v3786, %v3785
      %v3848 = vpack.c.b16 %v3788, %v3787
      %v3849 = vpack.c.b16 %v3790, %v3789
      %v3850 = vpack.c.b16 %v3792, %v3791
      %v3851 = vpack.c.b16 %v3794, %v3793
      %v3852 = vpack.c.b16 %v3796, %v3795
      %v3853 = vpack.c.b16 %v3798, %v3797
      %v3854 = vpack.c.b16 %v3800, %v3799
      %v3855 = vpack.c.b16 %v3802, %v3801
      %v3856 = vpack.c.b16 %v3804, %v3803
      %v3857 = vpack.c.b16 %v3806, %v3805
      %v3858 = vpack.c.b16 %v3808, %v3807
      %v3859 = vpack.c.b16 %v3810, %v3809
      %v3860 = vpack.c.b16 %v3812, %v3811
      %v3861 = vpack.c.b16 %v3814, %v3813
      %v3862 = vpack.c.b16 %v3816, %v3815
      %v3863 = vpack.c.b16 %v3818, %v3817
      %v3864 = vpack.c.b16 %v3820, %v3819
      %v3865 = vpack.c.b16 %v3822, %v3821
      %v3866 = vpack.c.b16 %v3824, %v3823
      %v3867 = vpack.c.b16 %v3826, %v3825
      %v3868 = vpack.c.b16 %v3828, %v3827
      %v3869 = vpack.c.b16 %v3830, %v3829
      %v3870 = vpack.c.b16 %v3832, %v3831
      %v3871 = vpack.c.b16 %v3834, %v3833
      %v3872 = vpack.c.b16 %v3836, %v3835
      %v3873 = vpack.c.b16 %v3838, %v3837
      %v3874 = vpack.c.b16 %v3840, %v3839
      %v3875 = vpack.c.b16 %v3842, %v3841
      %v3876 = vpack.c.b16 %v3844, %v3843
      %3909 = vmatprep.subr.bf16.mxu0 0
      %3910 = vmatpush1.bf16.msra.mxu0 %v3852
      %3911 = vmatprep.subr.bf16.mxu0 0
      %3912 = vmatpush1.bf16.msra.mxu0 %v3851
      %3913 = vmatprep.subr.bf16.mxu0 0
      %3914 = vmatpush1.bf16.msra.mxu0 %v3850
      %3915 = vmatprep.subr.bf16.mxu0 0
      %3916 = vmatpush1.bf16.msra.mxu0 %v3849
      %3917 = vmatprep.subr.bf16.mxu0 0
      %3918 = vmatpush1.bf16.msra.mxu0 %v3848
      %3919 = vmatprep.subr.bf16.mxu0 0
      %3920 = vmatpush1.bf16.msra.mxu0 %v3847
      %3921 = vmatprep.subr.bf16.mxu0 0
      %3922 = vmatpush1.bf16.msra.mxu0 %v3846
      %3923 = vmatprep.subr.bf16.mxu0 0
      %3924 = vmatpush1.bf16.msra.mxu0 %v3845
      %3925 = vmatprep.subr.bf16.mxu0 0
      %3926 = vmatpush2.bf16.msra.mxu0 %v3860
      %3927 = vmatprep.subr.bf16.mxu0 0
      %3928 = vmatpush2.bf16.msra.mxu0 %v3859
      %3929 = vmatprep.subr.bf16.mxu0 0
      %3930 = vmatpush2.bf16.msra.mxu0 %v3858
      %3931 = vmatprep.subr.bf16.mxu0 0
      %3932 = vmatpush2.bf16.msra.mxu0 %v3857
      %3933 = vmatprep.subr.bf16.mxu0 0
      %3934 = vmatpush2.bf16.msra.mxu0 %v3856
      %3935 = vmatprep.subr.bf16.mxu0 0
      %3936 = vmatpush2.bf16.msra.mxu0 %v3855
      %3937 = vmatprep.subr.bf16.mxu0 0
      %3938 = vmatpush2.bf16.msra.mxu0 %v3854
      %3939 = vmatprep.subr.bf16.mxu0 0
      %3940 = vmatpush2.bf16.msra.mxu0 %v3853
      %3941 = vmatprep.mubr.bf16.mxu0 %v3639
      %3942 = vmatmul.mubr.bf16.gmra.mxu0 %v3638
      %v3943 = vpop.f32.mrf.mxu0
      %v3944 = vadd.f32 %v3715, %v3943
      %v3945 = vpop.f32.mrf.mxu0
      %v3946 = vpop.f32.mrf.mxu0
      %v3947 = vadd.f32 %v3715, %v3946
      %v3948 = vpop.f32.mrf.mxu0
      %3949 = vmatprep.mubr.bf16.mxu0 %v3643
      %3950 = vmatmul.mubr.bf16.gmra.mxu0 %v3642
      %v3951 = vpop.f32.mrf.mxu0
      %v3952 = vadd.f32 %v3715, %v3951
      %v3953 = vpop.f32.mrf.mxu0
      %v3954 = vpop.f32.mrf.mxu0
      %v3955 = vadd.f32 %v3715, %v3954
      %v3956 = vpop.f32.mrf.mxu0
      %3957 = vdwg.mxu0
      %3958 = vmatprep.subr.bf16.mxu0 0
      %3959 = vmatpush1.bf16.msra.mxu0 %v3868
      %3960 = vmatprep.subr.bf16.mxu0 0
      %3961 = vmatpush1.bf16.msra.mxu0 %v3867
      %3962 = vmatprep.subr.bf16.mxu0 0
      %3963 = vmatpush1.bf16.msra.mxu0 %v3866
      %3964 = vmatprep.subr.bf16.mxu0 0
      %3965 = vmatpush1.bf16.msra.mxu0 %v3865
      %3966 = vmatprep.subr.bf16.mxu0 0
      %3967 = vmatpush1.bf16.msra.mxu0 %v3864
      %3968 = vmatprep.subr.bf16.mxu0 0
      %3969 = vmatpush1.bf16.msra.mxu0 %v3863
      %3970 = vmatprep.subr.bf16.mxu0 0
      %3971 = vmatpush1.bf16.msra.mxu0 %v3862
      %3972 = vmatprep.subr.bf16.mxu0 0
      %3973 = vmatpush1.bf16.msra.mxu0 %v3861
      %3974 = vmatprep.subr.bf16.mxu0 0
      %3975 = vmatpush2.bf16.msra.mxu0 %v3876
      %3976 = vmatprep.subr.bf16.mxu0 0
      %3977 = vmatpush2.bf16.msra.mxu0 %v3875
      %3978 = vmatprep.subr.bf16.mxu0 0
      %3979 = vmatpush2.bf16.msra.mxu0 %v3874
      %3980 = vmatprep.subr.bf16.mxu0 0
      %3981 = vmatpush2.bf16.msra.mxu0 %v3873
      %3982 = vmatprep.subr.bf16.mxu0 0
      %3983 = vmatpush2.bf16.msra.mxu0 %v3872
      %3984 = vmatprep.subr.bf16.mxu0 0
      %3985 = vmatpush2.bf16.msra.mxu0 %v3871
      %3986 = vmatprep.subr.bf16.mxu0 0
      %3987 = vmatpush2.bf16.msra.mxu0 %v3870
      %3988 = vmatprep.subr.bf16.mxu0 0
      %3989 = vmatpush2.bf16.msra.mxu0 %v3869
      %3990 = vmatprep.mubr.bf16.mxu0 %v3641
      %3991 = vmatmul.mubr.bf16.gmra.mxu0 %v3640
      %v3992 = vpop.f32.mrf.mxu0
      %v3993 = vadd.f32 %v3944, %v3992
      %v3994 = vpop.f32.mrf.mxu0
      %v3995 = vpop.f32.mrf.mxu0
      %v3996 = vadd.f32 %v3947, %v3995
      %v3997 = vpop.f32.mrf.mxu0
      %3998 = vmatprep.mubr.bf16.mxu0 %v3645
      %3999 = vmatmul.mubr.bf16.gmra.mxu0 %v3644
      %v4000 = vpop.f32.mrf.mxu0
      %v4001 = vadd.f32 %v3952, %v4000
      %v4002 = vpop.f32.mrf.mxu0
      %v4003 = vpop.f32.mrf.mxu0
      %v4004 = vadd.f32 %v3955, %v4003
      %v4005 = vpop.f32.mrf.mxu0
      %4006 = vdwg.mxu0
      %v4007 = vadd.f32 %v3102, %v3993
      %v4008 = vadd.f32 %v3103, %v3996
      %v4009 = vadd.f32 %v3104, %v4001
      %v4010 = vadd.f32 %v3105, %v4004
      %4011 = vst [vmem:[#allocation2] sm:$0xff] %v4007
      %4012 = vst [vmem:[#allocation2 + $0x8] sm:$0xff] %v4008
      %4013 = vst [vmem:[#allocation2 + $0x10] sm:$0xff] %v4009
      %4014 = vst [vmem:[#allocation2 + $0x18] sm:$0xff] %v4010
      %p4015 = scmp.eq.s32.totalorder %s27, 1
      // Predicated region
      $region119: #{dino_siamese_forward.3} parent=79 // pred_check
        %p4016 = pneg %p4015
      $region120: #{dino_siamese_forward.3} parent=79 // pred_check_branch
        %4018 = sbr.rel (%p4016) target = $region122
      $region121: #{dino_siamese_forward.3} parent=79 // pred_region
        %v4019 = vld [vmem:[%s2] sm:$0x1]
        %v4020 = vld [vmem:[%s3] sm:$0x1]
        %v4025 = vrot.slane %v4008, 7
        %vm4026 = vcmask 1041409
        %v4027 = vsel %vm4026, %v4025, %v4007
        %v4028 = vrot.slane %v4009, 6
        %vm4029 = vcmask 1042434
        %v4030 = vsel %vm4029, %v4028, %v4027
        %v4031 = vrot.slane %v4010, 5
        %vm4032 = vcmask 1043459
        %v4033 = vsel %vm4032, %v4031, %v4030
        %v4035 = vsel %vm2180, %v4033, 0.0
        %4036 = vadd.xlane.f32.xlu0 %v4035
        %v4037 = vpop.xlane.xlu0 %4036
        %v4038 = vmul.f32 %v4037, %v730
        %v4040 = vrot.slane %v4038, 1
        %v4041 = vrot.slane %v4038, 2
        %v4042 = vrot.slane %v4038, 3
        %v4047 = vsub.f32 %v4007, %v4038
        %v4048 = vsub.f32 %v4008, %v4040
        %v4049 = vsub.f32 %v4009, %v4041
        %v4050 = vsub.f32 %v4010, %v4042
        %v4051 = vmul.f32 %v4047, %v4047
        %v4052 = vmul.f32 %v4048, %v4048
        %v4053 = vmul.f32 %v4049, %v4049
        %v4054 = vmul.f32 %v4050, %v4050
        %v4059 = vrot.slane %v4052, 7
        %v4060 = vsel %vm4026, %v4059, %v4051
        %v4061 = vrot.slane %v4053, 6
        %v4062 = vsel %vm4029, %v4061, %v4060
        %v4063 = vrot.slane %v4054, 5
        %v4064 = vsel %vm4032, %v4063, %v4062
        %v4066 = vsel %vm2180, %v4064, 0.0
        %4067 = vadd.xlane.f32.xlu0 %v4066
        %v4068 = vpop.xlane.xlu0 %4067
        %v4069 = vmul.f32 %v4068, %v730
        %v4070 = vadd.f32 %v4069, 1e-06
        %v4071 = vrsqrt.pop %v4070
        %v4073 = vrot.slane %v4071, 1
        %v4074 = vrot.slane %v4071, 2
        %v4075 = vrot.slane %v4071, 3
        %v4080 = vmul.f32 %v4047, %v4071
        %v4081 = vmul.f32 %v4048, %v4073
        %v4082 = vmul.f32 %v4049, %v4074
        %v4083 = vmul.f32 %v4050, %v4075
        %v4085 = vlaneseq
        %v4086 = vshrl.u32 %v4085, 7
        %v4087 = vsub.s32 0, %v4086
        %v4088 = vrot.slane %v4019, %v4087
        %v4090 = vmul.f32 %v4080, %v4088
        %v4091 = vmul.f32 %v4081, %v4088
        %v4092 = vmul.f32 %v4082, %v4088
        %v4093 = vmul.f32 %v4083, %v4088
        %v4095 = vlaneseq
        %v4096 = vshrl.u32 %v4095, 7
        %v4097 = vsub.s32 0, %v4096
        %v4098 = vrot.slane %v4020, %v4097
        %v4100 = vadd.f32 %v4090, %v4098
        %v4101 = vadd.f32 %v4091, %v4098
        %v4102 = vadd.f32 %v4092, %v4098
        %v4103 = vadd.f32 %v4093, %v4098
        %v4104 = vmul.f32 %v4100, %v4102
        %v4105 = vmul.f32 %v4101, %v4103
        %v4108 = vrot.slane %v4105, 7
        %v4109 = vsel %vm4026, %v4108, %v4104
        %vm4111 = vcmask 1041408
        %v4112 = vsel %vm4111, %v4109, 0.0
        %4113 = vadd.xlane.f32.xlu0 %v4112
        %v4114 = vpop.xlane.xlu0 %4113
        %v4115 = vmul.f32 %v4100, %v4100
        %v4116 = vmul.f32 %v4101, %v4101
        %v4119 = vrot.slane %v4116, 7
        %v4120 = vsel %vm4026, %v4119, %v4115
        %v4122 = vsel %vm4111, %v4120, 0.0
        %4123 = vadd.xlane.f32.xlu0 %v4122
        %v4124 = vpop.xlane.xlu0 %4123
        %v4125 = vrsqrt.pop %v4124
        %v4126 = vmul.f32 %v4124, %v4125
        %vm4127 = vcmp.eq.f32.partialorder %v4124, inf
        %v4128 = vsel %vm4127, %v4124, %v4126
        %vm4129 = vcmp.eq.f32.partialorder %v4124, 0.0
        %v4130 = vand.u32 %v4124, 2147483648
        %v4131 = vsel %vm4129, %v4130, %v4128
        %v4132 = vmul.f32 %v4102, %v4102
        %v4133 = vmul.f32 %v4103, %v4103
        %v4136 = vrot.slane %v4133, 7
        %v4137 = vsel %vm4026, %v4136, %v4132
        %v4139 = vsel %vm4111, %v4137, 0.0
        %4140 = vadd.xlane.f32.xlu0 %v4139
        %v4141 = vpop.xlane.xlu0 %4140
        %v4142 = vrsqrt.pop %v4141
        %v4143 = vmul.f32 %v4141, %v4142
        %vm4144 = vcmp.eq.f32.partialorder %v4141, inf
        %v4145 = vsel %vm4144, %v4141, %v4143
        %vm4146 = vcmp.eq.f32.partialorder %v4141, 0.0
        %v4147 = vand.u32 %v4141, 2147483648
        %v4148 = vsel %vm4146, %v4147, %v4145
        %v4149 = vmax.f32 %v4131, 1e-08
        %v4150 = vmax.f32 %v4148, 1e-08
        %v4151 = vmul.f32 %v4149, %v4150
        %v4152 = vrcp.pop %v4151
        %v4153 = vmul.f32 %v4114, %v4152
        %4154 = vst [vmem:[%s16] sm:$0x3] %v4153
      $region122: #{dino_siamese_forward.3} parent=79 // pred_fallthru
        _
      // Predicated region
      $region123: #{dino_siamese_forward.3} parent=79 // pred_check
        %p4155 = pneg %p415
      $region124: #{dino_siamese_forward.3} parent=79 // pred_check_branch
        %4157 = sbr.rel (%p4155) target = $region126
      $region125: #{dino_siamese_forward.3} parent=79 // pred_region
        _
      $region126: #{dino_siamese_forward.3} parent=79 // pred_fallthru
        _
      // Predicated region
      $region127: #{dino_siamese_forward.3} parent=79 // pred_check
        %p4158 = pneg %p415
      $region128: #{dino_siamese_forward.3} parent=79 // pred_check_branch
        %4160 = sbr.rel (%p4158) target = $region130
      $region129: #{dino_siamese_forward.3} parent=79 // pred_region
        _
      $region130: #{dino_siamese_forward.3} parent=79 // pred_fallthru
        _
    $region80: #{dino_siamese_forward.3} parent=5 // pred_fallthru
      _
    %p4161 = scmp.le.s32.totalorder 2, %s22
    // Predicated region
    $region131: #{dino_siamese_forward.3} parent=5 // pred_check
      %p4162 = pneg %p4161
    $region132: #{dino_siamese_forward.3} parent=5 // pred_check_branch
      %4164 = sbr.rel (%p4162) target = $region134
    $region133: #{dino_siamese_forward.3} parent=5 // pred_region
      %s4165 = ssub.s32 %s22, 2
    $region134: #{dino_siamese_forward.3} parent=5 // pred_fallthru
      _
  $region6: #{dino_siamese_forward.3} parent=0 // loop_footer
    %s26 = sadd.s32 1, %s22
  $region7: #{dino_siamese_forward.3} parent=0 // loop_footer_branch
    %21 = sbr.rel target = $region3
  $region8: #{dino_siamese_forward.3} parent=0 // loop_exit
    _
  %4166 = vsyncmov [#allocation3]
  %s4167 = vpop.sfrf %4166
  %p4168 = scmp.eq.s32.totalorder %s4167, 0
  %p4169 = pneg %p4168
  %4171 = shalt.err (%p4169)

</llo_original>
